<compile_context>
chip_gen: v7x
topology: tpu7x:2x2x1
jax: 0.10.0
libtpu: 0.0.40
codegen_flags: <defaults>
</compile_context>

<pallas_src>
import functools

import jax
import jax.numpy as jnp
from jax.experimental import pallas as pl
from jax.experimental.pallas import tpu as pltpu

NEG_SLOPE = 0.01   # PyTorch nn.LeakyReLU default
BN_EPS = 1e-5      # PyTorch nn.BatchNorm2d default


def _leaky(x):
    return jnp.where(x >= 0, x, NEG_SLOPE * x)


# ----------------------------------------------------------------------------
# In-kernel building blocks (operate on one task's (N, *) tiles)
# ----------------------------------------------------------------------------
def _vertex_similarity_block(node, edge, w1, b1, w2, b2, w3, b3,
                             diag_mask, metric, scale):
    """node: (N, Cin), edge: (N, Ns).  Returns (edge_new, simi), both (N, Ns)."""
    n, cin = node.shape
    ns = edge.shape[1]

    node_sup = node[:ns, :]                                  # (Ns, Cin)
    # sim[j, i, :] = f(node[i, :] - node[j, :])   (batched over all pairs)
    diff = node[None, :, :] - node_sup[:, None, :]           # (Ns, N, Cin)
    if metric == 'l2':
        sim = diff * diff
    else:  # 'l1'
        sim = jnp.abs(diff)

    # One MXU matmul per MLP layer over all Ns*N rows (instead of Ns tiny matmuls).
    sim_flat = sim.reshape(ns * n, cin)                      # leading-dim collapse
    h = _leaky(jnp.dot(sim_flat, w1, preferred_element_type=jnp.float32) + b1)
    h = _leaky(jnp.dot(h, w2, preferred_element_type=jnp.float32) + b2)  # (Ns*N, Cb)

    # Tiny per-support-column epilogue (1-channel projection + metric reduce).
    edge_cols, simi_cols = [], []
    for j in range(ns):
        hj = h[j * n:(j + 1) * n, :]                         # (N, Cb) static slice
        logit = jnp.sum(hj * w3, axis=-1, keepdims=True) + b3
        edge_cols.append(jax.nn.sigmoid(logit))              # (N, 1)
        simi_cols.append(-jnp.sum(sim[j], axis=-1, keepdims=True) * scale)
    edge_sig = jnp.concatenate(edge_cols, axis=1)            # (N, Ns)
    simi = jnp.concatenate(simi_cols, axis=1)                # (N, Ns)

    # edge re-normalization (matches the PyTorch reference ordering)
    inv_diag = 1.0 - diag_mask
    edge_last = edge * inv_diag
    edge_last_sum = jnp.sum(edge_last, axis=-1, keepdims=True)
    en = edge_sig * edge_last
    l1 = jnp.maximum(jnp.sum(jnp.abs(en), axis=-1, keepdims=True), 1e-12)
    edge_new = en * pl.reciprocal(l1, approx=True) * edge_last_sum
    edge_new = edge_new + diag_mask + 1e-6
    edge_new = edge_new * pl.reciprocal(
        jnp.sum(edge_new, axis=-1, keepdims=True), approx=True)
    return edge_new, simi


def _vertex_update_low_block(edge, node_low, w_e, w_n, b):
    """Linear(2*Ns -> Ns) with the concat replaced by two accumulating matmuls."""
    return _leaky(jnp.dot(edge, w_e, preferred_element_type=jnp.float32)
                  + jnp.dot(node_low, w_n, preferred_element_type=jnp.float32)
                  + b)


def _vertex_update_high_block(edge, node, w1n, w1a, b1, w2, b2, diag_mask, comb_ref):
    """edge: (N, Ns), node: (N, C) -> new node (N, C)."""
    n, c = node.shape
    ns = edge.shape[1]

    inv_diag = 1.0 - diag_mask
    ef = edge * inv_diag
    l1 = jnp.maximum(jnp.sum(jnp.abs(ef), axis=-1, keepdims=True), 1e-12)
    ef = ef * pl.reciprocal(l1, approx=True)                  # F.normalize(p=1, dim=-1)

    aggr_all = jnp.dot(ef, node[:ns, :],
                       preferred_element_type=jnp.float32)              # (N, C)
    aggr_sup = jax.lax.dot_general(ef, node, (((0,), (0,)), ((), ())),
                                   preferred_element_type=jnp.float32)  # (Ns, C)
    # merge in a VMEM scratch (avoids a sublane concat): rows <Ns get aggr_sup
    comb_ref[...] = aggr_all
    comb_ref[:ns, :] = aggr_sup
    combined = comb_ref[...]

    # concat([node, combined]) @ w1  ==  node @ w1n + combined @ w1a
    h = _leaky(jnp.dot(node, w1n, preferred_element_type=jnp.float32)
               + jnp.dot(combined, w1a, preferred_element_type=jnp.float32)
               + b1)
    return _leaky(jnp.dot(h, w2, preferred_element_type=jnp.float32) + b2)


# ----------------------------------------------------------------------------
# Fused GSS kernel (one grid step == one task; all generations unrolled inside)
# ----------------------------------------------------------------------------
def _gss_kernel(
        # per-task inputs
        node_high_ref, node_low_ref, edge_high_ref, edge_low_ref,
        # initial VertexSimilarity (high) weights
        iw1_ref, ib1_ref, iw2_ref, ib2_ref, iw3_ref, ib3_ref,
        # stacked per-generation weights (leading axis = generation)
        hw1_ref, hb1_ref, hw2_ref, hb2_ref, hw3_ref, hb3_ref,   # VertexSimilarityHigh
        lwe_ref, lwn_ref, lb_ref,                               # VertexUpdateLow
        sw1_ref, sb1_ref, sw2_ref, sb2_ref, sw3_ref, sb3_ref,   # VertexSimilarityLow
        uwn_ref, uwa_ref, ub1_ref, uw2_ref, ub2_ref,            # VertexUpdateHigh
        # outputs: (num_gen, 1, N, Ns) blocks
        simi_high_ref, simi_high_metric_ref, simi_low_ref, simi_low_metric_ref,
        # scratch
        comb_ref,
        *, num_gen, high_metric, low_metric, high_scale, low_scale, loss_indicator):
    node_high = node_high_ref[0]          # (N, C)
    node_low = node_low_ref[0]            # (N, Ns)
    edge_high = edge_high_ref[0]          # (N, Ns)
    edge_low = edge_low_ref[0]            # (N, Ns)
    n, ns = edge_high.shape

    # diagonal mask built ONCE and reused by every sub-module / generation
    row = jax.lax.broadcasted_iota(jnp.int32, (n, ns), 0)
    col = jax.lax.broadcasted_iota(jnp.int32, (n, ns), 1)
    diag_mask = (row == col).astype(jnp.float32)

    # initial edge_high refinement (scale = 1.0)
    edge_high, _ = _vertex_similarity_block(
        node_high, edge_high, iw1_ref[...], ib1_ref[...], iw2_ref[...], ib2_ref[...],
        iw3_ref[...], ib3_ref[...], diag_mask, high_metric, 1.0)

    for l in range(num_gen):
        edge_high, sm_h = _vertex_similarity_block(
            node_high, edge_high, hw1_ref[l], hb1_ref[l], hw2_ref[l], hb2_ref[l],
            hw3_ref[l], hb3_ref[l], diag_mask, high_metric, high_scale)
        node_low = _vertex_update_low_block(
            edge_high, node_low, lwe_ref[l], lwn_ref[l], lb_ref[l])
        edge_low, sm_l = _vertex_similarity_block(
            node_low, edge_low, sw1_ref[l], sb1_ref[l], sw2_ref[l], sb2_ref[l],
            sw3_ref[l], sb3_ref[l], diag_mask, low_metric, low_scale)
        node_high = _vertex_update_high_block(
            edge_low, node_high, uwn_ref[l], uwa_ref[l], ub1_ref[l],
            uw2_ref[l], ub2_ref[l], diag_mask, comb_ref)

        simi_high_ref[l, 0] = edge_high * loss_indicator[0]
        simi_high_metric_ref[l, 0] = sm_h * loss_indicator[1]
        simi_low_ref[l, 0] = edge_low * loss_indicator[2]
        simi_low_metric_ref[l, 0] = sm_l * loss_indicator[3]


def _full_spec(arr):
    """Whole-array (weight) BlockSpec: same block for every grid step."""
    zeros = (0,) * arr.ndim
    return pl.BlockSpec(arr.shape, lambda t: zeros)


def gss_forward(params, node_high, node_low, edge_high, edge_low,
                num_gen, loss_indicator, high_metric, low_metric,
                high_scale, low_scale):
    T, N, Ns = edge_high.shape
    C = node_high.shape[2]
    L = num_gen

    ip = params['initial']
    gp = params['gens']

    weights = [ip['w1'], ip['b1'], ip['w2'], ip['b2'], ip['w3'], ip['b3'],
               gp['hw1'], gp['hb1'], gp['hw2'], gp['hb2'], gp['hw3'], gp['hb3'],
               gp['lwe'], gp['lwn'], gp['lb'],
               gp['sw1'], gp['sb1'], gp['sw2'], gp['sb2'], gp['sw3'], gp['sb3'],
               gp['uwn'], gp['uwa'], gp['ub1'], gp['uw2'], gp['ub2']]

    kernel = functools.partial(
        _gss_kernel, num_gen=num_gen, high_metric=high_metric, low_metric=low_metric,
        high_scale=float(high_scale), low_scale=float(low_scale),
        loss_indicator=tuple(float(x) for x in loss_indicator))

    out_shape = tuple(jax.ShapeDtypeStruct((L, T, N, Ns), jnp.float32)
                      for _ in range(4))
    out_spec = pl.BlockSpec((L, 1, N, Ns), lambda t: (0, t, 0, 0))

    outs = pl.pallas_call(
        kernel,
        out_shape=out_shape,
        grid=(T,),
        in_specs=[
            pl.BlockSpec((1, N, C), lambda t: (t, 0, 0)),
            pl.BlockSpec((1, N, Ns), lambda t: (t, 0, 0)),
            pl.BlockSpec((1, N, Ns), lambda t: (t, 0, 0)),
            pl.BlockSpec((1, N, Ns), lambda t: (t, 0, 0)),
        ] + [_full_spec(w) for w in weights],
        out_specs=(out_spec, out_spec, out_spec, out_spec),
        scratch_shapes=[pltpu.VMEM((N, C), jnp.float32)],
        compiler_params=pltpu.CompilerParams(
            dimension_semantics=("parallel",),
            vmem_limit_bytes=32 * 1024 * 1024),
    )(node_high, node_low, edge_high, edge_low, *weights)

    simi_high, simi_high_metric, simi_low, simi_low_metric = outs
    return ([simi_high[l] for l in range(L)],
            [simi_high_metric[l] for l in range(L)],
            [simi_low[l] for l in range(L)],
            [simi_low_metric[l] for l in range(L)])


# ----------------------------------------------------------------------------
# Deterministic parameter initialization (BatchNorm folded, eval mode)
# ----------------------------------------------------------------------------
_BN_SCALE = 1.0 / (1.0 + BN_EPS) ** 0.5   # fresh BN in eval mode


def init_vertex_similarity_params(key, cin, cbase):
    k1, k2, k3, k4 = jax.random.split(key, 4)
    w1 = jax.random.normal(k1, (cin, 2 * cbase), jnp.float32) / jnp.sqrt(1.0 * cin) * _BN_SCALE
    w2 = jax.random.normal(k2, (2 * cbase, cbase), jnp.float32) / jnp.sqrt(2.0 * cbase) * _BN_SCALE
    w3 = jax.random.normal(k3, (1, cbase), jnp.float32) / jnp.sqrt(1.0 * cbase)
    b3 = jax.random.normal(k4, (1, 1), jnp.float32) * 0.1
    return dict(w1=w1, b1=jnp.zeros((1, 2 * cbase), jnp.float32),
                w2=w2, b2=jnp.zeros((1, cbase), jnp.float32),
                w3=w3, b3=b3)


def init_vertex_update_low_params(key, ns):
    k1, k2, k3 = jax.random.split(key, 3)
    scale = 1.0 / (2.0 * ns) ** 0.5
    return dict(w_e=jax.random.normal(k1, (ns, ns), jnp.float32) * scale,
                w_n=jax.random.normal(k2, (ns, ns), jnp.float32) * scale,
                b=jax.random.normal(k3, (1, ns), jnp.float32) * 0.1)


def init_vertex_update_high_params(key, cin, cout):
    # cin = 2 * emb; the first conv weight is pre-split into node / aggregate halves
    k1, k2, k3 = jax.random.split(key, 3)
    half = cin // 2
    scale1 = _BN_SCALE / (1.0 * cin) ** 0.5
    return dict(
        w1_node=jax.random.normal(k1, (half, 2 * cout), jnp.float32) * scale1,
        w1_aggr=jax.random.normal(k2, (half, 2 * cout), jnp.float32) * scale1,
        b1=jnp.zeros((1, 2 * cout), jnp.float32),
        w2=jax.random.normal(k3, (2 * cout, cout), jnp.float32) / (2.0 * cout) ** 0.5 * _BN_SCALE,
        b2=jnp.zeros((1, cout), jnp.float32))


def init_gss_params(key, num_gen, emb_size, num_support):
    keys = jax.random.split(key, 1 + 4 * num_gen)
    initial = init_vertex_similarity_params(keys[0], emb_size, emb_size)

    vsh = [init_vertex_similarity_params(keys[1 + 4 * l], emb_size, emb_size)
           for l in range(num_gen)]
    vul = [init_vertex_update_low_params(keys[2 + 4 * l], num_support)
           for l in range(num_gen)]
    vsl = [init_vertex_similarity_params(keys[3 + 4 * l], num_support, num_support)
           for l in range(num_gen)]
    vuh = [init_vertex_update_high_params(keys[4 + 4 * l], 2 * emb_size, emb_size)
           for l in range(num_gen)]

    def stack(ps, name):
        return jnp.stack([p[name] for p in ps], axis=0)

    gens = dict(
        hw1=stack(vsh, 'w1'), hb1=stack(vsh, 'b1'), hw2=stack(vsh, 'w2'),
        hb2=stack(vsh, 'b2'), hw3=stack(vsh, 'w3'), hb3=stack(vsh, 'b3'),
        lwe=stack(vul, 'w_e'), lwn=stack(vul, 'w_n'), lb=stack(vul, 'b'),
        sw1=stack(vsl, 'w1'), sb1=stack(vsl, 'b1'), sw2=stack(vsl, 'w2'),
        sb2=stack(vsl, 'b2'), sw3=stack(vsl, 'w3'), sb3=stack(vsl, 'b3'),
        uwn=stack(vuh, 'w1_node'), uwa=stack(vuh, 'w1_aggr'),
        ub1=stack(vuh, 'b1'), uw2=stack(vuh, 'w2'), ub2=stack(vuh, 'b2'))
    return dict(initial=initial, gens=gens)


# TODO(synk): Dropout2d (train mode, p > 0) and BatchNorm running-stat updates are not
# implemented; this kernel covers the eval-mode forward (p = 0, BN folded into weights).

if __name__ == "__main__":
    # T=2 tasks, N=num_sample=8 nodes (4 support + 4 query), N_s=4, emb_size=32
    T, N, Ns, EMB = 2, 8, 4, 32
    num_gen = 2
    loss_indicator = (1.0, 1.0, 1.0, 1.0)
    high_metric, low_metric = 'l1', 'l2'
    high_scale, low_scale = 1.0, 0.5

    key = jax.random.PRNGKey(0)
    kp, kh, kl, keh, kel = jax.random.split(key, 5)
    params = init_gss_params(kp, num_gen, EMB, Ns)

    node_high = jax.random.normal(kh, (T, N, EMB), jnp.float32)
    node_low = jax.random.normal(kl, (T, N, Ns), jnp.float32)
    edge_high = jax.random.uniform(keh, (T, N, Ns), jnp.float32)
    edge_low = jax.random.uniform(kel, (T, N, Ns), jnp.float32)

    outs = gss_forward(params, node_high, node_low, edge_high, edge_low,
                       num_gen, loss_indicator, high_metric, low_metric,
                       high_scale, low_scale)
    jax.block_until_ready(outs)
    print("KERNEL_OK")
</pallas_src>

<mosaic_0001>
module attributes {stable_mosaic.version = 11 : i64} {
  func.func @_gss_kernel(%arg0: i32, %arg1: memref<1x8x32xf32, #tpu.memory_space<vmem>>, %arg2: memref<1x8x4xf32, #tpu.memory_space<vmem>>, %arg3: memref<1x8x4xf32, #tpu.memory_space<vmem>>, %arg4: memref<1x8x4xf32, #tpu.memory_space<vmem>>, %arg5: memref<32x64xf32, #tpu.memory_space<vmem>>, %arg6: memref<1x64xf32, #tpu.memory_space<vmem>>, %arg7: memref<64x32xf32, #tpu.memory_space<vmem>>, %arg8: memref<1x32xf32, #tpu.memory_space<vmem>>, %arg9: memref<1x32xf32, #tpu.memory_space<vmem>>, %arg10: memref<1x1xf32, #tpu.memory_space<vmem>>, %arg11: memref<2x32x64xf32, #tpu.memory_space<vmem>>, %arg12: memref<2x1x64xf32, #tpu.memory_space<vmem>>, %arg13: memref<2x64x32xf32, #tpu.memory_space<vmem>>, %arg14: memref<2x1x32xf32, #tpu.memory_space<vmem>>, %arg15: memref<2x1x32xf32, #tpu.memory_space<vmem>>, %arg16: memref<2x1x1xf32, #tpu.memory_space<vmem>>, %arg17: memref<2x4x4xf32, #tpu.memory_space<vmem>>, %arg18: memref<2x4x4xf32, #tpu.memory_space<vmem>>, %arg19: memref<2x1x4xf32, #tpu.memory_space<vmem>>, %arg20: memref<2x4x8xf32, #tpu.memory_space<vmem>>, %arg21: memref<2x1x8xf32, #tpu.memory_space<vmem>>, %arg22: memref<2x8x4xf32, #tpu.memory_space<vmem>>, %arg23: memref<2x1x4xf32, #tpu.memory_space<vmem>>, %arg24: memref<2x1x4xf32, #tpu.memory_space<vmem>>, %arg25: memref<2x1x1xf32, #tpu.memory_space<vmem>>, %arg26: memref<2x32x64xf32, #tpu.memory_space<vmem>>, %arg27: memref<2x32x64xf32, #tpu.memory_space<vmem>>, %arg28: memref<2x1x64xf32, #tpu.memory_space<vmem>>, %arg29: memref<2x64x32xf32, #tpu.memory_space<vmem>>, %arg30: memref<2x1x32xf32, #tpu.memory_space<vmem>>, %arg31: memref<2x1x8x4xf32, #tpu.memory_space<vmem>>, %arg32: memref<2x1x8x4xf32, #tpu.memory_space<vmem>>, %arg33: memref<2x1x8x4xf32, #tpu.memory_space<vmem>>, %arg34: memref<2x1x8x4xf32, #tpu.memory_space<vmem>>, %arg35: memref<8x32xf32, #tpu.memory_space<vmem>>) attributes {dimension_semantics = [#tpu.dimension_semantics<parallel>], iteration_bounds = array<i64: 2>, scalar_prefetch = 0 : i64, scratch_operands = 1 : i64, tpu.core_type = #tpu.core_type<tc>, window_params = [{transform_indices = @transform_0, window_bounds = array<i64: 1, 8, 32>}, {transform_indices = @transform_1, window_bounds = array<i64: 1, 8, 4>}, {transform_indices = @transform_2, window_bounds = array<i64: 1, 8, 4>}, {transform_indices = @transform_3, window_bounds = array<i64: 1, 8, 4>}, {pipeline_mode = #tpu.pipeline_mode<synchronous>, transform_indices = @transform_4, window_bounds = array<i64: 32, 64>}, {pipeline_mode = #tpu.pipeline_mode<synchronous>, transform_indices = @transform_5, window_bounds = array<i64: 1, 64>}, {pipeline_mode = #tpu.pipeline_mode<synchronous>, transform_indices = @transform_6, window_bounds = array<i64: 64, 32>}, {pipeline_mode = #tpu.pipeline_mode<synchronous>, transform_indices = @transform_7, window_bounds = array<i64: 1, 32>}, {pipeline_mode = #tpu.pipeline_mode<synchronous>, transform_indices = @transform_8, window_bounds = array<i64: 1, 32>}, {pipeline_mode = #tpu.pipeline_mode<synchronous>, transform_indices = @transform_9, window_bounds = array<i64: 1, 1>}, {pipeline_mode = #tpu.pipeline_mode<synchronous>, transform_indices = @transform_10, window_bounds = array<i64: 2, 32, 64>}, {pipeline_mode = #tpu.pipeline_mode<synchronous>, transform_indices = @transform_11, window_bounds = array<i64: 2, 1, 64>}, {pipeline_mode = #tpu.pipeline_mode<synchronous>, transform_indices = @transform_12, window_bounds = array<i64: 2, 64, 32>}, {pipeline_mode = #tpu.pipeline_mode<synchronous>, transform_indices = @transform_13, window_bounds = array<i64: 2, 1, 32>}, {pipeline_mode = #tpu.pipeline_mode<synchronous>, transform_indices = @transform_14, window_bounds = array<i64: 2, 1, 32>}, {pipeline_mode = #tpu.pipeline_mode<synchronous>, transform_indices = @transform_15, window_bounds = array<i64: 2, 1, 1>}, {pipeline_mode = #tpu.pipeline_mode<synchronous>, transform_indices = @transform_16, window_bounds = array<i64: 2, 4, 4>}, {pipeline_mode = #tpu.pipeline_mode<synchronous>, transform_indices = @transform_17, window_bounds = array<i64: 2, 4, 4>}, {pipeline_mode = #tpu.pipeline_mode<synchronous>, transform_indices = @transform_18, window_bounds = array<i64: 2, 1, 4>}, {pipeline_mode = #tpu.pipeline_mode<synchronous>, transform_indices = @transform_19, window_bounds = array<i64: 2, 4, 8>}, {pipeline_mode = #tpu.pipeline_mode<synchronous>, transform_indices = @transform_20, window_bounds = array<i64: 2, 1, 8>}, {pipeline_mode = #tpu.pipeline_mode<synchronous>, transform_indices = @transform_21, window_bounds = array<i64: 2, 8, 4>}, {pipeline_mode = #tpu.pipeline_mode<synchronous>, transform_indices = @transform_22, window_bounds = array<i64: 2, 1, 4>}, {pipeline_mode = #tpu.pipeline_mode<synchronous>, transform_indices = @transform_23, window_bounds = array<i64: 2, 1, 4>}, {pipeline_mode = #tpu.pipeline_mode<synchronous>, transform_indices = @transform_24, window_bounds = array<i64: 2, 1, 1>}, {pipeline_mode = #tpu.pipeline_mode<synchronous>, transform_indices = @transform_25, window_bounds = array<i64: 2, 32, 64>}, {pipeline_mode = #tpu.pipeline_mode<synchronous>, transform_indices = @transform_26, window_bounds = array<i64: 2, 32, 64>}, {pipeline_mode = #tpu.pipeline_mode<synchronous>, transform_indices = @transform_27, window_bounds = array<i64: 2, 1, 64>}, {pipeline_mode = #tpu.pipeline_mode<synchronous>, transform_indices = @transform_28, window_bounds = array<i64: 2, 64, 32>}, {pipeline_mode = #tpu.pipeline_mode<synchronous>, transform_indices = @transform_29, window_bounds = array<i64: 2, 1, 32>}, {transform_indices = @transform_30, window_bounds = array<i64: 2, 1, 8, 4>}, {transform_indices = @transform_31, window_bounds = array<i64: 2, 1, 8, 4>}, {transform_indices = @transform_32, window_bounds = array<i64: 2, 1, 8, 4>}, {transform_indices = @transform_33, window_bounds = array<i64: 2, 1, 8, 4>}]} {
    %c0 = arith.constant 0 : index
    %c0_0 = arith.constant 0 : index
    %c0_1 = arith.constant 0 : index
    %0 = vector.load %arg1[%c0, %c0_0, %c0_1] : memref<1x8x32xf32, #tpu.memory_space<vmem>>, vector<1x8x32xf32>
    %1 = vector.shape_cast %0 : vector<1x8x32xf32> to vector<8x32xf32>
    %c0_2 = arith.constant 0 : index
    %c0_3 = arith.constant 0 : index
    %c0_4 = arith.constant 0 : index
    %2 = vector.load %arg2[%c0_2, %c0_3, %c0_4] : memref<1x8x4xf32, #tpu.memory_space<vmem>>, vector<1x8x4xf32>
    %3 = vector.shape_cast %2 : vector<1x8x4xf32> to vector<8x4xf32>
    %c0_5 = arith.constant 0 : index
    %c0_6 = arith.constant 0 : index
    %c0_7 = arith.constant 0 : index
    %4 = vector.load %arg3[%c0_5, %c0_6, %c0_7] : memref<1x8x4xf32, #tpu.memory_space<vmem>>, vector<1x8x4xf32>
    %5 = vector.shape_cast %4 : vector<1x8x4xf32> to vector<8x4xf32>
    %c0_8 = arith.constant 0 : index
    %c0_9 = arith.constant 0 : index
    %c0_10 = arith.constant 0 : index
    %6 = vector.load %arg4[%c0_8, %c0_9, %c0_10] : memref<1x8x4xf32, #tpu.memory_space<vmem>>, vector<1x8x4xf32>
    %7 = vector.shape_cast %6 : vector<1x8x4xf32> to vector<8x4xf32>
    %8 = tpu.iota {dimensions = array<i32: 0>} : vector<8x4xi32>
    %9 = tpu.iota {dimensions = array<i32: 1>} : vector<8x4xi32>
    %10 = arith.cmpi eq, %8, %9 : vector<8x4xi32>
    %11 = arith.extui %10 : vector<8x4xi1> to vector<8x4xi32>
    %12 = arith.sitofp %11 : vector<8x4xi32> to vector<8x4xf32>
    %c0_11 = arith.constant 0 : index
    %c0_12 = arith.constant 0 : index
    %13 = vector.load %arg5[%c0_11, %c0_12] : memref<32x64xf32, #tpu.memory_space<vmem>>, vector<32x64xf32>
    %c0_13 = arith.constant 0 : index
    %c0_14 = arith.constant 0 : index
    %14 = vector.load %arg6[%c0_13, %c0_14] : memref<1x64xf32, #tpu.memory_space<vmem>>, vector<1x64xf32>
    %c0_15 = arith.constant 0 : index
    %c0_16 = arith.constant 0 : index
    %15 = vector.load %arg7[%c0_15, %c0_16] : memref<64x32xf32, #tpu.memory_space<vmem>>, vector<64x32xf32>
    %c0_17 = arith.constant 0 : index
    %c0_18 = arith.constant 0 : index
    %16 = vector.load %arg8[%c0_17, %c0_18] : memref<1x32xf32, #tpu.memory_space<vmem>>, vector<1x32xf32>
    %c0_19 = arith.constant 0 : index
    %c0_20 = arith.constant 0 : index
    %17 = vector.load %arg9[%c0_19, %c0_20] : memref<1x32xf32, #tpu.memory_space<vmem>>, vector<1x32xf32>
    %c0_21 = arith.constant 0 : index
    %c0_22 = arith.constant 0 : index
    %18 = vector.load %arg10[%c0_21, %c0_22] : memref<1x1xf32, #tpu.memory_space<vmem>>, vector<1x1xf32>
    %19 = vector.extract_strided_slice %1 {offsets = [0, 0], sizes = [4, 32], strides = [1, 1]} : vector<8x32xf32> to vector<4x32xf32>
    %20 = vector.shape_cast %1 : vector<8x32xf32> to vector<1x8x32xf32>
    %21 = vector.shape_cast %19 : vector<4x32xf32> to vector<4x1x32xf32>
    %22 = vector.broadcast %20 : vector<1x8x32xf32> to vector<4x8x32xf32>
    %23 = vector.broadcast %21 : vector<4x1x32xf32> to vector<4x8x32xf32>
    %24 = arith.subf %22, %23 : vector<4x8x32xf32>
    %25 = math.absf %24 : vector<4x8x32xf32>
    %26 = vector.shape_cast %25 : vector<4x8x32xf32> to vector<32x32xf32>
    %cst = arith.constant dense<0.000000e+00> : vector<32x64xf32>
    %27 = tpu.matmul %26, %13, %cst {dimension_numbers = #tpu.dot_dimension_numbers<[1], [0], [0], [1], [0, 0, 1, 1], [], []>} : vector<32x32xf32>, vector<32x64xf32>, vector<32x64xf32> -> vector<32x64xf32>
    %28 = vector.broadcast %14 : vector<1x64xf32> to vector<32x64xf32>
    %29 = arith.addf %27, %28 : vector<32x64xf32>
    %cst_23 = arith.constant 0.000000e+00 : f32
    %30 = vector.broadcast %cst_23 : f32 to vector<32x64xf32>
    %31 = arith.cmpf oge, %29, %30 : vector<32x64xf32>
    %cst_24 = arith.constant 0.00999999977 : f32
    %32 = vector.broadcast %cst_24 : f32 to vector<32x64xf32>
    %33 = arith.mulf %32, %29 : vector<32x64xf32>
    %34 = arith.select %31, %29, %33 : vector<32x64xi1>, vector<32x64xf32>
    %cst_25 = arith.constant dense<0.000000e+00> : vector<32x32xf32>
    %35 = tpu.matmul %34, %15, %cst_25 {dimension_numbers = #tpu.dot_dimension_numbers<[1], [0], [0], [1], [0, 0, 1, 1], [], []>} : vector<32x64xf32>, vector<64x32xf32>, vector<32x32xf32> -> vector<32x32xf32>
    %36 = vector.broadcast %16 : vector<1x32xf32> to vector<32x32xf32>
    %37 = arith.addf %35, %36 : vector<32x32xf32>
    %cst_26 = arith.constant 0.000000e+00 : f32
    %38 = vector.broadcast %cst_26 : f32 to vector<32x32xf32>
    %39 = arith.cmpf oge, %37, %38 : vector<32x32xf32>
    %cst_27 = arith.constant 0.00999999977 : f32
    %40 = vector.broadcast %cst_27 : f32 to vector<32x32xf32>
    %41 = arith.mulf %40, %37 : vector<32x32xf32>
    %42 = arith.select %39, %37, %41 : vector<32x32xi1>, vector<32x32xf32>
    %43 = vector.extract_strided_slice %42 {offsets = [0, 0], sizes = [8, 32], strides = [1, 1]} : vector<32x32xf32> to vector<8x32xf32>
    %44 = vector.broadcast %17 : vector<1x32xf32> to vector<8x32xf32>
    %45 = arith.mulf %43, %44 : vector<8x32xf32>
    %cst_28 = arith.constant dense<0.000000e+00> : vector<8xf32>
    %46 = vector.multi_reduction <add>, %45, %cst_28 [1] : vector<8x32xf32> to vector<8xf32>
    %47 = vector.shape_cast %46 : vector<8xf32> to vector<8x1xf32>
    %48 = vector.broadcast %18 : vector<1x1xf32> to vector<8x1xf32>
    %49 = arith.addf %47, %48 : vector<8x1xf32>
    %50 = arith.negf %49 : vector<8x1xf32>
    %51 = math.exp %50 : vector<8x1xf32>
    %cst_29 = arith.constant 1.000000e+00 : f32
    %52 = vector.broadcast %cst_29 : f32 to vector<8x1xf32>
    %53 = arith.addf %52, %51 : vector<8x1xf32>
    %54 = arith.divf %52, %53 : vector<8x1xf32>
    %55 = vector.extract_strided_slice %42 {offsets = [8, 0], sizes = [8, 32], strides = [1, 1]} : vector<32x32xf32> to vector<8x32xf32>
    %56 = vector.broadcast %17 : vector<1x32xf32> to vector<8x32xf32>
    %57 = arith.mulf %55, %56 : vector<8x32xf32>
    %cst_30 = arith.constant dense<0.000000e+00> : vector<8xf32>
    %58 = vector.multi_reduction <add>, %57, %cst_30 [1] : vector<8x32xf32> to vector<8xf32>
    %59 = vector.shape_cast %58 : vector<8xf32> to vector<8x1xf32>
    %60 = vector.broadcast %18 : vector<1x1xf32> to vector<8x1xf32>
    %61 = arith.addf %59, %60 : vector<8x1xf32>
    %62 = arith.negf %61 : vector<8x1xf32>
    %63 = math.exp %62 : vector<8x1xf32>
    %cst_31 = arith.constant 1.000000e+00 : f32
    %64 = vector.broadcast %cst_31 : f32 to vector<8x1xf32>
    %65 = arith.addf %64, %63 : vector<8x1xf32>
    %66 = arith.divf %64, %65 : vector<8x1xf32>
    %67 = vector.extract_strided_slice %42 {offsets = [16, 0], sizes = [8, 32], strides = [1, 1]} : vector<32x32xf32> to vector<8x32xf32>
    %68 = vector.broadcast %17 : vector<1x32xf32> to vector<8x32xf32>
    %69 = arith.mulf %67, %68 : vector<8x32xf32>
    %cst_32 = arith.constant dense<0.000000e+00> : vector<8xf32>
    %70 = vector.multi_reduction <add>, %69, %cst_32 [1] : vector<8x32xf32> to vector<8xf32>
    %71 = vector.shape_cast %70 : vector<8xf32> to vector<8x1xf32>
    %72 = vector.broadcast %18 : vector<1x1xf32> to vector<8x1xf32>
    %73 = arith.addf %71, %72 : vector<8x1xf32>
    %74 = arith.negf %73 : vector<8x1xf32>
    %75 = math.exp %74 : vector<8x1xf32>
    %cst_33 = arith.constant 1.000000e+00 : f32
    %76 = vector.broadcast %cst_33 : f32 to vector<8x1xf32>
    %77 = arith.addf %76, %75 : vector<8x1xf32>
    %78 = arith.divf %76, %77 : vector<8x1xf32>
    %79 = vector.extract_strided_slice %42 {offsets = [24, 0], sizes = [8, 32], strides = [1, 1]} : vector<32x32xf32> to vector<8x32xf32>
    %80 = vector.broadcast %17 : vector<1x32xf32> to vector<8x32xf32>
    %81 = arith.mulf %79, %80 : vector<8x32xf32>
    %cst_34 = arith.constant dense<0.000000e+00> : vector<8xf32>
    %82 = vector.multi_reduction <add>, %81, %cst_34 [1] : vector<8x32xf32> to vector<8xf32>
    %83 = vector.shape_cast %82 : vector<8xf32> to vector<8x1xf32>
    %84 = vector.broadcast %18 : vector<1x1xf32> to vector<8x1xf32>
    %85 = arith.addf %83, %84 : vector<8x1xf32>
    %86 = arith.negf %85 : vector<8x1xf32>
    %87 = math.exp %86 : vector<8x1xf32>
    %cst_35 = arith.constant 1.000000e+00 : f32
    %88 = vector.broadcast %cst_35 : f32 to vector<8x1xf32>
    %89 = arith.addf %88, %87 : vector<8x1xf32>
    %90 = arith.divf %88, %89 : vector<8x1xf32>
    %91 = tpu.concatenate %54, %66, %78, %90 in 1 : vector<8x1xf32>, vector<8x1xf32>, vector<8x1xf32>, vector<8x1xf32> -> vector<8x4xf32>
    %cst_36 = arith.constant 1.000000e+00 : f32
    %92 = vector.broadcast %cst_36 : f32 to vector<8x4xf32>
    %93 = arith.subf %92, %12 : vector<8x4xf32>
    %94 = arith.mulf %5, %93 : vector<8x4xf32>
    %cst_37 = arith.constant dense<0.000000e+00> : vector<8xf32>
    %95 = vector.multi_reduction <add>, %94, %cst_37 [1] : vector<8x4xf32> to vector<8xf32>
    %96 = vector.shape_cast %95 : vector<8xf32> to vector<8x1xf32>
    %97 = arith.mulf %91, %94 : vector<8x4xf32>
    %98 = math.absf %97 : vector<8x4xf32>
    %cst_38 = arith.constant dense<0.000000e+00> : vector<8xf32>
    %99 = vector.multi_reduction <add>, %98, %cst_38 [1] : vector<8x4xf32> to vector<8xf32>
    %100 = vector.shape_cast %99 : vector<8xf32> to vector<8x1xf32>
    %cst_39 = arith.constant 9.99999996E-13 : f32
    %101 = vector.broadcast %cst_39 : f32 to vector<8x1xf32>
    %102 = arith.maximumf %100, %101 : vector<8x1xf32>
    %103 = tpu.reciprocal %102 {approx = true} : vector<8x1xf32> -> vector<8x1xf32>
    %104 = vector.broadcast %103 : vector<8x1xf32> to vector<8x4xf32>
    %105 = arith.mulf %97, %104 : vector<8x4xf32>
    %106 = vector.broadcast %96 : vector<8x1xf32> to vector<8x4xf32>
    %107 = arith.mulf %105, %106 : vector<8x4xf32>
    %108 = arith.addf %107, %12 : vector<8x4xf32>
    %cst_40 = arith.constant 9.99999997E-7 : f32
    %109 = vector.broadcast %cst_40 : f32 to vector<8x4xf32>
    %110 = arith.addf %108, %109 : vector<8x4xf32>
    %cst_41 = arith.constant dense<0.000000e+00> : vector<8xf32>
    %111 = vector.multi_reduction <add>, %110, %cst_41 [1] : vector<8x4xf32> to vector<8xf32>
    %112 = vector.shape_cast %111 : vector<8xf32> to vector<8x1xf32>
    %113 = tpu.reciprocal %112 {approx = true} : vector<8x1xf32> -> vector<8x1xf32>
    %114 = vector.broadcast %113 : vector<8x1xf32> to vector<8x4xf32>
    %115 = arith.mulf %110, %114 : vector<8x4xf32>
    %c0_42 = arith.constant 0 : index
    %c0_43 = arith.constant 0 : index
    %c0_44 = arith.constant 0 : index
    %116 = vector.load %arg11[%c0_42, %c0_43, %c0_44] : memref<2x32x64xf32, #tpu.memory_space<vmem>>, vector<1x32x64xf32>
    %117 = vector.shape_cast %116 : vector<1x32x64xf32> to vector<32x64xf32>
    %c0_45 = arith.constant 0 : index
    %c0_46 = arith.constant 0 : index
    %c0_47 = arith.constant 0 : index
    %118 = vector.load %arg12[%c0_45, %c0_46, %c0_47] : memref<2x1x64xf32, #tpu.memory_space<vmem>>, vector<1x1x64xf32>
    %119 = vector.shape_cast %118 : vector<1x1x64xf32> to vector<1x64xf32>
    %c0_48 = arith.constant 0 : index
    %c0_49 = arith.constant 0 : index
    %c0_50 = arith.constant 0 : index
    %120 = vector.load %arg13[%c0_48, %c0_49, %c0_50] : memref<2x64x32xf32, #tpu.memory_space<vmem>>, vector<1x64x32xf32>
    %121 = vector.shape_cast %120 : vector<1x64x32xf32> to vector<64x32xf32>
    %c0_51 = arith.constant 0 : index
    %c0_52 = arith.constant 0 : index
    %c0_53 = arith.constant 0 : index
    %122 = vector.load %arg14[%c0_51, %c0_52, %c0_53] : memref<2x1x32xf32, #tpu.memory_space<vmem>>, vector<1x1x32xf32>
    %123 = vector.shape_cast %122 : vector<1x1x32xf32> to vector<1x32xf32>
    %c0_54 = arith.constant 0 : index
    %c0_55 = arith.constant 0 : index
    %c0_56 = arith.constant 0 : index
    %124 = vector.load %arg15[%c0_54, %c0_55, %c0_56] : memref<2x1x32xf32, #tpu.memory_space<vmem>>, vector<1x1x32xf32>
    %125 = vector.shape_cast %124 : vector<1x1x32xf32> to vector<1x32xf32>
    %c0_57 = arith.constant 0 : index
    %c0_58 = arith.constant 0 : index
    %c0_59 = arith.constant 0 : index
    %126 = vector.load %arg16[%c0_57, %c0_58, %c0_59] : memref<2x1x1xf32, #tpu.memory_space<vmem>>, vector<1x1x1xf32>
    %127 = vector.shape_cast %126 : vector<1x1x1xf32> to vector<1x1xf32>
    %128 = vector.extract_strided_slice %1 {offsets = [0, 0], sizes = [4, 32], strides = [1, 1]} : vector<8x32xf32> to vector<4x32xf32>
    %129 = vector.shape_cast %1 : vector<8x32xf32> to vector<1x8x32xf32>
    %130 = vector.shape_cast %128 : vector<4x32xf32> to vector<4x1x32xf32>
    %131 = vector.broadcast %129 : vector<1x8x32xf32> to vector<4x8x32xf32>
    %132 = vector.broadcast %130 : vector<4x1x32xf32> to vector<4x8x32xf32>
    %133 = arith.subf %131, %132 : vector<4x8x32xf32>
    %134 = math.absf %133 : vector<4x8x32xf32>
    %135 = vector.shape_cast %134 : vector<4x8x32xf32> to vector<32x32xf32>
    %cst_60 = arith.constant dense<0.000000e+00> : vector<32x64xf32>
    %136 = tpu.matmul %135, %117, %cst_60 {dimension_numbers = #tpu.dot_dimension_numbers<[1], [0], [0], [1], [0, 0, 1, 1], [], []>} : vector<32x32xf32>, vector<32x64xf32>, vector<32x64xf32> -> vector<32x64xf32>
    %137 = vector.broadcast %119 : vector<1x64xf32> to vector<32x64xf32>
    %138 = arith.addf %136, %137 : vector<32x64xf32>
    %cst_61 = arith.constant 0.000000e+00 : f32
    %139 = vector.broadcast %cst_61 : f32 to vector<32x64xf32>
    %140 = arith.cmpf oge, %138, %139 : vector<32x64xf32>
    %cst_62 = arith.constant 0.00999999977 : f32
    %141 = vector.broadcast %cst_62 : f32 to vector<32x64xf32>
    %142 = arith.mulf %141, %138 : vector<32x64xf32>
    %143 = arith.select %140, %138, %142 : vector<32x64xi1>, vector<32x64xf32>
    %cst_63 = arith.constant dense<0.000000e+00> : vector<32x32xf32>
    %144 = tpu.matmul %143, %121, %cst_63 {dimension_numbers = #tpu.dot_dimension_numbers<[1], [0], [0], [1], [0, 0, 1, 1], [], []>} : vector<32x64xf32>, vector<64x32xf32>, vector<32x32xf32> -> vector<32x32xf32>
    %145 = vector.broadcast %123 : vector<1x32xf32> to vector<32x32xf32>
    %146 = arith.addf %144, %145 : vector<32x32xf32>
    %cst_64 = arith.constant 0.000000e+00 : f32
    %147 = vector.broadcast %cst_64 : f32 to vector<32x32xf32>
    %148 = arith.cmpf oge, %146, %147 : vector<32x32xf32>
    %cst_65 = arith.constant 0.00999999977 : f32
    %149 = vector.broadcast %cst_65 : f32 to vector<32x32xf32>
    %150 = arith.mulf %149, %146 : vector<32x32xf32>
    %151 = arith.select %148, %146, %150 : vector<32x32xi1>, vector<32x32xf32>
    %152 = vector.extract_strided_slice %151 {offsets = [0, 0], sizes = [8, 32], strides = [1, 1]} : vector<32x32xf32> to vector<8x32xf32>
    %153 = vector.broadcast %125 : vector<1x32xf32> to vector<8x32xf32>
    %154 = arith.mulf %152, %153 : vector<8x32xf32>
    %cst_66 = arith.constant dense<0.000000e+00> : vector<8xf32>
    %155 = vector.multi_reduction <add>, %154, %cst_66 [1] : vector<8x32xf32> to vector<8xf32>
    %156 = vector.shape_cast %155 : vector<8xf32> to vector<8x1xf32>
    %157 = vector.broadcast %127 : vector<1x1xf32> to vector<8x1xf32>
    %158 = arith.addf %156, %157 : vector<8x1xf32>
    %159 = arith.negf %158 : vector<8x1xf32>
    %160 = math.exp %159 : vector<8x1xf32>
    %cst_67 = arith.constant 1.000000e+00 : f32
    %161 = vector.broadcast %cst_67 : f32 to vector<8x1xf32>
    %162 = arith.addf %161, %160 : vector<8x1xf32>
    %163 = arith.divf %161, %162 : vector<8x1xf32>
    %164 = vector.extract_strided_slice %134 {offsets = [0, 0, 0], sizes = [1, 8, 32], strides = [1, 1, 1]} : vector<4x8x32xf32> to vector<1x8x32xf32>
    %165 = vector.shape_cast %164 : vector<1x8x32xf32> to vector<8x32xf32>
    %cst_68 = arith.constant dense<0.000000e+00> : vector<8xf32>
    %166 = vector.multi_reduction <add>, %165, %cst_68 [1] : vector<8x32xf32> to vector<8xf32>
    %167 = vector.shape_cast %166 : vector<8xf32> to vector<8x1xf32>
    %cst_69 = arith.constant 0.000000e+00 : f32
    %168 = vector.broadcast %cst_69 : f32 to vector<8x1xf32>
    %169 = arith.subf %168, %167 : vector<8x1xf32>
    %cst_70 = arith.constant 1.000000e+00 : f32
    %170 = vector.broadcast %cst_70 : f32 to vector<8x1xf32>
    %171 = arith.mulf %169, %170 : vector<8x1xf32>
    %172 = vector.extract_strided_slice %151 {offsets = [8, 0], sizes = [8, 32], strides = [1, 1]} : vector<32x32xf32> to vector<8x32xf32>
    %173 = vector.broadcast %125 : vector<1x32xf32> to vector<8x32xf32>
    %174 = arith.mulf %172, %173 : vector<8x32xf32>
    %cst_71 = arith.constant dense<0.000000e+00> : vector<8xf32>
    %175 = vector.multi_reduction <add>, %174, %cst_71 [1] : vector<8x32xf32> to vector<8xf32>
    %176 = vector.shape_cast %175 : vector<8xf32> to vector<8x1xf32>
    %177 = vector.broadcast %127 : vector<1x1xf32> to vector<8x1xf32>
    %178 = arith.addf %176, %177 : vector<8x1xf32>
    %179 = arith.negf %178 : vector<8x1xf32>
    %180 = math.exp %179 : vector<8x1xf32>
    %cst_72 = arith.constant 1.000000e+00 : f32
    %181 = vector.broadcast %cst_72 : f32 to vector<8x1xf32>
    %182 = arith.addf %181, %180 : vector<8x1xf32>
    %183 = arith.divf %181, %182 : vector<8x1xf32>
    %184 = vector.extract_strided_slice %134 {offsets = [1, 0, 0], sizes = [1, 8, 32], strides = [1, 1, 1]} : vector<4x8x32xf32> to vector<1x8x32xf32>
    %185 = vector.shape_cast %184 : vector<1x8x32xf32> to vector<8x32xf32>
    %cst_73 = arith.constant dense<0.000000e+00> : vector<8xf32>
    %186 = vector.multi_reduction <add>, %185, %cst_73 [1] : vector<8x32xf32> to vector<8xf32>
    %187 = vector.shape_cast %186 : vector<8xf32> to vector<8x1xf32>
    %cst_74 = arith.constant 0.000000e+00 : f32
    %188 = vector.broadcast %cst_74 : f32 to vector<8x1xf32>
    %189 = arith.subf %188, %187 : vector<8x1xf32>
    %cst_75 = arith.constant 1.000000e+00 : f32
    %190 = vector.broadcast %cst_75 : f32 to vector<8x1xf32>
    %191 = arith.mulf %189, %190 : vector<8x1xf32>
    %192 = vector.extract_strided_slice %151 {offsets = [16, 0], sizes = [8, 32], strides = [1, 1]} : vector<32x32xf32> to vector<8x32xf32>
    %193 = vector.broadcast %125 : vector<1x32xf32> to vector<8x32xf32>
    %194 = arith.mulf %192, %193 : vector<8x32xf32>
    %cst_76 = arith.constant dense<0.000000e+00> : vector<8xf32>
    %195 = vector.multi_reduction <add>, %194, %cst_76 [1] : vector<8x32xf32> to vector<8xf32>
    %196 = vector.shape_cast %195 : vector<8xf32> to vector<8x1xf32>
    %197 = vector.broadcast %127 : vector<1x1xf32> to vector<8x1xf32>
    %198 = arith.addf %196, %197 : vector<8x1xf32>
    %199 = arith.negf %198 : vector<8x1xf32>
    %200 = math.exp %199 : vector<8x1xf32>
    %cst_77 = arith.constant 1.000000e+00 : f32
    %201 = vector.broadcast %cst_77 : f32 to vector<8x1xf32>
    %202 = arith.addf %201, %200 : vector<8x1xf32>
    %203 = arith.divf %201, %202 : vector<8x1xf32>
    %204 = vector.extract_strided_slice %134 {offsets = [2, 0, 0], sizes = [1, 8, 32], strides = [1, 1, 1]} : vector<4x8x32xf32> to vector<1x8x32xf32>
    %205 = vector.shape_cast %204 : vector<1x8x32xf32> to vector<8x32xf32>
    %cst_78 = arith.constant dense<0.000000e+00> : vector<8xf32>
    %206 = vector.multi_reduction <add>, %205, %cst_78 [1] : vector<8x32xf32> to vector<8xf32>
    %207 = vector.shape_cast %206 : vector<8xf32> to vector<8x1xf32>
    %cst_79 = arith.constant 0.000000e+00 : f32
    %208 = vector.broadcast %cst_79 : f32 to vector<8x1xf32>
    %209 = arith.subf %208, %207 : vector<8x1xf32>
    %cst_80 = arith.constant 1.000000e+00 : f32
    %210 = vector.broadcast %cst_80 : f32 to vector<8x1xf32>
    %211 = arith.mulf %209, %210 : vector<8x1xf32>
    %212 = vector.extract_strided_slice %151 {offsets = [24, 0], sizes = [8, 32], strides = [1, 1]} : vector<32x32xf32> to vector<8x32xf32>
    %213 = vector.broadcast %125 : vector<1x32xf32> to vector<8x32xf32>
    %214 = arith.mulf %212, %213 : vector<8x32xf32>
    %cst_81 = arith.constant dense<0.000000e+00> : vector<8xf32>
    %215 = vector.multi_reduction <add>, %214, %cst_81 [1] : vector<8x32xf32> to vector<8xf32>
    %216 = vector.shape_cast %215 : vector<8xf32> to vector<8x1xf32>
    %217 = vector.broadcast %127 : vector<1x1xf32> to vector<8x1xf32>
    %218 = arith.addf %216, %217 : vector<8x1xf32>
    %219 = arith.negf %218 : vector<8x1xf32>
    %220 = math.exp %219 : vector<8x1xf32>
    %cst_82 = arith.constant 1.000000e+00 : f32
    %221 = vector.broadcast %cst_82 : f32 to vector<8x1xf32>
    %222 = arith.addf %221, %220 : vector<8x1xf32>
    %223 = arith.divf %221, %222 : vector<8x1xf32>
    %224 = vector.extract_strided_slice %134 {offsets = [3, 0, 0], sizes = [1, 8, 32], strides = [1, 1, 1]} : vector<4x8x32xf32> to vector<1x8x32xf32>
    %225 = vector.shape_cast %224 : vector<1x8x32xf32> to vector<8x32xf32>
    %cst_83 = arith.constant dense<0.000000e+00> : vector<8xf32>
    %226 = vector.multi_reduction <add>, %225, %cst_83 [1] : vector<8x32xf32> to vector<8xf32>
    %227 = vector.shape_cast %226 : vector<8xf32> to vector<8x1xf32>
    %cst_84 = arith.constant 0.000000e+00 : f32
    %228 = vector.broadcast %cst_84 : f32 to vector<8x1xf32>
    %229 = arith.subf %228, %227 : vector<8x1xf32>
    %cst_85 = arith.constant 1.000000e+00 : f32
    %230 = vector.broadcast %cst_85 : f32 to vector<8x1xf32>
    %231 = arith.mulf %229, %230 : vector<8x1xf32>
    %232 = tpu.concatenate %163, %183, %203, %223 in 1 : vector<8x1xf32>, vector<8x1xf32>, vector<8x1xf32>, vector<8x1xf32> -> vector<8x4xf32>
    %233 = tpu.concatenate %171, %191, %211, %231 in 1 : vector<8x1xf32>, vector<8x1xf32>, vector<8x1xf32>, vector<8x1xf32> -> vector<8x4xf32>
    %cst_86 = arith.constant 1.000000e+00 : f32
    %234 = vector.broadcast %cst_86 : f32 to vector<8x4xf32>
    %235 = arith.subf %234, %12 : vector<8x4xf32>
    %236 = arith.mulf %115, %235 : vector<8x4xf32>
    %cst_87 = arith.constant dense<0.000000e+00> : vector<8xf32>
    %237 = vector.multi_reduction <add>, %236, %cst_87 [1] : vector<8x4xf32> to vector<8xf32>
    %238 = vector.shape_cast %237 : vector<8xf32> to vector<8x1xf32>
    %239 = arith.mulf %232, %236 : vector<8x4xf32>
    %240 = math.absf %239 : vector<8x4xf32>
    %cst_88 = arith.constant dense<0.000000e+00> : vector<8xf32>
    %241 = vector.multi_reduction <add>, %240, %cst_88 [1] : vector<8x4xf32> to vector<8xf32>
    %242 = vector.shape_cast %241 : vector<8xf32> to vector<8x1xf32>
    %cst_89 = arith.constant 9.99999996E-13 : f32
    %243 = vector.broadcast %cst_89 : f32 to vector<8x1xf32>
    %244 = arith.maximumf %242, %243 : vector<8x1xf32>
    %245 = tpu.reciprocal %244 {approx = true} : vector<8x1xf32> -> vector<8x1xf32>
    %246 = vector.broadcast %245 : vector<8x1xf32> to vector<8x4xf32>
    %247 = arith.mulf %239, %246 : vector<8x4xf32>
    %248 = vector.broadcast %238 : vector<8x1xf32> to vector<8x4xf32>
    %249 = arith.mulf %247, %248 : vector<8x4xf32>
    %250 = arith.addf %249, %12 : vector<8x4xf32>
    %cst_90 = arith.constant 9.99999997E-7 : f32
    %251 = vector.broadcast %cst_90 : f32 to vector<8x4xf32>
    %252 = arith.addf %250, %251 : vector<8x4xf32>
    %cst_91 = arith.constant dense<0.000000e+00> : vector<8xf32>
    %253 = vector.multi_reduction <add>, %252, %cst_91 [1] : vector<8x4xf32> to vector<8xf32>
    %254 = vector.shape_cast %253 : vector<8xf32> to vector<8x1xf32>
    %255 = tpu.reciprocal %254 {approx = true} : vector<8x1xf32> -> vector<8x1xf32>
    %256 = vector.broadcast %255 : vector<8x1xf32> to vector<8x4xf32>
    %257 = arith.mulf %252, %256 : vector<8x4xf32>
    %c0_92 = arith.constant 0 : index
    %c0_93 = arith.constant 0 : index
    %c0_94 = arith.constant 0 : index
    %258 = vector.load %arg17[%c0_92, %c0_93, %c0_94] : memref<2x4x4xf32, #tpu.memory_space<vmem>>, vector<1x4x4xf32>
    %259 = vector.shape_cast %258 : vector<1x4x4xf32> to vector<4x4xf32>
    %c0_95 = arith.constant 0 : index
    %c0_96 = arith.constant 0 : index
    %c0_97 = arith.constant 0 : index
    %260 = vector.load %arg18[%c0_95, %c0_96, %c0_97] : memref<2x4x4xf32, #tpu.memory_space<vmem>>, vector<1x4x4xf32>
    %261 = vector.shape_cast %260 : vector<1x4x4xf32> to vector<4x4xf32>
    %c0_98 = arith.constant 0 : index
    %c0_99 = arith.constant 0 : index
    %c0_100 = arith.constant 0 : index
    %262 = vector.load %arg19[%c0_98, %c0_99, %c0_100] : memref<2x1x4xf32, #tpu.memory_space<vmem>>, vector<1x1x4xf32>
    %263 = vector.shape_cast %262 : vector<1x1x4xf32> to vector<1x4xf32>
    %cst_101 = arith.constant dense<0.000000e+00> : vector<8x4xf32>
    %264 = tpu.matmul %257, %259, %cst_101 {dimension_numbers = #tpu.dot_dimension_numbers<[1], [0], [0], [1], [0, 0, 1, 1], [], []>} : vector<8x4xf32>, vector<4x4xf32>, vector<8x4xf32> -> vector<8x4xf32>
    %cst_102 = arith.constant dense<0.000000e+00> : vector<8x4xf32>
    %265 = tpu.matmul %3, %261, %cst_102 {dimension_numbers = #tpu.dot_dimension_numbers<[1], [0], [0], [1], [0, 0, 1, 1], [], []>} : vector<8x4xf32>, vector<4x4xf32>, vector<8x4xf32> -> vector<8x4xf32>
    %266 = arith.addf %264, %265 : vector<8x4xf32>
    %267 = vector.broadcast %263 : vector<1x4xf32> to vector<8x4xf32>
    %268 = arith.addf %266, %267 : vector<8x4xf32>
    %cst_103 = arith.constant 0.000000e+00 : f32
    %269 = vector.broadcast %cst_103 : f32 to vector<8x4xf32>
    %270 = arith.cmpf oge, %268, %269 : vector<8x4xf32>
    %cst_104 = arith.constant 0.00999999977 : f32
    %271 = vector.broadcast %cst_104 : f32 to vector<8x4xf32>
    %272 = arith.mulf %271, %268 : vector<8x4xf32>
    %273 = arith.select %270, %268, %272 : vector<8x4xi1>, vector<8x4xf32>
    %c0_105 = arith.constant 0 : index
    %c0_106 = arith.constant 0 : index
    %c0_107 = arith.constant 0 : index
    %274 = vector.load %arg20[%c0_105, %c0_106, %c0_107] : memref<2x4x8xf32, #tpu.memory_space<vmem>>, vector<1x4x8xf32>
    %275 = vector.shape_cast %274 : vector<1x4x8xf32> to vector<4x8xf32>
    %c0_108 = arith.constant 0 : index
    %c0_109 = arith.constant 0 : index
    %c0_110 = arith.constant 0 : index
    %276 = vector.load %arg21[%c0_108, %c0_109, %c0_110] : memref<2x1x8xf32, #tpu.memory_space<vmem>>, vector<1x1x8xf32>
    %277 = vector.shape_cast %276 : vector<1x1x8xf32> to vector<1x8xf32>
    %c0_111 = arith.constant 0 : index
    %c0_112 = arith.constant 0 : index
    %c0_113 = arith.constant 0 : index
    %278 = vector.load %arg22[%c0_111, %c0_112, %c0_113] : memref<2x8x4xf32, #tpu.memory_space<vmem>>, vector<1x8x4xf32>
    %279 = vector.shape_cast %278 : vector<1x8x4xf32> to vector<8x4xf32>
    %c0_114 = arith.constant 0 : index
    %c0_115 = arith.constant 0 : index
    %c0_116 = arith.constant 0 : index
    %280 = vector.load %arg23[%c0_114, %c0_115, %c0_116] : memref<2x1x4xf32, #tpu.memory_space<vmem>>, vector<1x1x4xf32>
    %281 = vector.shape_cast %280 : vector<1x1x4xf32> to vector<1x4xf32>
    %c0_117 = arith.constant 0 : index
    %c0_118 = arith.constant 0 : index
    %c0_119 = arith.constant 0 : index
    %282 = vector.load %arg24[%c0_117, %c0_118, %c0_119] : memref<2x1x4xf32, #tpu.memory_space<vmem>>, vector<1x1x4xf32>
    %283 = vector.shape_cast %282 : vector<1x1x4xf32> to vector<1x4xf32>
    %c0_120 = arith.constant 0 : index
    %c0_121 = arith.constant 0 : index
    %c0_122 = arith.constant 0 : index
    %284 = vector.load %arg25[%c0_120, %c0_121, %c0_122] : memref<2x1x1xf32, #tpu.memory_space<vmem>>, vector<1x1x1xf32>
    %285 = vector.shape_cast %284 : vector<1x1x1xf32> to vector<1x1xf32>
    %286 = vector.extract_strided_slice %273 {offsets = [0, 0], sizes = [4, 4], strides = [1, 1]} : vector<8x4xf32> to vector<4x4xf32>
    %287 = vector.shape_cast %273 : vector<8x4xf32> to vector<1x8x4xf32>
    %288 = vector.shape_cast %286 : vector<4x4xf32> to vector<4x1x4xf32>
    %289 = vector.broadcast %287 : vector<1x8x4xf32> to vector<4x8x4xf32>
    %290 = vector.broadcast %288 : vector<4x1x4xf32> to vector<4x8x4xf32>
    %291 = arith.subf %289, %290 : vector<4x8x4xf32>
    %292 = arith.mulf %291, %291 : vector<4x8x4xf32>
    %293 = vector.shape_cast %292 : vector<4x8x4xf32> to vector<32x4xf32>
    %cst_123 = arith.constant dense<0.000000e+00> : vector<32x8xf32>
    %294 = tpu.matmul %293, %275, %cst_123 {dimension_numbers = #tpu.dot_dimension_numbers<[1], [0], [0], [1], [0, 0, 1, 1], [], []>} : vector<32x4xf32>, vector<4x8xf32>, vector<32x8xf32> -> vector<32x8xf32>
    %295 = vector.broadcast %277 : vector<1x8xf32> to vector<32x8xf32>
    %296 = arith.addf %294, %295 : vector<32x8xf32>
    %cst_124 = arith.constant 0.000000e+00 : f32
    %297 = vector.broadcast %cst_124 : f32 to vector<32x8xf32>
    %298 = arith.cmpf oge, %296, %297 : vector<32x8xf32>
    %cst_125 = arith.constant 0.00999999977 : f32
    %299 = vector.broadcast %cst_125 : f32 to vector<32x8xf32>
    %300 = arith.mulf %299, %296 : vector<32x8xf32>
    %301 = arith.select %298, %296, %300 : vector<32x8xi1>, vector<32x8xf32>
    %cst_126 = arith.constant dense<0.000000e+00> : vector<32x4xf32>
    %302 = tpu.matmul %301, %279, %cst_126 {dimension_numbers = #tpu.dot_dimension_numbers<[1], [0], [0], [1], [0, 0, 1, 1], [], []>} : vector<32x8xf32>, vector<8x4xf32>, vector<32x4xf32> -> vector<32x4xf32>
    %303 = vector.broadcast %281 : vector<1x4xf32> to vector<32x4xf32>
    %304 = arith.addf %302, %303 : vector<32x4xf32>
    %cst_127 = arith.constant 0.000000e+00 : f32
    %305 = vector.broadcast %cst_127 : f32 to vector<32x4xf32>
    %306 = arith.cmpf oge, %304, %305 : vector<32x4xf32>
    %cst_128 = arith.constant 0.00999999977 : f32
    %307 = vector.broadcast %cst_128 : f32 to vector<32x4xf32>
    %308 = arith.mulf %307, %304 : vector<32x4xf32>
    %309 = arith.select %306, %304, %308 : vector<32x4xi1>, vector<32x4xf32>
    %310 = vector.extract_strided_slice %309 {offsets = [0, 0], sizes = [8, 4], strides = [1, 1]} : vector<32x4xf32> to vector<8x4xf32>
    %311 = vector.broadcast %283 : vector<1x4xf32> to vector<8x4xf32>
    %312 = arith.mulf %310, %311 : vector<8x4xf32>
    %cst_129 = arith.constant dense<0.000000e+00> : vector<8xf32>
    %313 = vector.multi_reduction <add>, %312, %cst_129 [1] : vector<8x4xf32> to vector<8xf32>
    %314 = vector.shape_cast %313 : vector<8xf32> to vector<8x1xf32>
    %315 = vector.broadcast %285 : vector<1x1xf32> to vector<8x1xf32>
    %316 = arith.addf %314, %315 : vector<8x1xf32>
    %317 = arith.negf %316 : vector<8x1xf32>
    %318 = math.exp %317 : vector<8x1xf32>
    %cst_130 = arith.constant 1.000000e+00 : f32
    %319 = vector.broadcast %cst_130 : f32 to vector<8x1xf32>
    %320 = arith.addf %319, %318 : vector<8x1xf32>
    %321 = arith.divf %319, %320 : vector<8x1xf32>
    %322 = vector.extract_strided_slice %292 {offsets = [0, 0, 0], sizes = [1, 8, 4], strides = [1, 1, 1]} : vector<4x8x4xf32> to vector<1x8x4xf32>
    %323 = vector.shape_cast %322 : vector<1x8x4xf32> to vector<8x4xf32>
    %cst_131 = arith.constant dense<0.000000e+00> : vector<8xf32>
    %324 = vector.multi_reduction <add>, %323, %cst_131 [1] : vector<8x4xf32> to vector<8xf32>
    %325 = vector.shape_cast %324 : vector<8xf32> to vector<8x1xf32>
    %cst_132 = arith.constant 0.000000e+00 : f32
    %326 = vector.broadcast %cst_132 : f32 to vector<8x1xf32>
    %327 = arith.subf %326, %325 : vector<8x1xf32>
    %cst_133 = arith.constant 5.000000e-01 : f32
    %328 = vector.broadcast %cst_133 : f32 to vector<8x1xf32>
    %329 = arith.mulf %327, %328 : vector<8x1xf32>
    %330 = vector.extract_strided_slice %309 {offsets = [8, 0], sizes = [8, 4], strides = [1, 1]} : vector<32x4xf32> to vector<8x4xf32>
    %331 = vector.broadcast %283 : vector<1x4xf32> to vector<8x4xf32>
    %332 = arith.mulf %330, %331 : vector<8x4xf32>
    %cst_134 = arith.constant dense<0.000000e+00> : vector<8xf32>
    %333 = vector.multi_reduction <add>, %332, %cst_134 [1] : vector<8x4xf32> to vector<8xf32>
    %334 = vector.shape_cast %333 : vector<8xf32> to vector<8x1xf32>
    %335 = vector.broadcast %285 : vector<1x1xf32> to vector<8x1xf32>
    %336 = arith.addf %334, %335 : vector<8x1xf32>
    %337 = arith.negf %336 : vector<8x1xf32>
    %338 = math.exp %337 : vector<8x1xf32>
    %cst_135 = arith.constant 1.000000e+00 : f32
    %339 = vector.broadcast %cst_135 : f32 to vector<8x1xf32>
    %340 = arith.addf %339, %338 : vector<8x1xf32>
    %341 = arith.divf %339, %340 : vector<8x1xf32>
    %342 = vector.extract_strided_slice %292 {offsets = [1, 0, 0], sizes = [1, 8, 4], strides = [1, 1, 1]} : vector<4x8x4xf32> to vector<1x8x4xf32>
    %343 = vector.shape_cast %342 : vector<1x8x4xf32> to vector<8x4xf32>
    %cst_136 = arith.constant dense<0.000000e+00> : vector<8xf32>
    %344 = vector.multi_reduction <add>, %343, %cst_136 [1] : vector<8x4xf32> to vector<8xf32>
    %345 = vector.shape_cast %344 : vector<8xf32> to vector<8x1xf32>
    %cst_137 = arith.constant 0.000000e+00 : f32
    %346 = vector.broadcast %cst_137 : f32 to vector<8x1xf32>
    %347 = arith.subf %346, %345 : vector<8x1xf32>
    %cst_138 = arith.constant 5.000000e-01 : f32
    %348 = vector.broadcast %cst_138 : f32 to vector<8x1xf32>
    %349 = arith.mulf %347, %348 : vector<8x1xf32>
    %350 = vector.extract_strided_slice %309 {offsets = [16, 0], sizes = [8, 4], strides = [1, 1]} : vector<32x4xf32> to vector<8x4xf32>
    %351 = vector.broadcast %283 : vector<1x4xf32> to vector<8x4xf32>
    %352 = arith.mulf %350, %351 : vector<8x4xf32>
    %cst_139 = arith.constant dense<0.000000e+00> : vector<8xf32>
    %353 = vector.multi_reduction <add>, %352, %cst_139 [1] : vector<8x4xf32> to vector<8xf32>
    %354 = vector.shape_cast %353 : vector<8xf32> to vector<8x1xf32>
    %355 = vector.broadcast %285 : vector<1x1xf32> to vector<8x1xf32>
    %356 = arith.addf %354, %355 : vector<8x1xf32>
    %357 = arith.negf %356 : vector<8x1xf32>
    %358 = math.exp %357 : vector<8x1xf32>
    %cst_140 = arith.constant 1.000000e+00 : f32
    %359 = vector.broadcast %cst_140 : f32 to vector<8x1xf32>
    %360 = arith.addf %359, %358 : vector<8x1xf32>
    %361 = arith.divf %359, %360 : vector<8x1xf32>
    %362 = vector.extract_strided_slice %292 {offsets = [2, 0, 0], sizes = [1, 8, 4], strides = [1, 1, 1]} : vector<4x8x4xf32> to vector<1x8x4xf32>
    %363 = vector.shape_cast %362 : vector<1x8x4xf32> to vector<8x4xf32>
    %cst_141 = arith.constant dense<0.000000e+00> : vector<8xf32>
    %364 = vector.multi_reduction <add>, %363, %cst_141 [1] : vector<8x4xf32> to vector<8xf32>
    %365 = vector.shape_cast %364 : vector<8xf32> to vector<8x1xf32>
    %cst_142 = arith.constant 0.000000e+00 : f32
    %366 = vector.broadcast %cst_142 : f32 to vector<8x1xf32>
    %367 = arith.subf %366, %365 : vector<8x1xf32>
    %cst_143 = arith.constant 5.000000e-01 : f32
    %368 = vector.broadcast %cst_143 : f32 to vector<8x1xf32>
    %369 = arith.mulf %367, %368 : vector<8x1xf32>
    %370 = vector.extract_strided_slice %309 {offsets = [24, 0], sizes = [8, 4], strides = [1, 1]} : vector<32x4xf32> to vector<8x4xf32>
    %371 = vector.broadcast %283 : vector<1x4xf32> to vector<8x4xf32>
    %372 = arith.mulf %370, %371 : vector<8x4xf32>
    %cst_144 = arith.constant dense<0.000000e+00> : vector<8xf32>
    %373 = vector.multi_reduction <add>, %372, %cst_144 [1] : vector<8x4xf32> to vector<8xf32>
    %374 = vector.shape_cast %373 : vector<8xf32> to vector<8x1xf32>
    %375 = vector.broadcast %285 : vector<1x1xf32> to vector<8x1xf32>
    %376 = arith.addf %374, %375 : vector<8x1xf32>
    %377 = arith.negf %376 : vector<8x1xf32>
    %378 = math.exp %377 : vector<8x1xf32>
    %cst_145 = arith.constant 1.000000e+00 : f32
    %379 = vector.broadcast %cst_145 : f32 to vector<8x1xf32>
    %380 = arith.addf %379, %378 : vector<8x1xf32>
    %381 = arith.divf %379, %380 : vector<8x1xf32>
    %382 = vector.extract_strided_slice %292 {offsets = [3, 0, 0], sizes = [1, 8, 4], strides = [1, 1, 1]} : vector<4x8x4xf32> to vector<1x8x4xf32>
    %383 = vector.shape_cast %382 : vector<1x8x4xf32> to vector<8x4xf32>
    %cst_146 = arith.constant dense<0.000000e+00> : vector<8xf32>
    %384 = vector.multi_reduction <add>, %383, %cst_146 [1] : vector<8x4xf32> to vector<8xf32>
    %385 = vector.shape_cast %384 : vector<8xf32> to vector<8x1xf32>
    %cst_147 = arith.constant 0.000000e+00 : f32
    %386 = vector.broadcast %cst_147 : f32 to vector<8x1xf32>
    %387 = arith.subf %386, %385 : vector<8x1xf32>
    %cst_148 = arith.constant 5.000000e-01 : f32
    %388 = vector.broadcast %cst_148 : f32 to vector<8x1xf32>
    %389 = arith.mulf %387, %388 : vector<8x1xf32>
    %390 = tpu.concatenate %321, %341, %361, %381 in 1 : vector<8x1xf32>, vector<8x1xf32>, vector<8x1xf32>, vector<8x1xf32> -> vector<8x4xf32>
    %391 = tpu.concatenate %329, %349, %369, %389 in 1 : vector<8x1xf32>, vector<8x1xf32>, vector<8x1xf32>, vector<8x1xf32> -> vector<8x4xf32>
    %cst_149 = arith.constant 1.000000e+00 : f32
    %392 = vector.broadcast %cst_149 : f32 to vector<8x4xf32>
    %393 = arith.subf %392, %12 : vector<8x4xf32>
    %394 = arith.mulf %7, %393 : vector<8x4xf32>
    %cst_150 = arith.constant dense<0.000000e+00> : vector<8xf32>
    %395 = vector.multi_reduction <add>, %394, %cst_150 [1] : vector<8x4xf32> to vector<8xf32>
    %396 = vector.shape_cast %395 : vector<8xf32> to vector<8x1xf32>
    %397 = arith.mulf %390, %394 : vector<8x4xf32>
    %398 = math.absf %397 : vector<8x4xf32>
    %cst_151 = arith.constant dense<0.000000e+00> : vector<8xf32>
    %399 = vector.multi_reduction <add>, %398, %cst_151 [1] : vector<8x4xf32> to vector<8xf32>
    %400 = vector.shape_cast %399 : vector<8xf32> to vector<8x1xf32>
    %cst_152 = arith.constant 9.99999996E-13 : f32
    %401 = vector.broadcast %cst_152 : f32 to vector<8x1xf32>
    %402 = arith.maximumf %400, %401 : vector<8x1xf32>
    %403 = tpu.reciprocal %402 {approx = true} : vector<8x1xf32> -> vector<8x1xf32>
    %404 = vector.broadcast %403 : vector<8x1xf32> to vector<8x4xf32>
    %405 = arith.mulf %397, %404 : vector<8x4xf32>
    %406 = vector.broadcast %396 : vector<8x1xf32> to vector<8x4xf32>
    %407 = arith.mulf %405, %406 : vector<8x4xf32>
    %408 = arith.addf %407, %12 : vector<8x4xf32>
    %cst_153 = arith.constant 9.99999997E-7 : f32
    %409 = vector.broadcast %cst_153 : f32 to vector<8x4xf32>
    %410 = arith.addf %408, %409 : vector<8x4xf32>
    %cst_154 = arith.constant dense<0.000000e+00> : vector<8xf32>
    %411 = vector.multi_reduction <add>, %410, %cst_154 [1] : vector<8x4xf32> to vector<8xf32>
    %412 = vector.shape_cast %411 : vector<8xf32> to vector<8x1xf32>
    %413 = tpu.reciprocal %412 {approx = true} : vector<8x1xf32> -> vector<8x1xf32>
    %414 = vector.broadcast %413 : vector<8x1xf32> to vector<8x4xf32>
    %415 = arith.mulf %410, %414 : vector<8x4xf32>
    %c0_155 = arith.constant 0 : index
    %c0_156 = arith.constant 0 : index
    %c0_157 = arith.constant 0 : index
    %416 = vector.load %arg26[%c0_155, %c0_156, %c0_157] : memref<2x32x64xf32, #tpu.memory_space<vmem>>, vector<1x32x64xf32>
    %417 = vector.shape_cast %416 : vector<1x32x64xf32> to vector<32x64xf32>
    %c0_158 = arith.constant 0 : index
    %c0_159 = arith.constant 0 : index
    %c0_160 = arith.constant 0 : index
    %418 = vector.load %arg27[%c0_158, %c0_159, %c0_160] : memref<2x32x64xf32, #tpu.memory_space<vmem>>, vector<1x32x64xf32>
    %419 = vector.shape_cast %418 : vector<1x32x64xf32> to vector<32x64xf32>
    %c0_161 = arith.constant 0 : index
    %c0_162 = arith.constant 0 : index
    %c0_163 = arith.constant 0 : index
    %420 = vector.load %arg28[%c0_161, %c0_162, %c0_163] : memref<2x1x64xf32, #tpu.memory_space<vmem>>, vector<1x1x64xf32>
    %421 = vector.shape_cast %420 : vector<1x1x64xf32> to vector<1x64xf32>
    %c0_164 = arith.constant 0 : index
    %c0_165 = arith.constant 0 : index
    %c0_166 = arith.constant 0 : index
    %422 = vector.load %arg29[%c0_164, %c0_165, %c0_166] : memref<2x64x32xf32, #tpu.memory_space<vmem>>, vector<1x64x32xf32>
    %423 = vector.shape_cast %422 : vector<1x64x32xf32> to vector<64x32xf32>
    %c0_167 = arith.constant 0 : index
    %c0_168 = arith.constant 0 : index
    %c0_169 = arith.constant 0 : index
    %424 = vector.load %arg30[%c0_167, %c0_168, %c0_169] : memref<2x1x32xf32, #tpu.memory_space<vmem>>, vector<1x1x32xf32>
    %425 = vector.shape_cast %424 : vector<1x1x32xf32> to vector<1x32xf32>
    %cst_170 = arith.constant 1.000000e+00 : f32
    %426 = vector.broadcast %cst_170 : f32 to vector<8x4xf32>
    %427 = arith.subf %426, %12 : vector<8x4xf32>
    %428 = arith.mulf %415, %427 : vector<8x4xf32>
    %429 = math.absf %428 : vector<8x4xf32>
    %cst_171 = arith.constant dense<0.000000e+00> : vector<8xf32>
    %430 = vector.multi_reduction <add>, %429, %cst_171 [1] : vector<8x4xf32> to vector<8xf32>
    %431 = vector.shape_cast %430 : vector<8xf32> to vector<8x1xf32>
    %cst_172 = arith.constant 9.99999996E-13 : f32
    %432 = vector.broadcast %cst_172 : f32 to vector<8x1xf32>
    %433 = arith.maximumf %431, %432 : vector<8x1xf32>
    %434 = tpu.reciprocal %433 {approx = true} : vector<8x1xf32> -> vector<8x1xf32>
    %435 = vector.broadcast %434 : vector<8x1xf32> to vector<8x4xf32>
    %436 = arith.mulf %428, %435 : vector<8x4xf32>
    %437 = vector.extract_strided_slice %1 {offsets = [0, 0], sizes = [4, 32], strides = [1, 1]} : vector<8x32xf32> to vector<4x32xf32>
    %cst_173 = arith.constant dense<0.000000e+00> : vector<8x32xf32>
    %438 = tpu.matmul %436, %437, %cst_173 {dimension_numbers = #tpu.dot_dimension_numbers<[1], [0], [0], [1], [0, 0, 1, 1], [], []>} : vector<8x4xf32>, vector<4x32xf32>, vector<8x32xf32> -> vector<8x32xf32>
    %cst_174 = arith.constant dense<0.000000e+00> : vector<4x32xf32>
    %439 = tpu.matmul %436, %1, %cst_174 {dimension_numbers = #tpu.dot_dimension_numbers<[0], [0], [1], [1], [0, 1, 1, 1], [], []>} : vector<8x4xf32>, vector<8x32xf32>, vector<4x32xf32> -> vector<4x32xf32>
    %c0_175 = arith.constant 0 : index
    %c0_176 = arith.constant 0 : index
    %440 = vector.load %arg35[%c0_175, %c0_176] : memref<8x32xf32, #tpu.memory_space<vmem>>, vector<8x32xf32>
    tpu.vector_store %arg35[%c0_175, %c0_176], %438 {strides = array<i32>} : memref<8x32xf32, #tpu.memory_space<vmem>>, vector<8x32xf32>,
    %c0_177 = arith.constant 0 : index
    %c0_178 = arith.constant 0 : index
    %441 = vector.load %arg35[%c0_177, %c0_178] : memref<8x32xf32, #tpu.memory_space<vmem>>, vector<4x32xf32>
    tpu.vector_store %arg35[%c0_177, %c0_178], %439 {strides = array<i32>} : memref<8x32xf32, #tpu.memory_space<vmem>>, vector<4x32xf32>,
    %c0_179 = arith.constant 0 : index
    %c0_180 = arith.constant 0 : index
    %442 = vector.load %arg35[%c0_179, %c0_180] : memref<8x32xf32, #tpu.memory_space<vmem>>, vector<8x32xf32>
    %cst_181 = arith.constant dense<0.000000e+00> : vector<8x64xf32>
    %443 = tpu.matmul %1, %417, %cst_181 {dimension_numbers = #tpu.dot_dimension_numbers<[1], [0], [0], [1], [0, 0, 1, 1], [], []>} : vector<8x32xf32>, vector<32x64xf32>, vector<8x64xf32> -> vector<8x64xf32>
    %cst_182 = arith.constant dense<0.000000e+00> : vector<8x64xf32>
    %444 = tpu.matmul %442, %419, %cst_182 {dimension_numbers = #tpu.dot_dimension_numbers<[1], [0], [0], [1], [0, 0, 1, 1], [], []>} : vector<8x32xf32>, vector<32x64xf32>, vector<8x64xf32> -> vector<8x64xf32>
    %445 = arith.addf %443, %444 : vector<8x64xf32>
    %446 = vector.broadcast %421 : vector<1x64xf32> to vector<8x64xf32>
    %447 = arith.addf %445, %446 : vector<8x64xf32>
    %cst_183 = arith.constant 0.000000e+00 : f32
    %448 = vector.broadcast %cst_183 : f32 to vector<8x64xf32>
    %449 = arith.cmpf oge, %447, %448 : vector<8x64xf32>
    %cst_184 = arith.constant 0.00999999977 : f32
    %450 = vector.broadcast %cst_184 : f32 to vector<8x64xf32>
    %451 = arith.mulf %450, %447 : vector<8x64xf32>
    %452 = arith.select %449, %447, %451 : vector<8x64xi1>, vector<8x64xf32>
    %cst_185 = arith.constant dense<0.000000e+00> : vector<8x32xf32>
    %453 = tpu.matmul %452, %423, %cst_185 {dimension_numbers = #tpu.dot_dimension_numbers<[1], [0], [0], [1], [0, 0, 1, 1], [], []>} : vector<8x64xf32>, vector<64x32xf32>, vector<8x32xf32> -> vector<8x32xf32>
    %454 = vector.broadcast %425 : vector<1x32xf32> to vector<8x32xf32>
    %455 = arith.addf %453, %454 : vector<8x32xf32>
    %cst_186 = arith.constant 0.000000e+00 : f32
    %456 = vector.broadcast %cst_186 : f32 to vector<8x32xf32>
    %457 = arith.cmpf oge, %455, %456 : vector<8x32xf32>
    %cst_187 = arith.constant 0.00999999977 : f32
    %458 = vector.broadcast %cst_187 : f32 to vector<8x32xf32>
    %459 = arith.mulf %458, %455 : vector<8x32xf32>
    %460 = arith.select %457, %455, %459 : vector<8x32xi1>, vector<8x32xf32>
    %cst_188 = arith.constant 1.000000e+00 : f32
    %461 = vector.broadcast %cst_188 : f32 to vector<8x4xf32>
    %462 = arith.mulf %257, %461 : vector<8x4xf32>
    %c0_189 = arith.constant 0 : index
    %c0_190 = arith.constant 0 : index
    %c0_191 = arith.constant 0 : index
    %c0_192 = arith.constant 0 : index
    %463 = vector.load %arg31[%c0_189, %c0_190, %c0_191, %c0_192] : memref<2x1x8x4xf32, #tpu.memory_space<vmem>>, vector<1x1x8x4xf32>
    %464 = vector.shape_cast %463 : vector<1x1x8x4xf32> to vector<8x4xf32>
    %465 = vector.shape_cast %462 : vector<8x4xf32> to vector<1x1x8x4xf32>
    tpu.vector_store %arg31[%c0_189, %c0_190, %c0_191, %c0_192], %465 {strides = array<i32>} : memref<2x1x8x4xf32, #tpu.memory_space<vmem>>, vector<1x1x8x4xf32>,
    %cst_193 = arith.constant 1.000000e+00 : f32
    %466 = vector.broadcast %cst_193 : f32 to vector<8x4xf32>
    %467 = arith.mulf %233, %466 : vector<8x4xf32>
    %c0_194 = arith.constant 0 : index
    %c0_195 = arith.constant 0 : index
    %c0_196 = arith.constant 0 : index
    %c0_197 = arith.constant 0 : index
    %468 = vector.load %arg32[%c0_194, %c0_195, %c0_196, %c0_197] : memref<2x1x8x4xf32, #tpu.memory_space<vmem>>, vector<1x1x8x4xf32>
    %469 = vector.shape_cast %468 : vector<1x1x8x4xf32> to vector<8x4xf32>
    %470 = vector.shape_cast %467 : vector<8x4xf32> to vector<1x1x8x4xf32>
    tpu.vector_store %arg32[%c0_194, %c0_195, %c0_196, %c0_197], %470 {strides = array<i32>} : memref<2x1x8x4xf32, #tpu.memory_space<vmem>>, vector<1x1x8x4xf32>,
    %cst_198 = arith.constant 1.000000e+00 : f32
    %471 = vector.broadcast %cst_198 : f32 to vector<8x4xf32>
    %472 = arith.mulf %415, %471 : vector<8x4xf32>
    %c0_199 = arith.constant 0 : index
    %c0_200 = arith.constant 0 : index
    %c0_201 = arith.constant 0 : index
    %c0_202 = arith.constant 0 : index
    %473 = vector.load %arg33[%c0_199, %c0_200, %c0_201, %c0_202] : memref<2x1x8x4xf32, #tpu.memory_space<vmem>>, vector<1x1x8x4xf32>
    %474 = vector.shape_cast %473 : vector<1x1x8x4xf32> to vector<8x4xf32>
    %475 = vector.shape_cast %472 : vector<8x4xf32> to vector<1x1x8x4xf32>
    tpu.vector_store %arg33[%c0_199, %c0_200, %c0_201, %c0_202], %475 {strides = array<i32>} : memref<2x1x8x4xf32, #tpu.memory_space<vmem>>, vector<1x1x8x4xf32>,
    %cst_203 = arith.constant 1.000000e+00 : f32
    %476 = vector.broadcast %cst_203 : f32 to vector<8x4xf32>
    %477 = arith.mulf %391, %476 : vector<8x4xf32>
    %c0_204 = arith.constant 0 : index
    %c0_205 = arith.constant 0 : index
    %c0_206 = arith.constant 0 : index
    %c0_207 = arith.constant 0 : index
    %478 = vector.load %arg34[%c0_204, %c0_205, %c0_206, %c0_207] : memref<2x1x8x4xf32, #tpu.memory_space<vmem>>, vector<1x1x8x4xf32>
    %479 = vector.shape_cast %478 : vector<1x1x8x4xf32> to vector<8x4xf32>
    %480 = vector.shape_cast %477 : vector<8x4xf32> to vector<1x1x8x4xf32>
    tpu.vector_store %arg34[%c0_204, %c0_205, %c0_206, %c0_207], %480 {strides = array<i32>} : memref<2x1x8x4xf32, #tpu.memory_space<vmem>>, vector<1x1x8x4xf32>,
    %c1 = arith.constant 1 : index
    %c0_208 = arith.constant 0 : index
    %c0_209 = arith.constant 0 : index
    %481 = vector.load %arg11[%c1, %c0_208, %c0_209] : memref<2x32x64xf32, #tpu.memory_space<vmem>>, vector<1x32x64xf32>
    %482 = vector.shape_cast %481 : vector<1x32x64xf32> to vector<32x64xf32>
    %c1_210 = arith.constant 1 : index
    %c0_211 = arith.constant 0 : index
    %c0_212 = arith.constant 0 : index
    %483 = vector.load %arg12[%c1_210, %c0_211, %c0_212] : memref<2x1x64xf32, #tpu.memory_space<vmem>>, vector<1x1x64xf32>
    %484 = vector.shape_cast %483 : vector<1x1x64xf32> to vector<1x64xf32>
    %c1_213 = arith.constant 1 : index
    %c0_214 = arith.constant 0 : index
    %c0_215 = arith.constant 0 : index
    %485 = vector.load %arg13[%c1_213, %c0_214, %c0_215] : memref<2x64x32xf32, #tpu.memory_space<vmem>>, vector<1x64x32xf32>
    %486 = vector.shape_cast %485 : vector<1x64x32xf32> to vector<64x32xf32>
    %c1_216 = arith.constant 1 : index
    %c0_217 = arith.constant 0 : index
    %c0_218 = arith.constant 0 : index
    %487 = vector.load %arg14[%c1_216, %c0_217, %c0_218] : memref<2x1x32xf32, #tpu.memory_space<vmem>>, vector<1x1x32xf32>
    %488 = vector.shape_cast %487 : vector<1x1x32xf32> to vector<1x32xf32>
    %c1_219 = arith.constant 1 : index
    %c0_220 = arith.constant 0 : index
    %c0_221 = arith.constant 0 : index
    %489 = vector.load %arg15[%c1_219, %c0_220, %c0_221] : memref<2x1x32xf32, #tpu.memory_space<vmem>>, vector<1x1x32xf32>
    %490 = vector.shape_cast %489 : vector<1x1x32xf32> to vector<1x32xf32>
    %c1_222 = arith.constant 1 : index
    %c0_223 = arith.constant 0 : index
    %c0_224 = arith.constant 0 : index
    %491 = vector.load %arg16[%c1_222, %c0_223, %c0_224] : memref<2x1x1xf32, #tpu.memory_space<vmem>>, vector<1x1x1xf32>
    %492 = vector.shape_cast %491 : vector<1x1x1xf32> to vector<1x1xf32>
    %493 = vector.extract_strided_slice %460 {offsets = [0, 0], sizes = [4, 32], strides = [1, 1]} : vector<8x32xf32> to vector<4x32xf32>
    %494 = vector.shape_cast %460 : vector<8x32xf32> to vector<1x8x32xf32>
    %495 = vector.shape_cast %493 : vector<4x32xf32> to vector<4x1x32xf32>
    %496 = vector.broadcast %494 : vector<1x8x32xf32> to vector<4x8x32xf32>
    %497 = vector.broadcast %495 : vector<4x1x32xf32> to vector<4x8x32xf32>
    %498 = arith.subf %496, %497 : vector<4x8x32xf32>
    %499 = math.absf %498 : vector<4x8x32xf32>
    %500 = vector.shape_cast %499 : vector<4x8x32xf32> to vector<32x32xf32>
    %cst_225 = arith.constant dense<0.000000e+00> : vector<32x64xf32>
    %501 = tpu.matmul %500, %482, %cst_225 {dimension_numbers = #tpu.dot_dimension_numbers<[1], [0], [0], [1], [0, 0, 1, 1], [], []>} : vector<32x32xf32>, vector<32x64xf32>, vector<32x64xf32> -> vector<32x64xf32>
    %502 = vector.broadcast %484 : vector<1x64xf32> to vector<32x64xf32>
    %503 = arith.addf %501, %502 : vector<32x64xf32>
    %cst_226 = arith.constant 0.000000e+00 : f32
    %504 = vector.broadcast %cst_226 : f32 to vector<32x64xf32>
    %505 = arith.cmpf oge, %503, %504 : vector<32x64xf32>
    %cst_227 = arith.constant 0.00999999977 : f32
    %506 = vector.broadcast %cst_227 : f32 to vector<32x64xf32>
    %507 = arith.mulf %506, %503 : vector<32x64xf32>
    %508 = arith.select %505, %503, %507 : vector<32x64xi1>, vector<32x64xf32>
    %cst_228 = arith.constant dense<0.000000e+00> : vector<32x32xf32>
    %509 = tpu.matmul %508, %486, %cst_228 {dimension_numbers = #tpu.dot_dimension_numbers<[1], [0], [0], [1], [0, 0, 1, 1], [], []>} : vector<32x64xf32>, vector<64x32xf32>, vector<32x32xf32> -> vector<32x32xf32>
    %510 = vector.broadcast %488 : vector<1x32xf32> to vector<32x32xf32>
    %511 = arith.addf %509, %510 : vector<32x32xf32>
    %cst_229 = arith.constant 0.000000e+00 : f32
    %512 = vector.broadcast %cst_229 : f32 to vector<32x32xf32>
    %513 = arith.cmpf oge, %511, %512 : vector<32x32xf32>
    %cst_230 = arith.constant 0.00999999977 : f32
    %514 = vector.broadcast %cst_230 : f32 to vector<32x32xf32>
    %515 = arith.mulf %514, %511 : vector<32x32xf32>
    %516 = arith.select %513, %511, %515 : vector<32x32xi1>, vector<32x32xf32>
    %517 = vector.extract_strided_slice %516 {offsets = [0, 0], sizes = [8, 32], strides = [1, 1]} : vector<32x32xf32> to vector<8x32xf32>
    %518 = vector.broadcast %490 : vector<1x32xf32> to vector<8x32xf32>
    %519 = arith.mulf %517, %518 : vector<8x32xf32>
    %cst_231 = arith.constant dense<0.000000e+00> : vector<8xf32>
    %520 = vector.multi_reduction <add>, %519, %cst_231 [1] : vector<8x32xf32> to vector<8xf32>
    %521 = vector.shape_cast %520 : vector<8xf32> to vector<8x1xf32>
    %522 = vector.broadcast %492 : vector<1x1xf32> to vector<8x1xf32>
    %523 = arith.addf %521, %522 : vector<8x1xf32>
    %524 = arith.negf %523 : vector<8x1xf32>
    %525 = math.exp %524 : vector<8x1xf32>
    %cst_232 = arith.constant 1.000000e+00 : f32
    %526 = vector.broadcast %cst_232 : f32 to vector<8x1xf32>
    %527 = arith.addf %526, %525 : vector<8x1xf32>
    %528 = arith.divf %526, %527 : vector<8x1xf32>
    %529 = vector.extract_strided_slice %499 {offsets = [0, 0, 0], sizes = [1, 8, 32], strides = [1, 1, 1]} : vector<4x8x32xf32> to vector<1x8x32xf32>
    %530 = vector.shape_cast %529 : vector<1x8x32xf32> to vector<8x32xf32>
    %cst_233 = arith.constant dense<0.000000e+00> : vector<8xf32>
    %531 = vector.multi_reduction <add>, %530, %cst_233 [1] : vector<8x32xf32> to vector<8xf32>
    %532 = vector.shape_cast %531 : vector<8xf32> to vector<8x1xf32>
    %cst_234 = arith.constant 0.000000e+00 : f32
    %533 = vector.broadcast %cst_234 : f32 to vector<8x1xf32>
    %534 = arith.subf %533, %532 : vector<8x1xf32>
    %cst_235 = arith.constant 1.000000e+00 : f32
    %535 = vector.broadcast %cst_235 : f32 to vector<8x1xf32>
    %536 = arith.mulf %534, %535 : vector<8x1xf32>
    %537 = vector.extract_strided_slice %516 {offsets = [8, 0], sizes = [8, 32], strides = [1, 1]} : vector<32x32xf32> to vector<8x32xf32>
    %538 = vector.broadcast %490 : vector<1x32xf32> to vector<8x32xf32>
    %539 = arith.mulf %537, %538 : vector<8x32xf32>
    %cst_236 = arith.constant dense<0.000000e+00> : vector<8xf32>
    %540 = vector.multi_reduction <add>, %539, %cst_236 [1] : vector<8x32xf32> to vector<8xf32>
    %541 = vector.shape_cast %540 : vector<8xf32> to vector<8x1xf32>
    %542 = vector.broadcast %492 : vector<1x1xf32> to vector<8x1xf32>
    %543 = arith.addf %541, %542 : vector<8x1xf32>
    %544 = arith.negf %543 : vector<8x1xf32>
    %545 = math.exp %544 : vector<8x1xf32>
    %cst_237 = arith.constant 1.000000e+00 : f32
    %546 = vector.broadcast %cst_237 : f32 to vector<8x1xf32>
    %547 = arith.addf %546, %545 : vector<8x1xf32>
    %548 = arith.divf %546, %547 : vector<8x1xf32>
    %549 = vector.extract_strided_slice %499 {offsets = [1, 0, 0], sizes = [1, 8, 32], strides = [1, 1, 1]} : vector<4x8x32xf32> to vector<1x8x32xf32>
    %550 = vector.shape_cast %549 : vector<1x8x32xf32> to vector<8x32xf32>
    %cst_238 = arith.constant dense<0.000000e+00> : vector<8xf32>
    %551 = vector.multi_reduction <add>, %550, %cst_238 [1] : vector<8x32xf32> to vector<8xf32>
    %552 = vector.shape_cast %551 : vector<8xf32> to vector<8x1xf32>
    %cst_239 = arith.constant 0.000000e+00 : f32
    %553 = vector.broadcast %cst_239 : f32 to vector<8x1xf32>
    %554 = arith.subf %553, %552 : vector<8x1xf32>
    %cst_240 = arith.constant 1.000000e+00 : f32
    %555 = vector.broadcast %cst_240 : f32 to vector<8x1xf32>
    %556 = arith.mulf %554, %555 : vector<8x1xf32>
    %557 = vector.extract_strided_slice %516 {offsets = [16, 0], sizes = [8, 32], strides = [1, 1]} : vector<32x32xf32> to vector<8x32xf32>
    %558 = vector.broadcast %490 : vector<1x32xf32> to vector<8x32xf32>
    %559 = arith.mulf %557, %558 : vector<8x32xf32>
    %cst_241 = arith.constant dense<0.000000e+00> : vector<8xf32>
    %560 = vector.multi_reduction <add>, %559, %cst_241 [1] : vector<8x32xf32> to vector<8xf32>
    %561 = vector.shape_cast %560 : vector<8xf32> to vector<8x1xf32>
    %562 = vector.broadcast %492 : vector<1x1xf32> to vector<8x1xf32>
    %563 = arith.addf %561, %562 : vector<8x1xf32>
    %564 = arith.negf %563 : vector<8x1xf32>
    %565 = math.exp %564 : vector<8x1xf32>
    %cst_242 = arith.constant 1.000000e+00 : f32
    %566 = vector.broadcast %cst_242 : f32 to vector<8x1xf32>
    %567 = arith.addf %566, %565 : vector<8x1xf32>
    %568 = arith.divf %566, %567 : vector<8x1xf32>
    %569 = vector.extract_strided_slice %499 {offsets = [2, 0, 0], sizes = [1, 8, 32], strides = [1, 1, 1]} : vector<4x8x32xf32> to vector<1x8x32xf32>
    %570 = vector.shape_cast %569 : vector<1x8x32xf32> to vector<8x32xf32>
    %cst_243 = arith.constant dense<0.000000e+00> : vector<8xf32>
    %571 = vector.multi_reduction <add>, %570, %cst_243 [1] : vector<8x32xf32> to vector<8xf32>
    %572 = vector.shape_cast %571 : vector<8xf32> to vector<8x1xf32>
    %cst_244 = arith.constant 0.000000e+00 : f32
    %573 = vector.broadcast %cst_244 : f32 to vector<8x1xf32>
    %574 = arith.subf %573, %572 : vector<8x1xf32>
    %cst_245 = arith.constant 1.000000e+00 : f32
    %575 = vector.broadcast %cst_245 : f32 to vector<8x1xf32>
    %576 = arith.mulf %574, %575 : vector<8x1xf32>
    %577 = vector.extract_strided_slice %516 {offsets = [24, 0], sizes = [8, 32], strides = [1, 1]} : vector<32x32xf32> to vector<8x32xf32>
    %578 = vector.broadcast %490 : vector<1x32xf32> to vector<8x32xf32>
    %579 = arith.mulf %577, %578 : vector<8x32xf32>
    %cst_246 = arith.constant dense<0.000000e+00> : vector<8xf32>
    %580 = vector.multi_reduction <add>, %579, %cst_246 [1] : vector<8x32xf32> to vector<8xf32>
    %581 = vector.shape_cast %580 : vector<8xf32> to vector<8x1xf32>
    %582 = vector.broadcast %492 : vector<1x1xf32> to vector<8x1xf32>
    %583 = arith.addf %581, %582 : vector<8x1xf32>
    %584 = arith.negf %583 : vector<8x1xf32>
    %585 = math.exp %584 : vector<8x1xf32>
    %cst_247 = arith.constant 1.000000e+00 : f32
    %586 = vector.broadcast %cst_247 : f32 to vector<8x1xf32>
    %587 = arith.addf %586, %585 : vector<8x1xf32>
    %588 = arith.divf %586, %587 : vector<8x1xf32>
    %589 = vector.extract_strided_slice %499 {offsets = [3, 0, 0], sizes = [1, 8, 32], strides = [1, 1, 1]} : vector<4x8x32xf32> to vector<1x8x32xf32>
    %590 = vector.shape_cast %589 : vector<1x8x32xf32> to vector<8x32xf32>
    %cst_248 = arith.constant dense<0.000000e+00> : vector<8xf32>
    %591 = vector.multi_reduction <add>, %590, %cst_248 [1] : vector<8x32xf32> to vector<8xf32>
    %592 = vector.shape_cast %591 : vector<8xf32> to vector<8x1xf32>
    %cst_249 = arith.constant 0.000000e+00 : f32
    %593 = vector.broadcast %cst_249 : f32 to vector<8x1xf32>
    %594 = arith.subf %593, %592 : vector<8x1xf32>
    %cst_250 = arith.constant 1.000000e+00 : f32
    %595 = vector.broadcast %cst_250 : f32 to vector<8x1xf32>
    %596 = arith.mulf %594, %595 : vector<8x1xf32>
    %597 = tpu.concatenate %528, %548, %568, %588 in 1 : vector<8x1xf32>, vector<8x1xf32>, vector<8x1xf32>, vector<8x1xf32> -> vector<8x4xf32>
    %598 = tpu.concatenate %536, %556, %576, %596 in 1 : vector<8x1xf32>, vector<8x1xf32>, vector<8x1xf32>, vector<8x1xf32> -> vector<8x4xf32>
    %cst_251 = arith.constant 1.000000e+00 : f32
    %599 = vector.broadcast %cst_251 : f32 to vector<8x4xf32>
    %600 = arith.subf %599, %12 : vector<8x4xf32>
    %601 = arith.mulf %257, %600 : vector<8x4xf32>
    %cst_252 = arith.constant dense<0.000000e+00> : vector<8xf32>
    %602 = vector.multi_reduction <add>, %601, %cst_252 [1] : vector<8x4xf32> to vector<8xf32>
    %603 = vector.shape_cast %602 : vector<8xf32> to vector<8x1xf32>
    %604 = arith.mulf %597, %601 : vector<8x4xf32>
    %605 = math.absf %604 : vector<8x4xf32>
    %cst_253 = arith.constant dense<0.000000e+00> : vector<8xf32>
    %606 = vector.multi_reduction <add>, %605, %cst_253 [1] : vector<8x4xf32> to vector<8xf32>
    %607 = vector.shape_cast %606 : vector<8xf32> to vector<8x1xf32>
    %cst_254 = arith.constant 9.99999996E-13 : f32
    %608 = vector.broadcast %cst_254 : f32 to vector<8x1xf32>
    %609 = arith.maximumf %607, %608 : vector<8x1xf32>
    %610 = tpu.reciprocal %609 {approx = true} : vector<8x1xf32> -> vector<8x1xf32>
    %611 = vector.broadcast %610 : vector<8x1xf32> to vector<8x4xf32>
    %612 = arith.mulf %604, %611 : vector<8x4xf32>
    %613 = vector.broadcast %603 : vector<8x1xf32> to vector<8x4xf32>
    %614 = arith.mulf %612, %613 : vector<8x4xf32>
    %615 = arith.addf %614, %12 : vector<8x4xf32>
    %cst_255 = arith.constant 9.99999997E-7 : f32
    %616 = vector.broadcast %cst_255 : f32 to vector<8x4xf32>
    %617 = arith.addf %615, %616 : vector<8x4xf32>
    %cst_256 = arith.constant dense<0.000000e+00> : vector<8xf32>
    %618 = vector.multi_reduction <add>, %617, %cst_256 [1] : vector<8x4xf32> to vector<8xf32>
    %619 = vector.shape_cast %618 : vector<8xf32> to vector<8x1xf32>
    %620 = tpu.reciprocal %619 {approx = true} : vector<8x1xf32> -> vector<8x1xf32>
    %621 = vector.broadcast %620 : vector<8x1xf32> to vector<8x4xf32>
    %622 = arith.mulf %617, %621 : vector<8x4xf32>
    %c1_257 = arith.constant 1 : index
    %c0_258 = arith.constant 0 : index
    %c0_259 = arith.constant 0 : index
    %623 = vector.load %arg17[%c1_257, %c0_258, %c0_259] : memref<2x4x4xf32, #tpu.memory_space<vmem>>, vector<1x4x4xf32>
    %624 = vector.shape_cast %623 : vector<1x4x4xf32> to vector<4x4xf32>
    %c1_260 = arith.constant 1 : index
    %c0_261 = arith.constant 0 : index
    %c0_262 = arith.constant 0 : index
    %625 = vector.load %arg18[%c1_260, %c0_261, %c0_262] : memref<2x4x4xf32, #tpu.memory_space<vmem>>, vector<1x4x4xf32>
    %626 = vector.shape_cast %625 : vector<1x4x4xf32> to vector<4x4xf32>
    %c1_263 = arith.constant 1 : index
    %c0_264 = arith.constant 0 : index
    %c0_265 = arith.constant 0 : index
    %627 = vector.load %arg19[%c1_263, %c0_264, %c0_265] : memref<2x1x4xf32, #tpu.memory_space<vmem>>, vector<1x1x4xf32>
    %628 = vector.shape_cast %627 : vector<1x1x4xf32> to vector<1x4xf32>
    %cst_266 = arith.constant dense<0.000000e+00> : vector<8x4xf32>
    %629 = tpu.matmul %622, %624, %cst_266 {dimension_numbers = #tpu.dot_dimension_numbers<[1], [0], [0], [1], [0, 0, 1, 1], [], []>} : vector<8x4xf32>, vector<4x4xf32>, vector<8x4xf32> -> vector<8x4xf32>
    %cst_267 = arith.constant dense<0.000000e+00> : vector<8x4xf32>
    %630 = tpu.matmul %273, %626, %cst_267 {dimension_numbers = #tpu.dot_dimension_numbers<[1], [0], [0], [1], [0, 0, 1, 1], [], []>} : vector<8x4xf32>, vector<4x4xf32>, vector<8x4xf32> -> vector<8x4xf32>
    %631 = arith.addf %629, %630 : vector<8x4xf32>
    %632 = vector.broadcast %628 : vector<1x4xf32> to vector<8x4xf32>
    %633 = arith.addf %631, %632 : vector<8x4xf32>
    %cst_268 = arith.constant 0.000000e+00 : f32
    %634 = vector.broadcast %cst_268 : f32 to vector<8x4xf32>
    %635 = arith.cmpf oge, %633, %634 : vector<8x4xf32>
    %cst_269 = arith.constant 0.00999999977 : f32
    %636 = vector.broadcast %cst_269 : f32 to vector<8x4xf32>
    %637 = arith.mulf %636, %633 : vector<8x4xf32>
    %638 = arith.select %635, %633, %637 : vector<8x4xi1>, vector<8x4xf32>
    %c1_270 = arith.constant 1 : index
    %c0_271 = arith.constant 0 : index
    %c0_272 = arith.constant 0 : index
    %639 = vector.load %arg20[%c1_270, %c0_271, %c0_272] : memref<2x4x8xf32, #tpu.memory_space<vmem>>, vector<1x4x8xf32>
    %640 = vector.shape_cast %639 : vector<1x4x8xf32> to vector<4x8xf32>
    %c1_273 = arith.constant 1 : index
    %c0_274 = arith.constant 0 : index
    %c0_275 = arith.constant 0 : index
    %641 = vector.load %arg21[%c1_273, %c0_274, %c0_275] : memref<2x1x8xf32, #tpu.memory_space<vmem>>, vector<1x1x8xf32>
    %642 = vector.shape_cast %641 : vector<1x1x8xf32> to vector<1x8xf32>
    %c1_276 = arith.constant 1 : index
    %c0_277 = arith.constant 0 : index
    %c0_278 = arith.constant 0 : index
    %643 = vector.load %arg22[%c1_276, %c0_277, %c0_278] : memref<2x8x4xf32, #tpu.memory_space<vmem>>, vector<1x8x4xf32>
    %644 = vector.shape_cast %643 : vector<1x8x4xf32> to vector<8x4xf32>
    %c1_279 = arith.constant 1 : index
    %c0_280 = arith.constant 0 : index
    %c0_281 = arith.constant 0 : index
    %645 = vector.load %arg23[%c1_279, %c0_280, %c0_281] : memref<2x1x4xf32, #tpu.memory_space<vmem>>, vector<1x1x4xf32>
    %646 = vector.shape_cast %645 : vector<1x1x4xf32> to vector<1x4xf32>
    %c1_282 = arith.constant 1 : index
    %c0_283 = arith.constant 0 : index
    %c0_284 = arith.constant 0 : index
    %647 = vector.load %arg24[%c1_282, %c0_283, %c0_284] : memref<2x1x4xf32, #tpu.memory_space<vmem>>, vector<1x1x4xf32>
    %648 = vector.shape_cast %647 : vector<1x1x4xf32> to vector<1x4xf32>
    %c1_285 = arith.constant 1 : index
    %c0_286 = arith.constant 0 : index
    %c0_287 = arith.constant 0 : index
    %649 = vector.load %arg25[%c1_285, %c0_286, %c0_287] : memref<2x1x1xf32, #tpu.memory_space<vmem>>, vector<1x1x1xf32>
    %650 = vector.shape_cast %649 : vector<1x1x1xf32> to vector<1x1xf32>
    %651 = vector.extract_strided_slice %638 {offsets = [0, 0], sizes = [4, 4], strides = [1, 1]} : vector<8x4xf32> to vector<4x4xf32>
    %652 = vector.shape_cast %638 : vector<8x4xf32> to vector<1x8x4xf32>
    %653 = vector.shape_cast %651 : vector<4x4xf32> to vector<4x1x4xf32>
    %654 = vector.broadcast %652 : vector<1x8x4xf32> to vector<4x8x4xf32>
    %655 = vector.broadcast %653 : vector<4x1x4xf32> to vector<4x8x4xf32>
    %656 = arith.subf %654, %655 : vector<4x8x4xf32>
    %657 = arith.mulf %656, %656 : vector<4x8x4xf32>
    %658 = vector.shape_cast %657 : vector<4x8x4xf32> to vector<32x4xf32>
    %cst_288 = arith.constant dense<0.000000e+00> : vector<32x8xf32>
    %659 = tpu.matmul %658, %640, %cst_288 {dimension_numbers = #tpu.dot_dimension_numbers<[1], [0], [0], [1], [0, 0, 1, 1], [], []>} : vector<32x4xf32>, vector<4x8xf32>, vector<32x8xf32> -> vector<32x8xf32>
    %660 = vector.broadcast %642 : vector<1x8xf32> to vector<32x8xf32>
    %661 = arith.addf %659, %660 : vector<32x8xf32>
    %cst_289 = arith.constant 0.000000e+00 : f32
    %662 = vector.broadcast %cst_289 : f32 to vector<32x8xf32>
    %663 = arith.cmpf oge, %661, %662 : vector<32x8xf32>
    %cst_290 = arith.constant 0.00999999977 : f32
    %664 = vector.broadcast %cst_290 : f32 to vector<32x8xf32>
    %665 = arith.mulf %664, %661 : vector<32x8xf32>
    %666 = arith.select %663, %661, %665 : vector<32x8xi1>, vector<32x8xf32>
    %cst_291 = arith.constant dense<0.000000e+00> : vector<32x4xf32>
    %667 = tpu.matmul %666, %644, %cst_291 {dimension_numbers = #tpu.dot_dimension_numbers<[1], [0], [0], [1], [0, 0, 1, 1], [], []>} : vector<32x8xf32>, vector<8x4xf32>, vector<32x4xf32> -> vector<32x4xf32>
    %668 = vector.broadcast %646 : vector<1x4xf32> to vector<32x4xf32>
    %669 = arith.addf %667, %668 : vector<32x4xf32>
    %cst_292 = arith.constant 0.000000e+00 : f32
    %670 = vector.broadcast %cst_292 : f32 to vector<32x4xf32>
    %671 = arith.cmpf oge, %669, %670 : vector<32x4xf32>
    %cst_293 = arith.constant 0.00999999977 : f32
    %672 = vector.broadcast %cst_293 : f32 to vector<32x4xf32>
    %673 = arith.mulf %672, %669 : vector<32x4xf32>
    %674 = arith.select %671, %669, %673 : vector<32x4xi1>, vector<32x4xf32>
    %675 = vector.extract_strided_slice %674 {offsets = [0, 0], sizes = [8, 4], strides = [1, 1]} : vector<32x4xf32> to vector<8x4xf32>
    %676 = vector.broadcast %648 : vector<1x4xf32> to vector<8x4xf32>
    %677 = arith.mulf %675, %676 : vector<8x4xf32>
    %cst_294 = arith.constant dense<0.000000e+00> : vector<8xf32>
    %678 = vector.multi_reduction <add>, %677, %cst_294 [1] : vector<8x4xf32> to vector<8xf32>
    %679 = vector.shape_cast %678 : vector<8xf32> to vector<8x1xf32>
    %680 = vector.broadcast %650 : vector<1x1xf32> to vector<8x1xf32>
    %681 = arith.addf %679, %680 : vector<8x1xf32>
    %682 = arith.negf %681 : vector<8x1xf32>
    %683 = math.exp %682 : vector<8x1xf32>
    %cst_295 = arith.constant 1.000000e+00 : f32
    %684 = vector.broadcast %cst_295 : f32 to vector<8x1xf32>
    %685 = arith.addf %684, %683 : vector<8x1xf32>
    %686 = arith.divf %684, %685 : vector<8x1xf32>
    %687 = vector.extract_strided_slice %657 {offsets = [0, 0, 0], sizes = [1, 8, 4], strides = [1, 1, 1]} : vector<4x8x4xf32> to vector<1x8x4xf32>
    %688 = vector.shape_cast %687 : vector<1x8x4xf32> to vector<8x4xf32>
    %cst_296 = arith.constant dense<0.000000e+00> : vector<8xf32>
    %689 = vector.multi_reduction <add>, %688, %cst_296 [1] : vector<8x4xf32> to vector<8xf32>
    %690 = vector.shape_cast %689 : vector<8xf32> to vector<8x1xf32>
    %cst_297 = arith.constant 0.000000e+00 : f32
    %691 = vector.broadcast %cst_297 : f32 to vector<8x1xf32>
    %692 = arith.subf %691, %690 : vector<8x1xf32>
    %cst_298 = arith.constant 5.000000e-01 : f32
    %693 = vector.broadcast %cst_298 : f32 to vector<8x1xf32>
    %694 = arith.mulf %692, %693 : vector<8x1xf32>
    %695 = vector.extract_strided_slice %674 {offsets = [8, 0], sizes = [8, 4], strides = [1, 1]} : vector<32x4xf32> to vector<8x4xf32>
    %696 = vector.broadcast %648 : vector<1x4xf32> to vector<8x4xf32>
    %697 = arith.mulf %695, %696 : vector<8x4xf32>
    %cst_299 = arith.constant dense<0.000000e+00> : vector<8xf32>
    %698 = vector.multi_reduction <add>, %697, %cst_299 [1] : vector<8x4xf32> to vector<8xf32>
    %699 = vector.shape_cast %698 : vector<8xf32> to vector<8x1xf32>
    %700 = vector.broadcast %650 : vector<1x1xf32> to vector<8x1xf32>
    %701 = arith.addf %699, %700 : vector<8x1xf32>
    %702 = arith.negf %701 : vector<8x1xf32>
    %703 = math.exp %702 : vector<8x1xf32>
    %cst_300 = arith.constant 1.000000e+00 : f32
    %704 = vector.broadcast %cst_300 : f32 to vector<8x1xf32>
    %705 = arith.addf %704, %703 : vector<8x1xf32>
    %706 = arith.divf %704, %705 : vector<8x1xf32>
    %707 = vector.extract_strided_slice %657 {offsets = [1, 0, 0], sizes = [1, 8, 4], strides = [1, 1, 1]} : vector<4x8x4xf32> to vector<1x8x4xf32>
    %708 = vector.shape_cast %707 : vector<1x8x4xf32> to vector<8x4xf32>
    %cst_301 = arith.constant dense<0.000000e+00> : vector<8xf32>
    %709 = vector.multi_reduction <add>, %708, %cst_301 [1] : vector<8x4xf32> to vector<8xf32>
    %710 = vector.shape_cast %709 : vector<8xf32> to vector<8x1xf32>
    %cst_302 = arith.constant 0.000000e+00 : f32
    %711 = vector.broadcast %cst_302 : f32 to vector<8x1xf32>
    %712 = arith.subf %711, %710 : vector<8x1xf32>
    %cst_303 = arith.constant 5.000000e-01 : f32
    %713 = vector.broadcast %cst_303 : f32 to vector<8x1xf32>
    %714 = arith.mulf %712, %713 : vector<8x1xf32>
    %715 = vector.extract_strided_slice %674 {offsets = [16, 0], sizes = [8, 4], strides = [1, 1]} : vector<32x4xf32> to vector<8x4xf32>
    %716 = vector.broadcast %648 : vector<1x4xf32> to vector<8x4xf32>
    %717 = arith.mulf %715, %716 : vector<8x4xf32>
    %cst_304 = arith.constant dense<0.000000e+00> : vector<8xf32>
    %718 = vector.multi_reduction <add>, %717, %cst_304 [1] : vector<8x4xf32> to vector<8xf32>
    %719 = vector.shape_cast %718 : vector<8xf32> to vector<8x1xf32>
    %720 = vector.broadcast %650 : vector<1x1xf32> to vector<8x1xf32>
    %721 = arith.addf %719, %720 : vector<8x1xf32>
    %722 = arith.negf %721 : vector<8x1xf32>
    %723 = math.exp %722 : vector<8x1xf32>
    %cst_305 = arith.constant 1.000000e+00 : f32
    %724 = vector.broadcast %cst_305 : f32 to vector<8x1xf32>
    %725 = arith.addf %724, %723 : vector<8x1xf32>
    %726 = arith.divf %724, %725 : vector<8x1xf32>
    %727 = vector.extract_strided_slice %657 {offsets = [2, 0, 0], sizes = [1, 8, 4], strides = [1, 1, 1]} : vector<4x8x4xf32> to vector<1x8x4xf32>
    %728 = vector.shape_cast %727 : vector<1x8x4xf32> to vector<8x4xf32>
    %cst_306 = arith.constant dense<0.000000e+00> : vector<8xf32>
    %729 = vector.multi_reduction <add>, %728, %cst_306 [1] : vector<8x4xf32> to vector<8xf32>
    %730 = vector.shape_cast %729 : vector<8xf32> to vector<8x1xf32>
    %cst_307 = arith.constant 0.000000e+00 : f32
    %731 = vector.broadcast %cst_307 : f32 to vector<8x1xf32>
    %732 = arith.subf %731, %730 : vector<8x1xf32>
    %cst_308 = arith.constant 5.000000e-01 : f32
    %733 = vector.broadcast %cst_308 : f32 to vector<8x1xf32>
    %734 = arith.mulf %732, %733 : vector<8x1xf32>
    %735 = vector.extract_strided_slice %674 {offsets = [24, 0], sizes = [8, 4], strides = [1, 1]} : vector<32x4xf32> to vector<8x4xf32>
    %736 = vector.broadcast %648 : vector<1x4xf32> to vector<8x4xf32>
    %737 = arith.mulf %735, %736 : vector<8x4xf32>
    %cst_309 = arith.constant dense<0.000000e+00> : vector<8xf32>
    %738 = vector.multi_reduction <add>, %737, %cst_309 [1] : vector<8x4xf32> to vector<8xf32>
    %739 = vector.shape_cast %738 : vector<8xf32> to vector<8x1xf32>
    %740 = vector.broadcast %650 : vector<1x1xf32> to vector<8x1xf32>
    %741 = arith.addf %739, %740 : vector<8x1xf32>
    %742 = arith.negf %741 : vector<8x1xf32>
    %743 = math.exp %742 : vector<8x1xf32>
    %cst_310 = arith.constant 1.000000e+00 : f32
    %744 = vector.broadcast %cst_310 : f32 to vector<8x1xf32>
    %745 = arith.addf %744, %743 : vector<8x1xf32>
    %746 = arith.divf %744, %745 : vector<8x1xf32>
    %747 = vector.extract_strided_slice %657 {offsets = [3, 0, 0], sizes = [1, 8, 4], strides = [1, 1, 1]} : vector<4x8x4xf32> to vector<1x8x4xf32>
    %748 = vector.shape_cast %747 : vector<1x8x4xf32> to vector<8x4xf32>
    %cst_311 = arith.constant dense<0.000000e+00> : vector<8xf32>
    %749 = vector.multi_reduction <add>, %748, %cst_311 [1] : vector<8x4xf32> to vector<8xf32>
    %750 = vector.shape_cast %749 : vector<8xf32> to vector<8x1xf32>
    %cst_312 = arith.constant 0.000000e+00 : f32
    %751 = vector.broadcast %cst_312 : f32 to vector<8x1xf32>
    %752 = arith.subf %751, %750 : vector<8x1xf32>
    %cst_313 = arith.constant 5.000000e-01 : f32
    %753 = vector.broadcast %cst_313 : f32 to vector<8x1xf32>
    %754 = arith.mulf %752, %753 : vector<8x1xf32>
    %755 = tpu.concatenate %686, %706, %726, %746 in 1 : vector<8x1xf32>, vector<8x1xf32>, vector<8x1xf32>, vector<8x1xf32> -> vector<8x4xf32>
    %756 = tpu.concatenate %694, %714, %734, %754 in 1 : vector<8x1xf32>, vector<8x1xf32>, vector<8x1xf32>, vector<8x1xf32> -> vector<8x4xf32>
    %cst_314 = arith.constant 1.000000e+00 : f32
    %757 = vector.broadcast %cst_314 : f32 to vector<8x4xf32>
    %758 = arith.subf %757, %12 : vector<8x4xf32>
    %759 = arith.mulf %415, %758 : vector<8x4xf32>
    %cst_315 = arith.constant dense<0.000000e+00> : vector<8xf32>
    %760 = vector.multi_reduction <add>, %759, %cst_315 [1] : vector<8x4xf32> to vector<8xf32>
    %761 = vector.shape_cast %760 : vector<8xf32> to vector<8x1xf32>
    %762 = arith.mulf %755, %759 : vector<8x4xf32>
    %763 = math.absf %762 : vector<8x4xf32>
    %cst_316 = arith.constant dense<0.000000e+00> : vector<8xf32>
    %764 = vector.multi_reduction <add>, %763, %cst_316 [1] : vector<8x4xf32> to vector<8xf32>
    %765 = vector.shape_cast %764 : vector<8xf32> to vector<8x1xf32>
    %cst_317 = arith.constant 9.99999996E-13 : f32
    %766 = vector.broadcast %cst_317 : f32 to vector<8x1xf32>
    %767 = arith.maximumf %765, %766 : vector<8x1xf32>
    %768 = tpu.reciprocal %767 {approx = true} : vector<8x1xf32> -> vector<8x1xf32>
    %769 = vector.broadcast %768 : vector<8x1xf32> to vector<8x4xf32>
    %770 = arith.mulf %762, %769 : vector<8x4xf32>
    %771 = vector.broadcast %761 : vector<8x1xf32> to vector<8x4xf32>
    %772 = arith.mulf %770, %771 : vector<8x4xf32>
    %773 = arith.addf %772, %12 : vector<8x4xf32>
    %cst_318 = arith.constant 9.99999997E-7 : f32
    %774 = vector.broadcast %cst_318 : f32 to vector<8x4xf32>
    %775 = arith.addf %773, %774 : vector<8x4xf32>
    %cst_319 = arith.constant dense<0.000000e+00> : vector<8xf32>
    %776 = vector.multi_reduction <add>, %775, %cst_319 [1] : vector<8x4xf32> to vector<8xf32>
    %777 = vector.shape_cast %776 : vector<8xf32> to vector<8x1xf32>
    %778 = tpu.reciprocal %777 {approx = true} : vector<8x1xf32> -> vector<8x1xf32>
    %779 = vector.broadcast %778 : vector<8x1xf32> to vector<8x4xf32>
    %780 = arith.mulf %775, %779 : vector<8x4xf32>
    %cst_320 = arith.constant 1.000000e+00 : f32
    %781 = vector.broadcast %cst_320 : f32 to vector<8x4xf32>
    %782 = arith.subf %781, %12 : vector<8x4xf32>
    %783 = arith.mulf %780, %782 : vector<8x4xf32>
    %784 = math.absf %783 : vector<8x4xf32>
    %cst_321 = arith.constant dense<0.000000e+00> : vector<8xf32>
    %785 = vector.multi_reduction <add>, %784, %cst_321 [1] : vector<8x4xf32> to vector<8xf32>
    %786 = vector.shape_cast %785 : vector<8xf32> to vector<8x1xf32>
    %cst_322 = arith.constant 9.99999996E-13 : f32
    %787 = vector.broadcast %cst_322 : f32 to vector<8x1xf32>
    %788 = arith.maximumf %786, %787 : vector<8x1xf32>
    %789 = tpu.reciprocal %788 {approx = true} : vector<8x1xf32> -> vector<8x1xf32>
    %790 = vector.broadcast %789 : vector<8x1xf32> to vector<8x4xf32>
    %791 = arith.mulf %783, %790 : vector<8x4xf32>
    %792 = vector.extract_strided_slice %460 {offsets = [0, 0], sizes = [4, 32], strides = [1, 1]} : vector<8x32xf32> to vector<4x32xf32>
    %cst_323 = arith.constant dense<0.000000e+00> : vector<8x32xf32>
    %793 = tpu.matmul %791, %792, %cst_323 {dimension_numbers = #tpu.dot_dimension_numbers<[1], [0], [0], [1], [0, 0, 1, 1], [], []>} : vector<8x4xf32>, vector<4x32xf32>, vector<8x32xf32> -> vector<8x32xf32>
    %cst_324 = arith.constant dense<0.000000e+00> : vector<4x32xf32>
    %794 = tpu.matmul %791, %460, %cst_324 {dimension_numbers = #tpu.dot_dimension_numbers<[0], [0], [1], [1], [0, 1, 1, 1], [], []>} : vector<8x4xf32>, vector<8x32xf32>, vector<4x32xf32> -> vector<4x32xf32>
    %c0_325 = arith.constant 0 : index
    %c0_326 = arith.constant 0 : index
    %795 = vector.load %arg35[%c0_325, %c0_326] : memref<8x32xf32, #tpu.memory_space<vmem>>, vector<8x32xf32>
    tpu.vector_store %arg35[%c0_325, %c0_326], %793 {strides = array<i32>} : memref<8x32xf32, #tpu.memory_space<vmem>>, vector<8x32xf32>,
    %c0_327 = arith.constant 0 : index
    %c0_328 = arith.constant 0 : index
    %796 = vector.load %arg35[%c0_327, %c0_328] : memref<8x32xf32, #tpu.memory_space<vmem>>, vector<4x32xf32>
    tpu.vector_store %arg35[%c0_327, %c0_328], %794 {strides = array<i32>} : memref<8x32xf32, #tpu.memory_space<vmem>>, vector<4x32xf32>,
    %cst_329 = arith.constant 1.000000e+00 : f32
    %797 = vector.broadcast %cst_329 : f32 to vector<8x4xf32>
    %798 = arith.mulf %622, %797 : vector<8x4xf32>
    %c1_330 = arith.constant 1 : index
    %c0_331 = arith.constant 0 : index
    %c0_332 = arith.constant 0 : index
    %c0_333 = arith.constant 0 : index
    %799 = vector.load %arg31[%c1_330, %c0_331, %c0_332, %c0_333] : memref<2x1x8x4xf32, #tpu.memory_space<vmem>>, vector<1x1x8x4xf32>
    %800 = vector.shape_cast %799 : vector<1x1x8x4xf32> to vector<8x4xf32>
    %801 = vector.shape_cast %798 : vector<8x4xf32> to vector<1x1x8x4xf32>
    tpu.vector_store %arg31[%c1_330, %c0_331, %c0_332, %c0_333], %801 {strides = array<i32>} : memref<2x1x8x4xf32, #tpu.memory_space<vmem>>, vector<1x1x8x4xf32>,
    %cst_334 = arith.constant 1.000000e+00 : f32
    %802 = vector.broadcast %cst_334 : f32 to vector<8x4xf32>
    %803 = arith.mulf %598, %802 : vector<8x4xf32>
    %c1_335 = arith.constant 1 : index
    %c0_336 = arith.constant 0 : index
    %c0_337 = arith.constant 0 : index
    %c0_338 = arith.constant 0 : index
    %804 = vector.load %arg32[%c1_335, %c0_336, %c0_337, %c0_338] : memref<2x1x8x4xf32, #tpu.memory_space<vmem>>, vector<1x1x8x4xf32>
    %805 = vector.shape_cast %804 : vector<1x1x8x4xf32> to vector<8x4xf32>
    %806 = vector.shape_cast %803 : vector<8x4xf32> to vector<1x1x8x4xf32>
    tpu.vector_store %arg32[%c1_335, %c0_336, %c0_337, %c0_338], %806 {strides = array<i32>} : memref<2x1x8x4xf32, #tpu.memory_space<vmem>>, vector<1x1x8x4xf32>,
    %cst_339 = arith.constant 1.000000e+00 : f32
    %807 = vector.broadcast %cst_339 : f32 to vector<8x4xf32>
    %808 = arith.mulf %780, %807 : vector<8x4xf32>
    %c1_340 = arith.constant 1 : index
    %c0_341 = arith.constant 0 : index
    %c0_342 = arith.constant 0 : index
    %c0_343 = arith.constant 0 : index
    %809 = vector.load %arg33[%c1_340, %c0_341, %c0_342, %c0_343] : memref<2x1x8x4xf32, #tpu.memory_space<vmem>>, vector<1x1x8x4xf32>
    %810 = vector.shape_cast %809 : vector<1x1x8x4xf32> to vector<8x4xf32>
    %811 = vector.shape_cast %808 : vector<8x4xf32> to vector<1x1x8x4xf32>
    tpu.vector_store %arg33[%c1_340, %c0_341, %c0_342, %c0_343], %811 {strides = array<i32>} : memref<2x1x8x4xf32, #tpu.memory_space<vmem>>, vector<1x1x8x4xf32>,
    %cst_344 = arith.constant 1.000000e+00 : f32
    %812 = vector.broadcast %cst_344 : f32 to vector<8x4xf32>
    %813 = arith.mulf %756, %812 : vector<8x4xf32>
    %c1_345 = arith.constant 1 : index
    %c0_346 = arith.constant 0 : index
    %c0_347 = arith.constant 0 : index
    %c0_348 = arith.constant 0 : index
    %814 = vector.load %arg34[%c1_345, %c0_346, %c0_347, %c0_348] : memref<2x1x8x4xf32, #tpu.memory_space<vmem>>, vector<1x1x8x4xf32>
    %815 = vector.shape_cast %814 : vector<1x1x8x4xf32> to vector<8x4xf32>
    %816 = vector.shape_cast %813 : vector<8x4xf32> to vector<1x1x8x4xf32>
    tpu.vector_store %arg34[%c1_345, %c0_346, %c0_347, %c0_348], %816 {strides = array<i32>} : memref<2x1x8x4xf32, #tpu.memory_space<vmem>>, vector<1x1x8x4xf32>,
    return
  }
  func.func @transform_0(%arg0: i32) -> (i32, i32, i32) {
    %c0_i32 = arith.constant 0 : i32
    %c0_i32_0 = arith.constant 0 : i32
    %c0_i32_1 = arith.constant 0 : i32
    return %arg0, %c0_i32, %c0_i32_0 : i32, i32, i32
  }
  func.func @transform_1(%arg0: i32) -> (i32, i32, i32) {
    %c0_i32 = arith.constant 0 : i32
    %c0_i32_0 = arith.constant 0 : i32
    %c0_i32_1 = arith.constant 0 : i32
    return %arg0, %c0_i32, %c0_i32_0 : i32, i32, i32
  }
  func.func @transform_2(%arg0: i32) -> (i32, i32, i32) {
    %c0_i32 = arith.constant 0 : i32
    %c0_i32_0 = arith.constant 0 : i32
    %c0_i32_1 = arith.constant 0 : i32
    return %arg0, %c0_i32, %c0_i32_0 : i32, i32, i32
  }
  func.func @transform_3(%arg0: i32) -> (i32, i32, i32) {
    %c0_i32 = arith.constant 0 : i32
    %c0_i32_0 = arith.constant 0 : i32
    %c0_i32_1 = arith.constant 0 : i32
    return %arg0, %c0_i32, %c0_i32_0 : i32, i32, i32
  }
  func.func @transform_4(%arg0: i32) -> (i32, i32) {
    %c0_i32 = arith.constant 0 : i32
    %c0_i32_0 = arith.constant 0 : i32
    %c0_i32_1 = arith.constant 0 : i32
    return %c0_i32, %c0_i32_0 : i32, i32
  }
  func.func @transform_5(%arg0: i32) -> (i32, i32) {
    %c0_i32 = arith.constant 0 : i32
    %c0_i32_0 = arith.constant 0 : i32
    %c0_i32_1 = arith.constant 0 : i32
    return %c0_i32, %c0_i32_0 : i32, i32
  }
  func.func @transform_6(%arg0: i32) -> (i32, i32) {
    %c0_i32 = arith.constant 0 : i32
    %c0_i32_0 = arith.constant 0 : i32
    %c0_i32_1 = arith.constant 0 : i32
    return %c0_i32, %c0_i32_0 : i32, i32
  }
  func.func @transform_7(%arg0: i32) -> (i32, i32) {
    %c0_i32 = arith.constant 0 : i32
    %c0_i32_0 = arith.constant 0 : i32
    %c0_i32_1 = arith.constant 0 : i32
    return %c0_i32, %c0_i32_0 : i32, i32
  }
  func.func @transform_8(%arg0: i32) -> (i32, i32) {
    %c0_i32 = arith.constant 0 : i32
    %c0_i32_0 = arith.constant 0 : i32
    %c0_i32_1 = arith.constant 0 : i32
    return %c0_i32, %c0_i32_0 : i32, i32
  }
  func.func @transform_9(%arg0: i32) -> (i32, i32) {
    %c0_i32 = arith.constant 0 : i32
    %c0_i32_0 = arith.constant 0 : i32
    %c0_i32_1 = arith.constant 0 : i32
    return %c0_i32, %c0_i32_0 : i32, i32
  }
  func.func @transform_10(%arg0: i32) -> (i32, i32, i32) {
    %c0_i32 = arith.constant 0 : i32
    %c0_i32_0 = arith.constant 0 : i32
    %c0_i32_1 = arith.constant 0 : i32
    %c0_i32_2 = arith.constant 0 : i32
    return %c0_i32, %c0_i32_0, %c0_i32_1 : i32, i32, i32
  }
  func.func @transform_11(%arg0: i32) -> (i32, i32, i32) {
    %c0_i32 = arith.constant 0 : i32
    %c0_i32_0 = arith.constant 0 : i32
    %c0_i32_1 = arith.constant 0 : i32
    %c0_i32_2 = arith.constant 0 : i32
    return %c0_i32, %c0_i32_0, %c0_i32_1 : i32, i32, i32
  }
  func.func @transform_12(%arg0: i32) -> (i32, i32, i32) {
    %c0_i32 = arith.constant 0 : i32
    %c0_i32_0 = arith.constant 0 : i32
    %c0_i32_1 = arith.constant 0 : i32
    %c0_i32_2 = arith.constant 0 : i32
    return %c0_i32, %c0_i32_0, %c0_i32_1 : i32, i32, i32
  }
  func.func @transform_13(%arg0: i32) -> (i32, i32, i32) {
    %c0_i32 = arith.constant 0 : i32
    %c0_i32_0 = arith.constant 0 : i32
    %c0_i32_1 = arith.constant 0 : i32
    %c0_i32_2 = arith.constant 0 : i32
    return %c0_i32, %c0_i32_0, %c0_i32_1 : i32, i32, i32
  }
  func.func @transform_14(%arg0: i32) -> (i32, i32, i32) {
    %c0_i32 = arith.constant 0 : i32
    %c0_i32_0 = arith.constant 0 : i32
    %c0_i32_1 = arith.constant 0 : i32
    %c0_i32_2 = arith.constant 0 : i32
    return %c0_i32, %c0_i32_0, %c0_i32_1 : i32, i32, i32
  }
  func.func @transform_15(%arg0: i32) -> (i32, i32, i32) {
    %c0_i32 = arith.constant 0 : i32
    %c0_i32_0 = arith.constant 0 : i32
    %c0_i32_1 = arith.constant 0 : i32
    %c0_i32_2 = arith.constant 0 : i32
    return %c0_i32, %c0_i32_0, %c0_i32_1 : i32, i32, i32
  }
  func.func @transform_16(%arg0: i32) -> (i32, i32, i32) {
    %c0_i32 = arith.constant 0 : i32
    %c0_i32_0 = arith.constant 0 : i32
    %c0_i32_1 = arith.constant 0 : i32
    %c0_i32_2 = arith.constant 0 : i32
    return %c0_i32, %c0_i32_0, %c0_i32_1 : i32, i32, i32
  }
  func.func @transform_17(%arg0: i32) -> (i32, i32, i32) {
    %c0_i32 = arith.constant 0 : i32
    %c0_i32_0 = arith.constant 0 : i32
    %c0_i32_1 = arith.constant 0 : i32
    %c0_i32_2 = arith.constant 0 : i32
    return %c0_i32, %c0_i32_0, %c0_i32_1 : i32, i32, i32
  }
  func.func @transform_18(%arg0: i32) -> (i32, i32, i32) {
    %c0_i32 = arith.constant 0 : i32
    %c0_i32_0 = arith.constant 0 : i32
    %c0_i32_1 = arith.constant 0 : i32
    %c0_i32_2 = arith.constant 0 : i32
    return %c0_i32, %c0_i32_0, %c0_i32_1 : i32, i32, i32
  }
  func.func @transform_19(%arg0: i32) -> (i32, i32, i32) {
    %c0_i32 = arith.constant 0 : i32
    %c0_i32_0 = arith.constant 0 : i32
    %c0_i32_1 = arith.constant 0 : i32
    %c0_i32_2 = arith.constant 0 : i32
    return %c0_i32, %c0_i32_0, %c0_i32_1 : i32, i32, i32
  }
  func.func @transform_20(%arg0: i32) -> (i32, i32, i32) {
    %c0_i32 = arith.constant 0 : i32
    %c0_i32_0 = arith.constant 0 : i32
    %c0_i32_1 = arith.constant 0 : i32
    %c0_i32_2 = arith.constant 0 : i32
    return %c0_i32, %c0_i32_0, %c0_i32_1 : i32, i32, i32
  }
  func.func @transform_21(%arg0: i32) -> (i32, i32, i32) {
    %c0_i32 = arith.constant 0 : i32
    %c0_i32_0 = arith.constant 0 : i32
    %c0_i32_1 = arith.constant 0 : i32
    %c0_i32_2 = arith.constant 0 : i32
    return %c0_i32, %c0_i32_0, %c0_i32_1 : i32, i32, i32
  }
  func.func @transform_22(%arg0: i32) -> (i32, i32, i32) {
    %c0_i32 = arith.constant 0 : i32
    %c0_i32_0 = arith.constant 0 : i32
    %c0_i32_1 = arith.constant 0 : i32
    %c0_i32_2 = arith.constant 0 : i32
    return %c0_i32, %c0_i32_0, %c0_i32_1 : i32, i32, i32
  }
  func.func @transform_23(%arg0: i32) -> (i32, i32, i32) {
    %c0_i32 = arith.constant 0 : i32
    %c0_i32_0 = arith.constant 0 : i32
    %c0_i32_1 = arith.constant 0 : i32
    %c0_i32_2 = arith.constant 0 : i32
    return %c0_i32, %c0_i32_0, %c0_i32_1 : i32, i32, i32
  }
  func.func @transform_24(%arg0: i32) -> (i32, i32, i32) {
    %c0_i32 = arith.constant 0 : i32
    %c0_i32_0 = arith.constant 0 : i32
    %c0_i32_1 = arith.constant 0 : i32
    %c0_i32_2 = arith.constant 0 : i32
    return %c0_i32, %c0_i32_0, %c0_i32_1 : i32, i32, i32
  }
  func.func @transform_25(%arg0: i32) -> (i32, i32, i32) {
    %c0_i32 = arith.constant 0 : i32
    %c0_i32_0 = arith.constant 0 : i32
    %c0_i32_1 = arith.constant 0 : i32
    %c0_i32_2 = arith.constant 0 : i32
    return %c0_i32, %c0_i32_0, %c0_i32_1 : i32, i32, i32
  }
  func.func @transform_26(%arg0: i32) -> (i32, i32, i32) {
    %c0_i32 = arith.constant 0 : i32
    %c0_i32_0 = arith.constant 0 : i32
    %c0_i32_1 = arith.constant 0 : i32
    %c0_i32_2 = arith.constant 0 : i32
    return %c0_i32, %c0_i32_0, %c0_i32_1 : i32, i32, i32
  }
  func.func @transform_27(%arg0: i32) -> (i32, i32, i32) {
    %c0_i32 = arith.constant 0 : i32
    %c0_i32_0 = arith.constant 0 : i32
    %c0_i32_1 = arith.constant 0 : i32
    %c0_i32_2 = arith.constant 0 : i32
    return %c0_i32, %c0_i32_0, %c0_i32_1 : i32, i32, i32
  }
  func.func @transform_28(%arg0: i32) -> (i32, i32, i32) {
    %c0_i32 = arith.constant 0 : i32
    %c0_i32_0 = arith.constant 0 : i32
    %c0_i32_1 = arith.constant 0 : i32
    %c0_i32_2 = arith.constant 0 : i32
    return %c0_i32, %c0_i32_0, %c0_i32_1 : i32, i32, i32
  }
  func.func @transform_29(%arg0: i32) -> (i32, i32, i32) {
    %c0_i32 = arith.constant 0 : i32
    %c0_i32_0 = arith.constant 0 : i32
    %c0_i32_1 = arith.constant 0 : i32
    %c0_i32_2 = arith.constant 0 : i32
    return %c0_i32, %c0_i32_0, %c0_i32_1 : i32, i32, i32
  }
  func.func @transform_30(%arg0: i32) -> (i32, i32, i32, i32) {
    %c0_i32 = arith.constant 0 : i32
    %c0_i32_0 = arith.constant 0 : i32
    %c0_i32_1 = arith.constant 0 : i32
    %c0_i32_2 = arith.constant 0 : i32
    return %c0_i32, %arg0, %c0_i32_0, %c0_i32_1 : i32, i32, i32, i32
  }
  func.func @transform_31(%arg0: i32) -> (i32, i32, i32, i32) {
    %c0_i32 = arith.constant 0 : i32
    %c0_i32_0 = arith.constant 0 : i32
    %c0_i32_1 = arith.constant 0 : i32
    %c0_i32_2 = arith.constant 0 : i32
    return %c0_i32, %arg0, %c0_i32_0, %c0_i32_1 : i32, i32, i32, i32
  }
  func.func @transform_32(%arg0: i32) -> (i32, i32, i32, i32) {
    %c0_i32 = arith.constant 0 : i32
    %c0_i32_0 = arith.constant 0 : i32
    %c0_i32_1 = arith.constant 0 : i32
    %c0_i32_2 = arith.constant 0 : i32
    return %c0_i32, %arg0, %c0_i32_0, %c0_i32_1 : i32, i32, i32, i32
  }
  func.func @transform_33(%arg0: i32) -> (i32, i32, i32, i32) {
    %c0_i32 = arith.constant 0 : i32
    %c0_i32_0 = arith.constant 0 : i32
    %c0_i32_1 = arith.constant 0 : i32
    %c0_i32_2 = arith.constant 0 : i32
    return %c0_i32, %arg0, %c0_i32_0, %c0_i32_1 : i32, i32, i32, i32
  }
}

</mosaic_0001>

<llo_original>
// kernel: tpu_custom_call.1
$region0: #{tpu_custom_call.1}
  #allocation0 [shape = 'u32[]', space=smem, size = 0x4, offset = 0x4, fixed_abs, tag = 'smem constant byte address 0x4 - core index']
  #allocation1 [shape = 'u32[144,128]{1,0:T(1,128)}', space=vmem, size = 0x12000, scoped, tag = 'internal scratch']
  #allocation2 [shape = 'f32[8,32]{1,0:T(8,128)}', space=vmem, size = 0x1000, scoped, tag = 'scratch operand']
  #allocation3 [shape = 'f32[1,1]{1,0:T(1,128)S(1)}', space=vmem, size = 0x200, scoped, tag = 'scoped memory for tpu_custom_call.1']
  %s0 = inlined_call_operand.smem [shape: u32[34], index: -1, kind: input, shape index: {}]
  %s1 = sld [smem:[%s0]]
  %s2 = scalar_lea.smem %s0, 1
  %s3 = sld [smem:[%s2]]
  %s4 = scalar_lea.smem %s0, 2
  %s5 = sld [smem:[%s4]]
  %s6 = scalar_lea.smem %s0, 3
  %s7 = sld [smem:[%s6]]
  %s8 = scalar_lea.smem %s0, 4
  %s9 = sld [smem:[%s8]]
  %s10 = scalar_lea.smem %s0, 5
  %s11 = sld [smem:[%s10]]
  %s12 = scalar_lea.smem %s0, 6
  %s13 = sld [smem:[%s12]]
  %s14 = scalar_lea.smem %s0, 7
  %s15 = sld [smem:[%s14]]
  %s16 = scalar_lea.smem %s0, 8
  %s17 = sld [smem:[%s16]]
  %s18 = scalar_lea.smem %s0, 9
  %s19 = sld [smem:[%s18]]
  %s20 = scalar_lea.smem %s0, 10
  %s21 = sld [smem:[%s20]]
  %s22 = scalar_lea.smem %s0, 11
  %s23 = sld [smem:[%s22]]
  %s24 = scalar_lea.smem %s0, 12
  %s25 = sld [smem:[%s24]]
  %s26 = scalar_lea.smem %s0, 13
  %s27 = sld [smem:[%s26]]
  %s28 = scalar_lea.smem %s0, 14
  %s29 = sld [smem:[%s28]]
  %s30 = scalar_lea.smem %s0, 15
  %s31 = sld [smem:[%s30]]
  %s32 = scalar_lea.smem %s0, 16
  %s33 = sld [smem:[%s32]]
  %s34 = scalar_lea.smem %s0, 17
  %s35 = sld [smem:[%s34]]
  %s36 = scalar_lea.smem %s0, 18
  %s37 = sld [smem:[%s36]]
  %s38 = scalar_lea.smem %s0, 19
  %s39 = sld [smem:[%s38]]
  %s40 = scalar_lea.smem %s0, 20
  %s41 = sld [smem:[%s40]]
  %s42 = scalar_lea.smem %s0, 21
  %s43 = sld [smem:[%s42]]
  %s44 = scalar_lea.smem %s0, 22
  %s45 = sld [smem:[%s44]]
  %s46 = scalar_lea.smem %s0, 23
  %s47 = sld [smem:[%s46]]
  %s48 = scalar_lea.smem %s0, 24
  %s49 = sld [smem:[%s48]]
  %s50 = scalar_lea.smem %s0, 25
  %s51 = sld [smem:[%s50]]
  %s52 = scalar_lea.smem %s0, 26
  %s53 = sld [smem:[%s52]]
  %s54 = scalar_lea.smem %s0, 27
  %s55 = sld [smem:[%s54]]
  %s56 = scalar_lea.smem %s0, 28
  %s57 = sld [smem:[%s56]]
  %s58 = scalar_lea.smem %s0, 29
  %s59 = sld [smem:[%s58]]
  %s60 = scalar_lea.smem %s0, 30
  %s61 = sld [smem:[%s60]]
  %s62 = scalar_lea.smem %s0, 31
  %s63 = sld [smem:[%s62]]
  %s64 = scalar_lea.smem %s0, 32
  %s65 = sld [smem:[%s64]]
  %s66 = scalar_lea.smem %s0, 33
  %s67 = sld [smem:[%s66]]
  %68 = xla_tuple %s61, %s63, %s65, %s67
  %s69 = sld [smem:[#allocation0]]
  $region313: #{tpu_custom_call.1} parent=0
    _
  %s71 = ssub.s32 1, %s69
  %s72 = scalar_select 0, %s71, %s69
  %v73 = vstv %s19
  %74 = vst [vmem:[#allocation3] sm:$0x1] %v73
  $region1: #{tpu_custom_call.1} parent=0
    #allocation4 [shape = 'u8[16384]{0}', space=vmem, size = 0x4000, scoped, tag = 'output window, operand 0']
    #allocation5 [shape = 'u8[16384]{0}', space=vmem, size = 0x4000, scoped, tag = 'output window, operand 1']
    #allocation6 [shape = 'u8[16384]{0}', space=vmem, size = 0x4000, scoped, tag = 'output window, operand 2']
    #allocation7 [shape = 'u8[16384]{0}', space=vmem, size = 0x4000, scoped, tag = 'output window, operand 3']
    loop: start=0, step=1, limit=4
    $region2: #{tpu_custom_call.1} parent=1 // loop_pre_header
      _
    $region3: #{tpu_custom_call.1} parent=1 // loop_header
      %s76 = sphi 0, %s80
      %p77 = scmp.ge.s32.totalorder %s76, 4
      %s86 = sphi 0, %s88
      %s89 = sphi 0, %s86
      %s90 = sphi 0, %s89
      %s106 = sphi 0, %s90
      %s112 = sphi 0, %s114
      %s115 = sphi 0, %s112
      %s116 = sphi 0, %s115
      %s132 = sphi 0, %s116
      %s138 = sphi 0, %s140
      %s141 = sphi 0, %s138
      %s142 = sphi 0, %s141
      %s158 = sphi 0, %s142
      %s164 = sphi 0, %s166
      %s167 = sphi 0, %s164
      %s168 = sphi 0, %s167
      %s184 = sphi 0, %s168
      %s188 = sphi 0, %s188
      %s190 = sphi 0, %s188
      %s191 = sphi 0, %s190
      %s205 = sphi 0, %s191
      %s209 = sphi 0, %s209
      %s211 = sphi 0, %s209
      %s212 = sphi 0, %s211
      %s226 = sphi 0, %s212
      %s230 = sphi 0, %s230
      %s232 = sphi 0, %s230
      %s233 = sphi 0, %s232
      %s247 = sphi 0, %s233
      %s251 = sphi 0, %s251
      %s253 = sphi 0, %s251
      %s254 = sphi 0, %s253
      %s268 = sphi 0, %s254
      %s272 = sphi 0, %s272
      %s274 = sphi 0, %s272
      %s275 = sphi 0, %s274
      %s289 = sphi 0, %s275
      %s293 = sphi 0, %s293
      %s295 = sphi 0, %s293
      %s296 = sphi 0, %s295
      %s310 = sphi 0, %s296
      %s314 = sphi 0, %s314
      %s316 = sphi 0, %s314
      %s317 = sphi 0, %s316
      %s331 = sphi 0, %s317
      %s335 = sphi 0, %s335
      %s337 = sphi 0, %s335
      %s338 = sphi 0, %s337
      %s352 = sphi 0, %s338
      %s356 = sphi 0, %s356
      %s358 = sphi 0, %s356
      %s359 = sphi 0, %s358
      %s373 = sphi 0, %s359
      %s377 = sphi 0, %s377
      %s379 = sphi 0, %s377
      %s380 = sphi 0, %s379
      %s394 = sphi 0, %s380
      %s398 = sphi 0, %s398
      %s400 = sphi 0, %s398
      %s401 = sphi 0, %s400
      %s415 = sphi 0, %s401
      %s419 = sphi 0, %s419
      %s421 = sphi 0, %s419
      %s422 = sphi 0, %s421
      %s436 = sphi 0, %s422
      %s440 = sphi 0, %s440
      %s442 = sphi 0, %s440
      %s443 = sphi 0, %s442
      %s457 = sphi 0, %s443
      %s461 = sphi 0, %s461
      %s463 = sphi 0, %s461
      %s464 = sphi 0, %s463
      %s478 = sphi 0, %s464
      %s482 = sphi 0, %s482
      %s484 = sphi 0, %s482
      %s485 = sphi 0, %s484
      %s499 = sphi 0, %s485
      %s503 = sphi 0, %s503
      %s505 = sphi 0, %s503
      %s506 = sphi 0, %s505
      %s520 = sphi 0, %s506
      %s524 = sphi 0, %s524
      %s526 = sphi 0, %s524
      %s527 = sphi 0, %s526
      %s541 = sphi 0, %s527
      %s545 = sphi 0, %s545
      %s547 = sphi 0, %s545
      %s548 = sphi 0, %s547
      %s562 = sphi 0, %s548
      %s566 = sphi 0, %s566
      %s568 = sphi 0, %s566
      %s569 = sphi 0, %s568
      %s583 = sphi 0, %s569
      %s587 = sphi 0, %s587
      %s589 = sphi 0, %s587
      %s590 = sphi 0, %s589
      %s604 = sphi 0, %s590
      %s608 = sphi 0, %s608
      %s610 = sphi 0, %s608
      %s611 = sphi 0, %s610
      %s625 = sphi 0, %s611
      %s629 = sphi 0, %s629
      %s631 = sphi 0, %s629
      %s632 = sphi 0, %s631
      %s646 = sphi 0, %s632
      %s650 = sphi 0, %s650
      %s652 = sphi 0, %s650
      %s653 = sphi 0, %s652
      %s667 = sphi 0, %s653
      %s671 = sphi 0, %s671
      %s673 = sphi 0, %s671
      %s674 = sphi 0, %s673
      %s688 = sphi 0, %s674
      %s692 = sphi 0, %s692
      %s694 = sphi 0, %s692
      %s695 = sphi 0, %s694
      %s709 = sphi 0, %s695
      %s713 = sphi 0, %s713
      %s715 = sphi 0, %s713
      %s716 = sphi 0, %s715
      %s730 = sphi 0, %s716
      %s736 = sphi 0, %s738
      %s739 = sphi 0, %s736
      %s740 = sphi 0, %s739
      %s756 = sphi 0, %s740
      %s762 = sphi 0, %s764
      %s765 = sphi 0, %s762
      %s766 = sphi 0, %s765
      %s782 = sphi 0, %s766
      %s788 = sphi 0, %s790
      %s791 = sphi 0, %s788
      %s792 = sphi 0, %s791
      %s808 = sphi 0, %s792
      %s814 = sphi 0, %s816
      %s817 = sphi 0, %s814
      %s818 = sphi 0, %s817
      %s834 = sphi 0, %s818
    $region4: #{tpu_custom_call.1} parent=1 // loop_header_branch
      %79 = sbr.rel (%p77) target = $region8
    $region5: #{tpu_custom_call.1} parent=1 // loop_body
      %s81 = ssub.s32 %s76, 1
      %s82 = ssub.s32 %s76, 2
      %s83 = sadd.s32 %s76, 1
      %s84 = ssub.s32 %s76, %s83
      %p85 = scmp.eq.s32.totalorder %s84, 0
      %s87 = sadd.s32 %s86, 1
      %s88 = scalar_select %p85, %s86, %s87
      %p91 = pneg %p85
      %p92 = scmp.eq.s32.totalorder %s76, 1
      %p93 = por %p91, %p92
      %p94 = scmp.ne.s32.totalorder %s86, %s89
      %p95 = scmp.eq.s32.totalorder %s76, 0
      %p96 = por %p94, %p95
      %p97 = scmp.ne.s32.totalorder %s86, %s89
      %p98 = scmp.eq.s32.totalorder %s81, 1
      %p99 = por %p97, %p98
      %p100 = scmp.ne.s32.totalorder %s89, %s90
      %p101 = scmp.eq.s32.totalorder %s81, 0
      %p102 = por %p100, %p101
      %p103 = scmp.ne.s32.totalorder %s89, %s90
      %p104 = scmp.eq.s32.totalorder %s82, 1
      %p105 = por %p103, %p104
      %p107 = scmp.ne.s32.totalorder %s90, %s106
      %p108 = scmp.eq.s32.totalorder %s82, 0
      %p109 = por %p107, %p108
      %s110 = ssub.s32 %s76, %s83
      %p111 = scmp.eq.s32.totalorder %s110, 0
      %s113 = sadd.s32 %s112, 1
      %s114 = scalar_select %p111, %s112, %s113
      %p117 = pneg %p111
      %p118 = scmp.eq.s32.totalorder %s76, 1
      %p119 = por %p117, %p118
      %p120 = scmp.ne.s32.totalorder %s112, %s115
      %p121 = scmp.eq.s32.totalorder %s76, 0
      %p122 = por %p120, %p121
      %p123 = scmp.ne.s32.totalorder %s112, %s115
      %p124 = scmp.eq.s32.totalorder %s81, 1
      %p125 = por %p123, %p124
      %p126 = scmp.ne.s32.totalorder %s115, %s116
      %p127 = scmp.eq.s32.totalorder %s81, 0
      %p128 = por %p126, %p127
      %p129 = scmp.ne.s32.totalorder %s115, %s116
      %p130 = scmp.eq.s32.totalorder %s82, 1
      %p131 = por %p129, %p130
      %p133 = scmp.ne.s32.totalorder %s116, %s132
      %p134 = scmp.eq.s32.totalorder %s82, 0
      %p135 = por %p133, %p134
      %s136 = ssub.s32 %s76, %s83
      %p137 = scmp.eq.s32.totalorder %s136, 0
      %s139 = sadd.s32 %s138, 1
      %s140 = scalar_select %p137, %s138, %s139
      %p143 = pneg %p137
      %p144 = scmp.eq.s32.totalorder %s76, 1
      %p145 = por %p143, %p144
      %p146 = scmp.ne.s32.totalorder %s138, %s141
      %p147 = scmp.eq.s32.totalorder %s76, 0
      %p148 = por %p146, %p147
      %p149 = scmp.ne.s32.totalorder %s138, %s141
      %p150 = scmp.eq.s32.totalorder %s81, 1
      %p151 = por %p149, %p150
      %p152 = scmp.ne.s32.totalorder %s141, %s142
      %p153 = scmp.eq.s32.totalorder %s81, 0
      %p154 = por %p152, %p153
      %p155 = scmp.ne.s32.totalorder %s141, %s142
      %p156 = scmp.eq.s32.totalorder %s82, 1
      %p157 = por %p155, %p156
      %p159 = scmp.ne.s32.totalorder %s142, %s158
      %p160 = scmp.eq.s32.totalorder %s82, 0
      %p161 = por %p159, %p160
      %s162 = ssub.s32 %s76, %s83
      %p163 = scmp.eq.s32.totalorder %s162, 0
      %s165 = sadd.s32 %s164, 1
      %s166 = scalar_select %p163, %s164, %s165
      %p169 = pneg %p163
      %p170 = scmp.eq.s32.totalorder %s76, 1
      %p171 = por %p169, %p170
      %p172 = scmp.ne.s32.totalorder %s164, %s167
      %p173 = scmp.eq.s32.totalorder %s76, 0
      %p174 = por %p172, %p173
      %p175 = scmp.ne.s32.totalorder %s164, %s167
      %p176 = scmp.eq.s32.totalorder %s81, 1
      %p177 = por %p175, %p176
      %p178 = scmp.ne.s32.totalorder %s167, %s168
      %p179 = scmp.eq.s32.totalorder %s81, 0
      %p180 = por %p178, %p179
      %p181 = scmp.ne.s32.totalorder %s167, %s168
      %p182 = scmp.eq.s32.totalorder %s82, 1
      %p183 = por %p181, %p182
      %p185 = scmp.ne.s32.totalorder %s168, %s184
      %p186 = scmp.eq.s32.totalorder %s82, 0
      %p187 = por %p185, %p186
      %s189 = sadd.s32 %s188, 1
      %p192 = scmp.eq.s32.totalorder %s76, 1
      %p193 = scmp.ne.s32.totalorder %s188, %s190
      %p194 = scmp.eq.s32.totalorder %s76, 0
      %p195 = por %p193, %p194
      %p196 = scmp.ne.s32.totalorder %s188, %s190
      %p197 = scmp.eq.s32.totalorder %s81, 1
      %p198 = por %p196, %p197
      %p199 = scmp.ne.s32.totalorder %s190, %s191
      %p200 = scmp.eq.s32.totalorder %s81, 0
      %p201 = por %p199, %p200
      %p202 = scmp.ne.s32.totalorder %s190, %s191
      %p203 = scmp.eq.s32.totalorder %s82, 1
      %p204 = por %p202, %p203
      %p206 = scmp.ne.s32.totalorder %s191, %s205
      %p207 = scmp.eq.s32.totalorder %s82, 0
      %p208 = por %p206, %p207
      %s210 = sadd.s32 %s209, 1
      %p213 = scmp.eq.s32.totalorder %s76, 1
      %p214 = scmp.ne.s32.totalorder %s209, %s211
      %p215 = scmp.eq.s32.totalorder %s76, 0
      %p216 = por %p214, %p215
      %p217 = scmp.ne.s32.totalorder %s209, %s211
      %p218 = scmp.eq.s32.totalorder %s81, 1
      %p219 = por %p217, %p218
      %p220 = scmp.ne.s32.totalorder %s211, %s212
      %p221 = scmp.eq.s32.totalorder %s81, 0
      %p222 = por %p220, %p221
      %p223 = scmp.ne.s32.totalorder %s211, %s212
      %p224 = scmp.eq.s32.totalorder %s82, 1
      %p225 = por %p223, %p224
      %p227 = scmp.ne.s32.totalorder %s212, %s226
      %p228 = scmp.eq.s32.totalorder %s82, 0
      %p229 = por %p227, %p228
      %s231 = sadd.s32 %s230, 1
      %p234 = scmp.eq.s32.totalorder %s76, 1
      %p235 = scmp.ne.s32.totalorder %s230, %s232
      %p236 = scmp.eq.s32.totalorder %s76, 0
      %p237 = por %p235, %p236
      %p238 = scmp.ne.s32.totalorder %s230, %s232
      %p239 = scmp.eq.s32.totalorder %s81, 1
      %p240 = por %p238, %p239
      %p241 = scmp.ne.s32.totalorder %s232, %s233
      %p242 = scmp.eq.s32.totalorder %s81, 0
      %p243 = por %p241, %p242
      %p244 = scmp.ne.s32.totalorder %s232, %s233
      %p245 = scmp.eq.s32.totalorder %s82, 1
      %p246 = por %p244, %p245
      %p248 = scmp.ne.s32.totalorder %s233, %s247
      %p249 = scmp.eq.s32.totalorder %s82, 0
      %p250 = por %p248, %p249
      %s252 = sadd.s32 %s251, 1
      %p255 = scmp.eq.s32.totalorder %s76, 1
      %p256 = scmp.ne.s32.totalorder %s251, %s253
      %p257 = scmp.eq.s32.totalorder %s76, 0
      %p258 = por %p256, %p257
      %p259 = scmp.ne.s32.totalorder %s251, %s253
      %p260 = scmp.eq.s32.totalorder %s81, 1
      %p261 = por %p259, %p260
      %p262 = scmp.ne.s32.totalorder %s253, %s254
      %p263 = scmp.eq.s32.totalorder %s81, 0
      %p264 = por %p262, %p263
      %p265 = scmp.ne.s32.totalorder %s253, %s254
      %p266 = scmp.eq.s32.totalorder %s82, 1
      %p267 = por %p265, %p266
      %p269 = scmp.ne.s32.totalorder %s254, %s268
      %p270 = scmp.eq.s32.totalorder %s82, 0
      %p271 = por %p269, %p270
      %s273 = sadd.s32 %s272, 1
      %p276 = scmp.eq.s32.totalorder %s76, 1
      %p277 = scmp.ne.s32.totalorder %s272, %s274
      %p278 = scmp.eq.s32.totalorder %s76, 0
      %p279 = por %p277, %p278
      %p280 = scmp.ne.s32.totalorder %s272, %s274
      %p281 = scmp.eq.s32.totalorder %s81, 1
      %p282 = por %p280, %p281
      %p283 = scmp.ne.s32.totalorder %s274, %s275
      %p284 = scmp.eq.s32.totalorder %s81, 0
      %p285 = por %p283, %p284
      %p286 = scmp.ne.s32.totalorder %s274, %s275
      %p287 = scmp.eq.s32.totalorder %s82, 1
      %p288 = por %p286, %p287
      %p290 = scmp.ne.s32.totalorder %s275, %s289
      %p291 = scmp.eq.s32.totalorder %s82, 0
      %p292 = por %p290, %p291
      %s294 = sadd.s32 %s293, 1
      %p297 = scmp.eq.s32.totalorder %s76, 1
      %p298 = scmp.ne.s32.totalorder %s293, %s295
      %p299 = scmp.eq.s32.totalorder %s76, 0
      %p300 = por %p298, %p299
      %p301 = scmp.ne.s32.totalorder %s293, %s295
      %p302 = scmp.eq.s32.totalorder %s81, 1
      %p303 = por %p301, %p302
      %p304 = scmp.ne.s32.totalorder %s295, %s296
      %p305 = scmp.eq.s32.totalorder %s81, 0
      %p306 = por %p304, %p305
      %p307 = scmp.ne.s32.totalorder %s295, %s296
      %p308 = scmp.eq.s32.totalorder %s82, 1
      %p309 = por %p307, %p308
      %p311 = scmp.ne.s32.totalorder %s296, %s310
      %p312 = scmp.eq.s32.totalorder %s82, 0
      %p313 = por %p311, %p312
      %s315 = sadd.s32 %s314, 1
      %p318 = scmp.eq.s32.totalorder %s76, 1
      %p319 = scmp.ne.s32.totalorder %s314, %s316
      %p320 = scmp.eq.s32.totalorder %s76, 0
      %p321 = por %p319, %p320
      %p322 = scmp.ne.s32.totalorder %s314, %s316
      %p323 = scmp.eq.s32.totalorder %s81, 1
      %p324 = por %p322, %p323
      %p325 = scmp.ne.s32.totalorder %s316, %s317
      %p326 = scmp.eq.s32.totalorder %s81, 0
      %p327 = por %p325, %p326
      %p328 = scmp.ne.s32.totalorder %s316, %s317
      %p329 = scmp.eq.s32.totalorder %s82, 1
      %p330 = por %p328, %p329
      %p332 = scmp.ne.s32.totalorder %s317, %s331
      %p333 = scmp.eq.s32.totalorder %s82, 0
      %p334 = por %p332, %p333
      %s336 = sadd.s32 %s335, 1
      %p339 = scmp.eq.s32.totalorder %s76, 1
      %p340 = scmp.ne.s32.totalorder %s335, %s337
      %p341 = scmp.eq.s32.totalorder %s76, 0
      %p342 = por %p340, %p341
      %p343 = scmp.ne.s32.totalorder %s335, %s337
      %p344 = scmp.eq.s32.totalorder %s81, 1
      %p345 = por %p343, %p344
      %p346 = scmp.ne.s32.totalorder %s337, %s338
      %p347 = scmp.eq.s32.totalorder %s81, 0
      %p348 = por %p346, %p347
      %p349 = scmp.ne.s32.totalorder %s337, %s338
      %p350 = scmp.eq.s32.totalorder %s82, 1
      %p351 = por %p349, %p350
      %p353 = scmp.ne.s32.totalorder %s338, %s352
      %p354 = scmp.eq.s32.totalorder %s82, 0
      %p355 = por %p353, %p354
      %s357 = sadd.s32 %s356, 1
      %p360 = scmp.eq.s32.totalorder %s76, 1
      %p361 = scmp.ne.s32.totalorder %s356, %s358
      %p362 = scmp.eq.s32.totalorder %s76, 0
      %p363 = por %p361, %p362
      %p364 = scmp.ne.s32.totalorder %s356, %s358
      %p365 = scmp.eq.s32.totalorder %s81, 1
      %p366 = por %p364, %p365
      %p367 = scmp.ne.s32.totalorder %s358, %s359
      %p368 = scmp.eq.s32.totalorder %s81, 0
      %p369 = por %p367, %p368
      %p370 = scmp.ne.s32.totalorder %s358, %s359
      %p371 = scmp.eq.s32.totalorder %s82, 1
      %p372 = por %p370, %p371
      %p374 = scmp.ne.s32.totalorder %s359, %s373
      %p375 = scmp.eq.s32.totalorder %s82, 0
      %p376 = por %p374, %p375
      %s378 = sadd.s32 %s377, 1
      %p381 = scmp.eq.s32.totalorder %s76, 1
      %p382 = scmp.ne.s32.totalorder %s377, %s379
      %p383 = scmp.eq.s32.totalorder %s76, 0
      %p384 = por %p382, %p383
      %p385 = scmp.ne.s32.totalorder %s377, %s379
      %p386 = scmp.eq.s32.totalorder %s81, 1
      %p387 = por %p385, %p386
      %p388 = scmp.ne.s32.totalorder %s379, %s380
      %p389 = scmp.eq.s32.totalorder %s81, 0
      %p390 = por %p388, %p389
      %p391 = scmp.ne.s32.totalorder %s379, %s380
      %p392 = scmp.eq.s32.totalorder %s82, 1
      %p393 = por %p391, %p392
      %p395 = scmp.ne.s32.totalorder %s380, %s394
      %p396 = scmp.eq.s32.totalorder %s82, 0
      %p397 = por %p395, %p396
      %s399 = sadd.s32 %s398, 1
      %p402 = scmp.eq.s32.totalorder %s76, 1
      %p403 = scmp.ne.s32.totalorder %s398, %s400
      %p404 = scmp.eq.s32.totalorder %s76, 0
      %p405 = por %p403, %p404
      %p406 = scmp.ne.s32.totalorder %s398, %s400
      %p407 = scmp.eq.s32.totalorder %s81, 1
      %p408 = por %p406, %p407
      %p409 = scmp.ne.s32.totalorder %s400, %s401
      %p410 = scmp.eq.s32.totalorder %s81, 0
      %p411 = por %p409, %p410
      %p412 = scmp.ne.s32.totalorder %s400, %s401
      %p413 = scmp.eq.s32.totalorder %s82, 1
      %p414 = por %p412, %p413
      %p416 = scmp.ne.s32.totalorder %s401, %s415
      %p417 = scmp.eq.s32.totalorder %s82, 0
      %p418 = por %p416, %p417
      %s420 = sadd.s32 %s419, 1
      %p423 = scmp.eq.s32.totalorder %s76, 1
      %p424 = scmp.ne.s32.totalorder %s419, %s421
      %p425 = scmp.eq.s32.totalorder %s76, 0
      %p426 = por %p424, %p425
      %p427 = scmp.ne.s32.totalorder %s419, %s421
      %p428 = scmp.eq.s32.totalorder %s81, 1
      %p429 = por %p427, %p428
      %p430 = scmp.ne.s32.totalorder %s421, %s422
      %p431 = scmp.eq.s32.totalorder %s81, 0
      %p432 = por %p430, %p431
      %p433 = scmp.ne.s32.totalorder %s421, %s422
      %p434 = scmp.eq.s32.totalorder %s82, 1
      %p435 = por %p433, %p434
      %p437 = scmp.ne.s32.totalorder %s422, %s436
      %p438 = scmp.eq.s32.totalorder %s82, 0
      %p439 = por %p437, %p438
      %s441 = sadd.s32 %s440, 1
      %p444 = scmp.eq.s32.totalorder %s76, 1
      %p445 = scmp.ne.s32.totalorder %s440, %s442
      %p446 = scmp.eq.s32.totalorder %s76, 0
      %p447 = por %p445, %p446
      %p448 = scmp.ne.s32.totalorder %s440, %s442
      %p449 = scmp.eq.s32.totalorder %s81, 1
      %p450 = por %p448, %p449
      %p451 = scmp.ne.s32.totalorder %s442, %s443
      %p452 = scmp.eq.s32.totalorder %s81, 0
      %p453 = por %p451, %p452
      %p454 = scmp.ne.s32.totalorder %s442, %s443
      %p455 = scmp.eq.s32.totalorder %s82, 1
      %p456 = por %p454, %p455
      %p458 = scmp.ne.s32.totalorder %s443, %s457
      %p459 = scmp.eq.s32.totalorder %s82, 0
      %p460 = por %p458, %p459
      %s462 = sadd.s32 %s461, 1
      %p465 = scmp.eq.s32.totalorder %s76, 1
      %p466 = scmp.ne.s32.totalorder %s461, %s463
      %p467 = scmp.eq.s32.totalorder %s76, 0
      %p468 = por %p466, %p467
      %p469 = scmp.ne.s32.totalorder %s461, %s463
      %p470 = scmp.eq.s32.totalorder %s81, 1
      %p471 = por %p469, %p470
      %p472 = scmp.ne.s32.totalorder %s463, %s464
      %p473 = scmp.eq.s32.totalorder %s81, 0
      %p474 = por %p472, %p473
      %p475 = scmp.ne.s32.totalorder %s463, %s464
      %p476 = scmp.eq.s32.totalorder %s82, 1
      %p477 = por %p475, %p476
      %p479 = scmp.ne.s32.totalorder %s464, %s478
      %p480 = scmp.eq.s32.totalorder %s82, 0
      %p481 = por %p479, %p480
      %s483 = sadd.s32 %s482, 1
      %p486 = scmp.eq.s32.totalorder %s76, 1
      %p487 = scmp.ne.s32.totalorder %s482, %s484
      %p488 = scmp.eq.s32.totalorder %s76, 0
      %p489 = por %p487, %p488
      %p490 = scmp.ne.s32.totalorder %s482, %s484
      %p491 = scmp.eq.s32.totalorder %s81, 1
      %p492 = por %p490, %p491
      %p493 = scmp.ne.s32.totalorder %s484, %s485
      %p494 = scmp.eq.s32.totalorder %s81, 0
      %p495 = por %p493, %p494
      %p496 = scmp.ne.s32.totalorder %s484, %s485
      %p497 = scmp.eq.s32.totalorder %s82, 1
      %p498 = por %p496, %p497
      %p500 = scmp.ne.s32.totalorder %s485, %s499
      %p501 = scmp.eq.s32.totalorder %s82, 0
      %p502 = por %p500, %p501
      %s504 = sadd.s32 %s503, 1
      %p507 = scmp.eq.s32.totalorder %s76, 1
      %p508 = scmp.ne.s32.totalorder %s503, %s505
      %p509 = scmp.eq.s32.totalorder %s76, 0
      %p510 = por %p508, %p509
      %p511 = scmp.ne.s32.totalorder %s503, %s505
      %p512 = scmp.eq.s32.totalorder %s81, 1
      %p513 = por %p511, %p512
      %p514 = scmp.ne.s32.totalorder %s505, %s506
      %p515 = scmp.eq.s32.totalorder %s81, 0
      %p516 = por %p514, %p515
      %p517 = scmp.ne.s32.totalorder %s505, %s506
      %p518 = scmp.eq.s32.totalorder %s82, 1
      %p519 = por %p517, %p518
      %p521 = scmp.ne.s32.totalorder %s506, %s520
      %p522 = scmp.eq.s32.totalorder %s82, 0
      %p523 = por %p521, %p522
      %s525 = sadd.s32 %s524, 1
      %p528 = scmp.eq.s32.totalorder %s76, 1
      %p529 = scmp.ne.s32.totalorder %s524, %s526
      %p530 = scmp.eq.s32.totalorder %s76, 0
      %p531 = por %p529, %p530
      %p532 = scmp.ne.s32.totalorder %s524, %s526
      %p533 = scmp.eq.s32.totalorder %s81, 1
      %p534 = por %p532, %p533
      %p535 = scmp.ne.s32.totalorder %s526, %s527
      %p536 = scmp.eq.s32.totalorder %s81, 0
      %p537 = por %p535, %p536
      %p538 = scmp.ne.s32.totalorder %s526, %s527
      %p539 = scmp.eq.s32.totalorder %s82, 1
      %p540 = por %p538, %p539
      %p542 = scmp.ne.s32.totalorder %s527, %s541
      %p543 = scmp.eq.s32.totalorder %s82, 0
      %p544 = por %p542, %p543
      %s546 = sadd.s32 %s545, 1
      %p549 = scmp.eq.s32.totalorder %s76, 1
      %p550 = scmp.ne.s32.totalorder %s545, %s547
      %p551 = scmp.eq.s32.totalorder %s76, 0
      %p552 = por %p550, %p551
      %p553 = scmp.ne.s32.totalorder %s545, %s547
      %p554 = scmp.eq.s32.totalorder %s81, 1
      %p555 = por %p553, %p554
      %p556 = scmp.ne.s32.totalorder %s547, %s548
      %p557 = scmp.eq.s32.totalorder %s81, 0
      %p558 = por %p556, %p557
      %p559 = scmp.ne.s32.totalorder %s547, %s548
      %p560 = scmp.eq.s32.totalorder %s82, 1
      %p561 = por %p559, %p560
      %p563 = scmp.ne.s32.totalorder %s548, %s562
      %p564 = scmp.eq.s32.totalorder %s82, 0
      %p565 = por %p563, %p564
      %s567 = sadd.s32 %s566, 1
      %p570 = scmp.eq.s32.totalorder %s76, 1
      %p571 = scmp.ne.s32.totalorder %s566, %s568
      %p572 = scmp.eq.s32.totalorder %s76, 0
      %p573 = por %p571, %p572
      %p574 = scmp.ne.s32.totalorder %s566, %s568
      %p575 = scmp.eq.s32.totalorder %s81, 1
      %p576 = por %p574, %p575
      %p577 = scmp.ne.s32.totalorder %s568, %s569
      %p578 = scmp.eq.s32.totalorder %s81, 0
      %p579 = por %p577, %p578
      %p580 = scmp.ne.s32.totalorder %s568, %s569
      %p581 = scmp.eq.s32.totalorder %s82, 1
      %p582 = por %p580, %p581
      %p584 = scmp.ne.s32.totalorder %s569, %s583
      %p585 = scmp.eq.s32.totalorder %s82, 0
      %p586 = por %p584, %p585
      %s588 = sadd.s32 %s587, 1
      %p591 = scmp.eq.s32.totalorder %s76, 1
      %p592 = scmp.ne.s32.totalorder %s587, %s589
      %p593 = scmp.eq.s32.totalorder %s76, 0
      %p594 = por %p592, %p593
      %p595 = scmp.ne.s32.totalorder %s587, %s589
      %p596 = scmp.eq.s32.totalorder %s81, 1
      %p597 = por %p595, %p596
      %p598 = scmp.ne.s32.totalorder %s589, %s590
      %p599 = scmp.eq.s32.totalorder %s81, 0
      %p600 = por %p598, %p599
      %p601 = scmp.ne.s32.totalorder %s589, %s590
      %p602 = scmp.eq.s32.totalorder %s82, 1
      %p603 = por %p601, %p602
      %p605 = scmp.ne.s32.totalorder %s590, %s604
      %p606 = scmp.eq.s32.totalorder %s82, 0
      %p607 = por %p605, %p606
      %s609 = sadd.s32 %s608, 1
      %p612 = scmp.eq.s32.totalorder %s76, 1
      %p613 = scmp.ne.s32.totalorder %s608, %s610
      %p614 = scmp.eq.s32.totalorder %s76, 0
      %p615 = por %p613, %p614
      %p616 = scmp.ne.s32.totalorder %s608, %s610
      %p617 = scmp.eq.s32.totalorder %s81, 1
      %p618 = por %p616, %p617
      %p619 = scmp.ne.s32.totalorder %s610, %s611
      %p620 = scmp.eq.s32.totalorder %s81, 0
      %p621 = por %p619, %p620
      %p622 = scmp.ne.s32.totalorder %s610, %s611
      %p623 = scmp.eq.s32.totalorder %s82, 1
      %p624 = por %p622, %p623
      %p626 = scmp.ne.s32.totalorder %s611, %s625
      %p627 = scmp.eq.s32.totalorder %s82, 0
      %p628 = por %p626, %p627
      %s630 = sadd.s32 %s629, 1
      %p633 = scmp.eq.s32.totalorder %s76, 1
      %p634 = scmp.ne.s32.totalorder %s629, %s631
      %p635 = scmp.eq.s32.totalorder %s76, 0
      %p636 = por %p634, %p635
      %p637 = scmp.ne.s32.totalorder %s629, %s631
      %p638 = scmp.eq.s32.totalorder %s81, 1
      %p639 = por %p637, %p638
      %p640 = scmp.ne.s32.totalorder %s631, %s632
      %p641 = scmp.eq.s32.totalorder %s81, 0
      %p642 = por %p640, %p641
      %p643 = scmp.ne.s32.totalorder %s631, %s632
      %p644 = scmp.eq.s32.totalorder %s82, 1
      %p645 = por %p643, %p644
      %p647 = scmp.ne.s32.totalorder %s632, %s646
      %p648 = scmp.eq.s32.totalorder %s82, 0
      %p649 = por %p647, %p648
      %s651 = sadd.s32 %s650, 1
      %p654 = scmp.eq.s32.totalorder %s76, 1
      %p655 = scmp.ne.s32.totalorder %s650, %s652
      %p656 = scmp.eq.s32.totalorder %s76, 0
      %p657 = por %p655, %p656
      %p658 = scmp.ne.s32.totalorder %s650, %s652
      %p659 = scmp.eq.s32.totalorder %s81, 1
      %p660 = por %p658, %p659
      %p661 = scmp.ne.s32.totalorder %s652, %s653
      %p662 = scmp.eq.s32.totalorder %s81, 0
      %p663 = por %p661, %p662
      %p664 = scmp.ne.s32.totalorder %s652, %s653
      %p665 = scmp.eq.s32.totalorder %s82, 1
      %p666 = por %p664, %p665
      %p668 = scmp.ne.s32.totalorder %s653, %s667
      %p669 = scmp.eq.s32.totalorder %s82, 0
      %p670 = por %p668, %p669
      %s672 = sadd.s32 %s671, 1
      %p675 = scmp.eq.s32.totalorder %s76, 1
      %p676 = scmp.ne.s32.totalorder %s671, %s673
      %p677 = scmp.eq.s32.totalorder %s76, 0
      %p678 = por %p676, %p677
      %p679 = scmp.ne.s32.totalorder %s671, %s673
      %p680 = scmp.eq.s32.totalorder %s81, 1
      %p681 = por %p679, %p680
      %p682 = scmp.ne.s32.totalorder %s673, %s674
      %p683 = scmp.eq.s32.totalorder %s81, 0
      %p684 = por %p682, %p683
      %p685 = scmp.ne.s32.totalorder %s673, %s674
      %p686 = scmp.eq.s32.totalorder %s82, 1
      %p687 = por %p685, %p686
      %p689 = scmp.ne.s32.totalorder %s674, %s688
      %p690 = scmp.eq.s32.totalorder %s82, 0
      %p691 = por %p689, %p690
      %s693 = sadd.s32 %s692, 1
      %p696 = scmp.eq.s32.totalorder %s76, 1
      %p697 = scmp.ne.s32.totalorder %s692, %s694
      %p698 = scmp.eq.s32.totalorder %s76, 0
      %p699 = por %p697, %p698
      %p700 = scmp.ne.s32.totalorder %s692, %s694
      %p701 = scmp.eq.s32.totalorder %s81, 1
      %p702 = por %p700, %p701
      %p703 = scmp.ne.s32.totalorder %s694, %s695
      %p704 = scmp.eq.s32.totalorder %s81, 0
      %p705 = por %p703, %p704
      %p706 = scmp.ne.s32.totalorder %s694, %s695
      %p707 = scmp.eq.s32.totalorder %s82, 1
      %p708 = por %p706, %p707
      %p710 = scmp.ne.s32.totalorder %s695, %s709
      %p711 = scmp.eq.s32.totalorder %s82, 0
      %p712 = por %p710, %p711
      %s714 = sadd.s32 %s713, 1
      %p717 = scmp.eq.s32.totalorder %s76, 1
      %p718 = scmp.ne.s32.totalorder %s713, %s715
      %p719 = scmp.eq.s32.totalorder %s76, 0
      %p720 = por %p718, %p719
      %p721 = scmp.ne.s32.totalorder %s713, %s715
      %p722 = scmp.eq.s32.totalorder %s81, 1
      %p723 = por %p721, %p722
      %p724 = scmp.ne.s32.totalorder %s715, %s716
      %p725 = scmp.eq.s32.totalorder %s81, 0
      %p726 = por %p724, %p725
      %p727 = scmp.ne.s32.totalorder %s715, %s716
      %p728 = scmp.eq.s32.totalorder %s82, 1
      %p729 = por %p727, %p728
      %p731 = scmp.ne.s32.totalorder %s716, %s730
      %p732 = scmp.eq.s32.totalorder %s82, 0
      %p733 = por %p731, %p732
      %s734 = ssub.s32 %s76, %s83
      %p735 = scmp.eq.s32.totalorder %s734, 0
      %s737 = sadd.s32 %s736, 1
      %s738 = scalar_select %p735, %s736, %s737
      %p741 = pneg %p735
      %p742 = scmp.eq.s32.totalorder %s76, 1
      %p743 = por %p741, %p742
      %p744 = scmp.ne.s32.totalorder %s736, %s739
      %p745 = scmp.eq.s32.totalorder %s76, 0
      %p746 = por %p744, %p745
      %p747 = scmp.ne.s32.totalorder %s736, %s739
      %p748 = scmp.eq.s32.totalorder %s81, 1
      %p749 = por %p747, %p748
      %p750 = scmp.ne.s32.totalorder %s739, %s740
      %p751 = scmp.eq.s32.totalorder %s81, 0
      %p752 = por %p750, %p751
      %p753 = scmp.ne.s32.totalorder %s739, %s740
      %p754 = scmp.eq.s32.totalorder %s82, 1
      %p755 = por %p753, %p754
      %p757 = scmp.ne.s32.totalorder %s740, %s756
      %p758 = scmp.eq.s32.totalorder %s82, 0
      %p759 = por %p757, %p758
      %s760 = ssub.s32 %s76, %s83
      %p761 = scmp.eq.s32.totalorder %s760, 0
      %s763 = sadd.s32 %s762, 1
      %s764 = scalar_select %p761, %s762, %s763
      %p767 = pneg %p761
      %p768 = scmp.eq.s32.totalorder %s76, 1
      %p769 = por %p767, %p768
      %p770 = scmp.ne.s32.totalorder %s762, %s765
      %p771 = scmp.eq.s32.totalorder %s76, 0
      %p772 = por %p770, %p771
      %p773 = scmp.ne.s32.totalorder %s762, %s765
      %p774 = scmp.eq.s32.totalorder %s81, 1
      %p775 = por %p773, %p774
      %p776 = scmp.ne.s32.totalorder %s765, %s766
      %p777 = scmp.eq.s32.totalorder %s81, 0
      %p778 = por %p776, %p777
      %p779 = scmp.ne.s32.totalorder %s765, %s766
      %p780 = scmp.eq.s32.totalorder %s82, 1
      %p781 = por %p779, %p780
      %p783 = scmp.ne.s32.totalorder %s766, %s782
      %p784 = scmp.eq.s32.totalorder %s82, 0
      %p785 = por %p783, %p784
      %s786 = ssub.s32 %s76, %s83
      %p787 = scmp.eq.s32.totalorder %s786, 0
      %s789 = sadd.s32 %s788, 1
      %s790 = scalar_select %p787, %s788, %s789
      %p793 = pneg %p787
      %p794 = scmp.eq.s32.totalorder %s76, 1
      %p795 = por %p793, %p794
      %p796 = scmp.ne.s32.totalorder %s788, %s791
      %p797 = scmp.eq.s32.totalorder %s76, 0
      %p798 = por %p796, %p797
      %p799 = scmp.ne.s32.totalorder %s788, %s791
      %p800 = scmp.eq.s32.totalorder %s81, 1
      %p801 = por %p799, %p800
      %p802 = scmp.ne.s32.totalorder %s791, %s792
      %p803 = scmp.eq.s32.totalorder %s81, 0
      %p804 = por %p802, %p803
      %p805 = scmp.ne.s32.totalorder %s791, %s792
      %p806 = scmp.eq.s32.totalorder %s82, 1
      %p807 = por %p805, %p806
      %p809 = scmp.ne.s32.totalorder %s792, %s808
      %p810 = scmp.eq.s32.totalorder %s82, 0
      %p811 = por %p809, %p810
      %s812 = ssub.s32 %s76, %s83
      %p813 = scmp.eq.s32.totalorder %s812, 0
      %s815 = sadd.s32 %s814, 1
      %s816 = scalar_select %p813, %s814, %s815
      %p819 = pneg %p813
      %p820 = scmp.eq.s32.totalorder %s76, 1
      %p821 = por %p819, %p820
      %p822 = scmp.ne.s32.totalorder %s814, %s817
      %p823 = scmp.eq.s32.totalorder %s76, 0
      %p824 = por %p822, %p823
      %p825 = scmp.ne.s32.totalorder %s814, %s817
      %p826 = scmp.eq.s32.totalorder %s81, 1
      %p827 = por %p825, %p826
      %p828 = scmp.ne.s32.totalorder %s817, %s818
      %p829 = scmp.eq.s32.totalorder %s81, 0
      %p830 = por %p828, %p829
      %p831 = scmp.ne.s32.totalorder %s817, %s818
      %p832 = scmp.eq.s32.totalorder %s82, 1
      %p833 = por %p831, %p832
      %p835 = scmp.ne.s32.totalorder %s818, %s834
      %p836 = scmp.eq.s32.totalorder %s82, 0
      %p837 = por %p835, %p836
      %p838 = scmp.le.s32.totalorder 1, %s76
      %p839 = scmp.lt.s32.totalorder %s76, 3
      %p840 = pnand %p838, %p839
      %p841 = pneg %p840
      // Predicated region
      $region9: #{tpu_custom_call.1} parent=5 // pred_check
        _
      $region10: #{tpu_custom_call.1} parent=5 // pred_check_branch
        %843 = sbr.rel (%p840) target = $region12
      $region11: #{tpu_custom_call.1} parent=5 // pred_region
        %s844 = ssub.s32 %s76, 1
        // Predicated region
        $region13: #{tpu_custom_call.1} parent=11 // pred_check
          %p845 = pneg %p201
        $region14: #{tpu_custom_call.1} parent=11 // pred_check_branch
          %847 = sbr.rel (%p845) target = $region16
        $region15: #{tpu_custom_call.1} parent=11 // pred_region
          _
        $region16: #{tpu_custom_call.1} parent=11 // pred_fallthru
          _
        // Predicated region
        $region17: #{tpu_custom_call.1} parent=11 // pred_check
          %p848 = pneg %p222
        $region18: #{tpu_custom_call.1} parent=11 // pred_check_branch
          %850 = sbr.rel (%p848) target = $region20
        $region19: #{tpu_custom_call.1} parent=11 // pred_region
          _
        $region20: #{tpu_custom_call.1} parent=11 // pred_fallthru
          _
        // Predicated region
        $region21: #{tpu_custom_call.1} parent=11 // pred_check
          %p851 = pneg %p243
        $region22: #{tpu_custom_call.1} parent=11 // pred_check_branch
          %853 = sbr.rel (%p851) target = $region24
        $region23: #{tpu_custom_call.1} parent=11 // pred_region
          _
        $region24: #{tpu_custom_call.1} parent=11 // pred_fallthru
          _
        // Predicated region
        $region25: #{tpu_custom_call.1} parent=11 // pred_check
          %p854 = pneg %p264
        $region26: #{tpu_custom_call.1} parent=11 // pred_check_branch
          %856 = sbr.rel (%p854) target = $region28
        $region27: #{tpu_custom_call.1} parent=11 // pred_region
          _
        $region28: #{tpu_custom_call.1} parent=11 // pred_fallthru
          _
        // Predicated region
        $region29: #{tpu_custom_call.1} parent=11 // pred_check
          %p857 = pneg %p285
        $region30: #{tpu_custom_call.1} parent=11 // pred_check_branch
          %859 = sbr.rel (%p857) target = $region32
        $region31: #{tpu_custom_call.1} parent=11 // pred_region
          _
        $region32: #{tpu_custom_call.1} parent=11 // pred_fallthru
          _
        // Predicated region
        $region33: #{tpu_custom_call.1} parent=11 // pred_check
          %p860 = pneg %p306
        $region34: #{tpu_custom_call.1} parent=11 // pred_check_branch
          %862 = sbr.rel (%p860) target = $region36
        $region35: #{tpu_custom_call.1} parent=11 // pred_region
          _
        $region36: #{tpu_custom_call.1} parent=11 // pred_fallthru
          _
        // Predicated region
        $region37: #{tpu_custom_call.1} parent=11 // pred_check
          %p863 = pneg %p327
        $region38: #{tpu_custom_call.1} parent=11 // pred_check_branch
          %865 = sbr.rel (%p863) target = $region40
        $region39: #{tpu_custom_call.1} parent=11 // pred_region
          _
        $region40: #{tpu_custom_call.1} parent=11 // pred_fallthru
          _
        // Predicated region
        $region41: #{tpu_custom_call.1} parent=11 // pred_check
          %p866 = pneg %p348
        $region42: #{tpu_custom_call.1} parent=11 // pred_check_branch
          %868 = sbr.rel (%p866) target = $region44
        $region43: #{tpu_custom_call.1} parent=11 // pred_region
          _
        $region44: #{tpu_custom_call.1} parent=11 // pred_fallthru
          _
        // Predicated region
        $region45: #{tpu_custom_call.1} parent=11 // pred_check
          %p869 = pneg %p369
        $region46: #{tpu_custom_call.1} parent=11 // pred_check_branch
          %871 = sbr.rel (%p869) target = $region48
        $region47: #{tpu_custom_call.1} parent=11 // pred_region
          _
        $region48: #{tpu_custom_call.1} parent=11 // pred_fallthru
          _
        // Predicated region
        $region49: #{tpu_custom_call.1} parent=11 // pred_check
          %p872 = pneg %p390
        $region50: #{tpu_custom_call.1} parent=11 // pred_check_branch
          %874 = sbr.rel (%p872) target = $region52
        $region51: #{tpu_custom_call.1} parent=11 // pred_region
          _
        $region52: #{tpu_custom_call.1} parent=11 // pred_fallthru
          _
        // Predicated region
        $region53: #{tpu_custom_call.1} parent=11 // pred_check
          %p875 = pneg %p411
        $region54: #{tpu_custom_call.1} parent=11 // pred_check_branch
          %877 = sbr.rel (%p875) target = $region56
        $region55: #{tpu_custom_call.1} parent=11 // pred_region
          _
        $region56: #{tpu_custom_call.1} parent=11 // pred_fallthru
          _
        // Predicated region
        $region57: #{tpu_custom_call.1} parent=11 // pred_check
          %p878 = pneg %p432
        $region58: #{tpu_custom_call.1} parent=11 // pred_check_branch
          %880 = sbr.rel (%p878) target = $region60
        $region59: #{tpu_custom_call.1} parent=11 // pred_region
          _
        $region60: #{tpu_custom_call.1} parent=11 // pred_fallthru
          _
        // Predicated region
        $region61: #{tpu_custom_call.1} parent=11 // pred_check
          %p881 = pneg %p453
        $region62: #{tpu_custom_call.1} parent=11 // pred_check_branch
          %883 = sbr.rel (%p881) target = $region64
        $region63: #{tpu_custom_call.1} parent=11 // pred_region
          _
        $region64: #{tpu_custom_call.1} parent=11 // pred_fallthru
          _
        // Predicated region
        $region65: #{tpu_custom_call.1} parent=11 // pred_check
          %p884 = pneg %p474
        $region66: #{tpu_custom_call.1} parent=11 // pred_check_branch
          %886 = sbr.rel (%p884) target = $region68
        $region67: #{tpu_custom_call.1} parent=11 // pred_region
          _
        $region68: #{tpu_custom_call.1} parent=11 // pred_fallthru
          _
        // Predicated region
        $region69: #{tpu_custom_call.1} parent=11 // pred_check
          %p887 = pneg %p495
        $region70: #{tpu_custom_call.1} parent=11 // pred_check_branch
          %889 = sbr.rel (%p887) target = $region72
        $region71: #{tpu_custom_call.1} parent=11 // pred_region
          _
        $region72: #{tpu_custom_call.1} parent=11 // pred_fallthru
          _
        // Predicated region
        $region73: #{tpu_custom_call.1} parent=11 // pred_check
          %p890 = pneg %p516
        $region74: #{tpu_custom_call.1} parent=11 // pred_check_branch
          %892 = sbr.rel (%p890) target = $region76
        $region75: #{tpu_custom_call.1} parent=11 // pred_region
          _
        $region76: #{tpu_custom_call.1} parent=11 // pred_fallthru
          _
        // Predicated region
        $region77: #{tpu_custom_call.1} parent=11 // pred_check
          %p893 = pneg %p537
        $region78: #{tpu_custom_call.1} parent=11 // pred_check_branch
          %895 = sbr.rel (%p893) target = $region80
        $region79: #{tpu_custom_call.1} parent=11 // pred_region
          _
        $region80: #{tpu_custom_call.1} parent=11 // pred_fallthru
          _
        // Predicated region
        $region81: #{tpu_custom_call.1} parent=11 // pred_check
          %p896 = pneg %p558
        $region82: #{tpu_custom_call.1} parent=11 // pred_check_branch
          %898 = sbr.rel (%p896) target = $region84
        $region83: #{tpu_custom_call.1} parent=11 // pred_region
          _
        $region84: #{tpu_custom_call.1} parent=11 // pred_fallthru
          _
        // Predicated region
        $region85: #{tpu_custom_call.1} parent=11 // pred_check
          %p899 = pneg %p579
        $region86: #{tpu_custom_call.1} parent=11 // pred_check_branch
          %901 = sbr.rel (%p899) target = $region88
        $region87: #{tpu_custom_call.1} parent=11 // pred_region
          _
        $region88: #{tpu_custom_call.1} parent=11 // pred_fallthru
          _
        // Predicated region
        $region89: #{tpu_custom_call.1} parent=11 // pred_check
          %p902 = pneg %p600
        $region90: #{tpu_custom_call.1} parent=11 // pred_check_branch
          %904 = sbr.rel (%p902) target = $region92
        $region91: #{tpu_custom_call.1} parent=11 // pred_region
          _
        $region92: #{tpu_custom_call.1} parent=11 // pred_fallthru
          _
        // Predicated region
        $region93: #{tpu_custom_call.1} parent=11 // pred_check
          %p905 = pneg %p621
        $region94: #{tpu_custom_call.1} parent=11 // pred_check_branch
          %907 = sbr.rel (%p905) target = $region96
        $region95: #{tpu_custom_call.1} parent=11 // pred_region
          _
        $region96: #{tpu_custom_call.1} parent=11 // pred_fallthru
          _
        // Predicated region
        $region97: #{tpu_custom_call.1} parent=11 // pred_check
          %p908 = pneg %p642
        $region98: #{tpu_custom_call.1} parent=11 // pred_check_branch
          %910 = sbr.rel (%p908) target = $region100
        $region99: #{tpu_custom_call.1} parent=11 // pred_region
          _
        $region100: #{tpu_custom_call.1} parent=11 // pred_fallthru
          _
        // Predicated region
        $region101: #{tpu_custom_call.1} parent=11 // pred_check
          %p911 = pneg %p663
        $region102: #{tpu_custom_call.1} parent=11 // pred_check_branch
          %913 = sbr.rel (%p911) target = $region104
        $region103: #{tpu_custom_call.1} parent=11 // pred_region
          _
        $region104: #{tpu_custom_call.1} parent=11 // pred_fallthru
          _
        // Predicated region
        $region105: #{tpu_custom_call.1} parent=11 // pred_check
          %p914 = pneg %p684
        $region106: #{tpu_custom_call.1} parent=11 // pred_check_branch
          %916 = sbr.rel (%p914) target = $region108
        $region107: #{tpu_custom_call.1} parent=11 // pred_region
          _
        $region108: #{tpu_custom_call.1} parent=11 // pred_fallthru
          _
        // Predicated region
        $region109: #{tpu_custom_call.1} parent=11 // pred_check
          %p917 = pneg %p705
        $region110: #{tpu_custom_call.1} parent=11 // pred_check_branch
          %919 = sbr.rel (%p917) target = $region112
        $region111: #{tpu_custom_call.1} parent=11 // pred_region
          _
        $region112: #{tpu_custom_call.1} parent=11 // pred_fallthru
          _
        // Predicated region
        $region113: #{tpu_custom_call.1} parent=11 // pred_check
          %p920 = pneg %p726
        $region114: #{tpu_custom_call.1} parent=11 // pred_check_branch
          %922 = sbr.rel (%p920) target = $region116
        $region115: #{tpu_custom_call.1} parent=11 // pred_region
          _
        $region116: #{tpu_custom_call.1} parent=11 // pred_fallthru
          _
      $region12: #{tpu_custom_call.1} parent=5 // pred_fallthru
        _
      %p923 = scmp.lt.s32.totalorder %s76, 2
      // Predicated region
      $region117: #{tpu_custom_call.1} parent=5 // pred_check
        %p924 = pneg %p923
      $region118: #{tpu_custom_call.1} parent=5 // pred_check_branch
        %926 = sbr.rel (%p924) target = $region120
      $region119: #{tpu_custom_call.1} parent=5 // pred_region
        // Predicated region
        $region121: #{tpu_custom_call.1} parent=119 // pred_check
          %p927 = pneg %p96
        $region122: #{tpu_custom_call.1} parent=119 // pred_check_branch
          %929 = sbr.rel (%p927) target = $region124
        $region123: #{tpu_custom_call.1} parent=119 // pred_region
          %p930 = scmp.lt.s32.totalorder %s76, 1
          %s931 = scalar_select %p930, %s76, 1
          %s932 = smul.addr %s931, 8
          %s933 = scalar_lea.vmem %s1, %s932
        $region124: #{tpu_custom_call.1} parent=119 // pred_fallthru
          _
        // Predicated region
        $region125: #{tpu_custom_call.1} parent=119 // pred_check
          %p934 = pneg %p122
        $region126: #{tpu_custom_call.1} parent=119 // pred_check_branch
          %936 = sbr.rel (%p934) target = $region128
        $region127: #{tpu_custom_call.1} parent=119 // pred_region
          %p937 = scmp.lt.s32.totalorder %s76, 1
          %s938 = scalar_select %p937, %s76, 1
          %s939 = smul.addr %s938, 8
          %s940 = scalar_lea.vmem %s3, %s939
        $region128: #{tpu_custom_call.1} parent=119 // pred_fallthru
          _
        // Predicated region
        $region129: #{tpu_custom_call.1} parent=119 // pred_check
          %p941 = pneg %p148
        $region130: #{tpu_custom_call.1} parent=119 // pred_check_branch
          %943 = sbr.rel (%p941) target = $region132
        $region131: #{tpu_custom_call.1} parent=119 // pred_region
          %p944 = scmp.lt.s32.totalorder %s76, 1
          %s945 = scalar_select %p944, %s76, 1
          %s946 = smul.addr %s945, 8
          %s947 = scalar_lea.vmem %s5, %s946
        $region132: #{tpu_custom_call.1} parent=119 // pred_fallthru
          _
        // Predicated region
        $region133: #{tpu_custom_call.1} parent=119 // pred_check
          %p948 = pneg %p174
        $region134: #{tpu_custom_call.1} parent=119 // pred_check_branch
          %950 = sbr.rel (%p948) target = $region136
        $region135: #{tpu_custom_call.1} parent=119 // pred_region
          %p951 = scmp.lt.s32.totalorder %s76, 1
          %s952 = scalar_select %p951, %s76, 1
          %s953 = smul.addr %s952, 8
          %s954 = scalar_lea.vmem %s7, %s953
        $region136: #{tpu_custom_call.1} parent=119 // pred_fallthru
          _
      $region120: #{tpu_custom_call.1} parent=5 // pred_fallthru
        _
      %p955 = scmp.le.s32.totalorder 1, %s76
      %p956 = scmp.lt.s32.totalorder %s76, 3
      %p957 = pnand %p955, %p956
      %p958 = pneg %p957
      // Predicated region
      $region137: #{tpu_custom_call.1} parent=5 // pred_check
        _
      $region138: #{tpu_custom_call.1} parent=5 // pred_check_branch
        %960 = sbr.rel (%p957) target = $region140
      $region139: #{tpu_custom_call.1} parent=5 // pred_region
        %s961 = ssub.s32 %s76, 1
        %p962 = scmp.lt.s32.totalorder %s81, 1
        %s963 = scalar_select %p962, %s81, 1
        %s964 = smul.addr %s963, 8
        %s965 = scalar_lea.vmem %s1, %s964
        %p966 = pneg %p102
        %p967 = pneg %p99
        %p968 = scmp.lt.s32.totalorder %s81, 1
        %s969 = scalar_select %p968, %s81, 1
        %s970 = smul.addr %s969, 8
        %s971 = scalar_lea.vmem %s3, %s970
        %p972 = pneg %p128
        %p973 = pneg %p125
        %p974 = scmp.lt.s32.totalorder %s81, 1
        %s975 = scalar_select %p974, %s81, 1
        %s976 = smul.addr %s975, 8
        %s977 = scalar_lea.vmem %s5, %s976
        %p978 = pneg %p154
        %p979 = pneg %p151
        %p980 = scmp.lt.s32.totalorder %s81, 1
        %s981 = scalar_select %p980, %s81, 1
        %s982 = smul.addr %s981, 8
        %s983 = scalar_lea.vmem %s7, %s982
        %p984 = pneg %p180
        %p985 = pneg %p177
        %p986 = pneg %p201
        %p987 = pneg %p198
        %p988 = pneg %p222
        %p989 = pneg %p219
        %p990 = pneg %p243
        %p991 = pneg %p240
        %p992 = pneg %p264
        %p993 = pneg %p261
        %p994 = pneg %p285
        %p995 = pneg %p282
        %p996 = pneg %p306
        %p997 = pneg %p303
        %p998 = pneg %p327
        %p999 = pneg %p324
        %p1000 = pneg %p348
        %p1001 = pneg %p345
        %p1002 = pneg %p369
        %p1003 = pneg %p366
        %p1004 = pneg %p390
        %p1005 = pneg %p387
        %p1006 = pneg %p411
        %p1007 = pneg %p408
        %p1008 = pneg %p432
        %p1009 = pneg %p429
        %p1010 = pneg %p453
        %p1011 = pneg %p450
        %p1012 = pneg %p474
        %p1013 = pneg %p471
        %p1014 = pneg %p495
        %p1015 = pneg %p492
        %p1016 = pneg %p516
        %p1017 = pneg %p513
        %p1018 = pneg %p537
        %p1019 = pneg %p534
        %p1020 = pneg %p558
        %p1021 = pneg %p555
        %p1022 = pneg %p579
        %p1023 = pneg %p576
        %p1024 = pneg %p600
        %p1025 = pneg %p597
        %p1026 = pneg %p621
        %p1027 = pneg %p618
        %p1028 = pneg %p642
        %p1029 = pneg %p639
        %p1030 = pneg %p663
        %p1031 = pneg %p660
        %p1032 = pneg %p684
        %p1033 = pneg %p681
        %p1034 = pneg %p705
        %p1035 = pneg %p702
        %p1036 = pneg %p726
        %p1037 = pneg %p723
        %p1038 = pneg %p752
        %p1039 = pneg %p749
        %s1040 = sand.u32 %s739, 1
        %s1041 = sand.u32 %s739, 1
        %s1042 = smul.addr %s1041, 16
        %s1043 = scalar_lea.vmem [#allocation4], %s1042
        %p1044 = pneg %p778
        %p1045 = pneg %p775
        %s1046 = sand.u32 %s765, 1
        %s1047 = sand.u32 %s765, 1
        %s1048 = smul.addr %s1047, 16
        %s1049 = scalar_lea.vmem [#allocation5], %s1048
        %p1050 = pneg %p804
        %p1051 = pneg %p801
        %s1052 = sand.u32 %s791, 1
        %s1053 = sand.u32 %s791, 1
        %s1054 = smul.addr %s1053, 16
        %s1055 = scalar_lea.vmem [#allocation6], %s1054
        %p1056 = pneg %p830
        %p1057 = pneg %p827
        %s1058 = sand.u32 %s817, 1
        %s1059 = sand.u32 %s817, 1
        %s1060 = smul.addr %s1059, 16
        %s1061 = scalar_lea.vmem [#allocation7], %s1060
        %p1062 = scmp.lt.s32.totalorder %s81, 1
        %s1063 = scalar_select %p1062, %s81, 1
        %s1064 = smul.addr %s1063, 8
        %s1065 = scalar_lea.vmem %s1, %s1064
        %p1066 = scmp.lt.s32.totalorder %s81, 1
        %s1067 = scalar_select %p1066, %s81, 1
        %s1068 = smul.addr %s1067, 8
        %s1069 = scalar_lea.vmem %s3, %s1068
        %p1070 = scmp.lt.s32.totalorder %s81, 1
        %s1071 = scalar_select %p1070, %s81, 1
        %s1072 = smul.addr %s1071, 8
        %s1073 = scalar_lea.vmem %s5, %s1072
        %p1074 = scmp.lt.s32.totalorder %s81, 1
        %s1075 = scalar_select %p1074, %s81, 1
        %s1076 = smul.addr %s1075, 8
        %s1077 = scalar_lea.vmem %s7, %s1076
        %v1078 = vld [vmem:[%s1065] sm:$0xff]
        %v1079 = vld [vmem:[%s1069] sm:$0xff]
        %v1080 = vld [vmem:[%s1073] sm:$0xff]
        %v1081 = vld [vmem:[%s1077] sm:$0xff]
        %v1082 = vlaneseq
        %v1083 = vshrl.u32 %v1082, 7
        %v1084 = vlaneseq
        %v1085 = vand.u32 %v1084, 127
        %vm1086 = vcmp.eq.s32.totalorder %v1083, %v1085
        %v1087 = vsel %vm1086, 1, 0
        %v1088 = vcvt.s32.f32 %v1087
        %v1089 = vld [vmem:[%s9] sm:$0xff]
        %v1090 = vld [vmem:[%s9 + $0x8] sm:$0xff]
        %v1091 = vld [vmem:[%s9 + $0x10] sm:$0xff]
        %v1092 = vld [vmem:[%s9 + $0x18] sm:$0xff]
        %v1093 = vld [vmem:[%s11] sm:$0x1]
        %v1094 = vld [vmem:[%s13] sm:$0xff]
        %v1095 = vld [vmem:[%s13 + $0x8] sm:$0xff]
        %v1096 = vld [vmem:[%s13 + $0x10] sm:$0xff]
        %v1097 = vld [vmem:[%s13 + $0x18] sm:$0xff]
        %v1098 = vld [vmem:[%s13 + $0x20] sm:$0xff]
        %v1099 = vld [vmem:[%s13 + $0x28] sm:$0xff]
        %v1100 = vld [vmem:[%s13 + $0x30] sm:$0xff]
        %v1101 = vld [vmem:[%s13 + $0x38] sm:$0xff]
        %v1102 = vld [vmem:[%s15] sm:$0x1]
        %v1103 = vld [vmem:[%s17] sm:$0x1]
        %v1104 = vld [vmem:[#allocation3] sm:$0x1]
        %v1107 = vunpack.c.l.s4 1966171168
        %v1108 = vunpack.c.0.s8 %v1107
        %v1109 = vlaneseq
        %v1110 = vshrl.u32 %v1109, 7
        %v1111 = vsub.s32 %v1108, %v1110
        %v1112 = vrot.slane %v1078, %v1111
        %v1113 = vcombine.high %v1112, %v1112
        %v1115 = vunpack.c.l.s4 1966171168
        %v1116 = vunpack.c.0.s8 %v1115
        %v1117 = vlaneseq
        %v1118 = vshrl.u32 %v1117, 7
        %v1119 = vsub.s32 %v1116, %v1118
        %v1120 = vrot.slane %v1112, %v1119
        %v1122 = vunpack.c.l.s4 1966171168
        %v1123 = vunpack.c.0.s8 %v1122
        %v1124 = vlaneseq
        %v1125 = vshrl.u32 %v1124, 7
        %v1126 = vsub.s32 %v1123, %v1125
        %v1127 = vrot.slane %v1113, %v1126
        %v1128 = vcombine.high %v1120, %v1120
        %v1129 = vcombine.high %v1127, %v1127
        %v1130 = vlaneseq
        %v1131 = vshrl.u32 %v1130, 7
        %v1132 = vsub.s32 0, %v1131
        %v1133 = vrot.slane %v1120, %v1132
        %v1134 = vlaneseq
        %v1135 = vshrl.u32 %v1134, 7
        %v1136 = vsub.s32 0, %v1135
        %v1137 = vrot.slane %v1127, %v1136
        %v1138 = vlaneseq
        %v1139 = vshrl.u32 %v1138, 7
        %v1140 = vsub.s32 0, %v1139
        %v1141 = vrot.slane %v1128, %v1140
        %v1142 = vlaneseq
        %v1143 = vshrl.u32 %v1142, 7
        %v1144 = vsub.s32 0, %v1143
        %v1145 = vrot.slane %v1129, %v1144
        %v1150 = vsub.f32 %v1078, %v1133
        %v1151 = vsub.f32 %v1078, %v1137
        %v1152 = vsub.f32 %v1078, %v1141
        %v1153 = vsub.f32 %v1078, %v1145
        %v1154 = vand.u32 2147483647, %v1150
        %v1155 = vand.u32 2147483647, %v1151
        %v1156 = vand.u32 2147483647, %v1152
        %v1157 = vand.u32 2147483647, %v1153
        %v1159 = vlaneseq
        %v1160 = vshrl.u32 %v1159, 7
        %v1161 = vsub.s32 0, %v1160
        %v1162 = vrot.slane %v1093, %v1161
        %vm1164 = vcmask 261120
        %v1166 = vsel %vm1164, %v1154, 0
        %v1169 = vsel %vm1164, %v1155, 0
        %v1172 = vsel %vm1164, %v1156, 0
        %v1175 = vsel %vm1164, %v1157, 0
        %1177 = vmatprep.subr.mxu0 0.0
        %1178 = vmatpush1.msra.mxu0 %v1089
        %1179 = vmatprep.subr.mxu0 0.0
        %1180 = vmatpush1.msra.mxu0 %v1090
        %1181 = vmatprep.subr.mxu0 0.0
        %1182 = vmatpush1.msra.mxu0 %v1091
        %1183 = vmatprep.subr.mxu0 0.0
        %1184 = vmatpush1.msra.mxu0 %v1092
        %1185 = vmatprep.subr.mxu0 0.0
        %1186 = vmatpush1.msra.mxu0 0.0
        %1187 = vmatprep.subr.mxu0 0.0
        %1188 = vmatpush1.msra.mxu0 0.0
        %1189 = vmatprep.subr.mxu0 0.0
        %1190 = vmatpush1.msra.mxu0 0.0
        %1191 = vmatprep.subr.mxu0 0.0
        %1192 = vmatpush1.msra.mxu0 0.0
        %1193 = vmatprep.subr.mxu0 0.0
        %1194 = vmatpush1.msra.mxu0 0.0
        %1195 = vmatprep.subr.mxu0 0.0
        %1196 = vmatpush1.msra.mxu0 0.0
        %1197 = vmatprep.subr.mxu0 0.0
        %1198 = vmatpush1.msra.mxu0 0.0
        %1199 = vmatprep.subr.mxu0 0.0
        %1200 = vmatpush1.msra.mxu0 0.0
        %1201 = vmatprep.subr.mxu0 0.0
        %1202 = vmatpush1.msra.mxu0 0.0
        %1203 = vmatprep.subr.mxu0 0.0
        %1204 = vmatpush1.msra.mxu0 0.0
        %1205 = vmatprep.subr.mxu0 0.0
        %1206 = vmatpush1.msra.mxu0 0.0
        %1207 = vmatprep.subr.mxu0 0.0
        %1208 = vmatpush1.msra.mxu0 0.0
        %1209 = vmatprep.subr.mxu0 0.0
        %1210 = vmatpush1.msra.mxu0 0.0
        %1211 = vmatprep.subr.mxu0 0.0
        %1212 = vmatpush1.msra.mxu0 0.0
        %1213 = vmatprep.subr.mxu0 0.0
        %1214 = vmatpush1.msra.mxu0 0.0
        %1215 = vmatprep.subr.mxu0 0.0
        %1216 = vmatpush1.msra.mxu0 0.0
        %1217 = vmatprep.subr.mxu0 0.0
        %1218 = vmatpush1.msra.mxu0 0.0
        %1219 = vmatprep.subr.mxu0 0.0
        %1220 = vmatpush1.msra.mxu0 0.0
        %1221 = vmatprep.subr.mxu0 0.0
        %1222 = vmatpush1.msra.mxu0 0.0
        %1223 = vmatprep.subr.mxu0 0.0
        %1224 = vmatpush1.msra.mxu0 0.0
        %1225 = vmatprep.subr.mxu0 0.0
        %1226 = vmatpush1.msra.mxu0 0.0
        %1227 = vmatprep.subr.mxu0 0.0
        %1228 = vmatpush1.msra.mxu0 0.0
        %1229 = vmatprep.subr.mxu0 0.0
        %1230 = vmatpush1.msra.mxu0 0.0
        %1231 = vmatprep.subr.mxu0 0.0
        %1232 = vmatpush1.msra.mxu0 0.0
        %1233 = vmatprep.subr.mxu0 0.0
        %1234 = vmatpush1.msra.mxu0 0.0
        %1235 = vmatprep.subr.mxu0 0.0
        %1236 = vmatpush1.msra.mxu0 0.0
        %1237 = vmatprep.subr.mxu0 0.0
        %1238 = vmatpush1.msra.mxu0 0.0
        %1239 = vmatprep.subr.mxu0 0.0
        %1240 = vmatpush1.msra.mxu0 0.0
        %1241 = vmatprep.mubr.f32.mxu0 0.0
        %1242 = vmatmul.mubr.f32.gmra.mrb[0].mxu0 %v1166
        %v1243 = vpop.f32.mrb[0].mxu0
        %v1244 = vadd.f32 %v1162, %v1243
        %v1245 = vpop.f32.mrb[0].mxu0
        %1246 = vmatprep.mubr.f32.mxu0 0.0
        %1247 = vmatmul.mubr.f32.gmra.mrb[0].mxu0 %v1169
        %v1248 = vpop.f32.mrb[0].mxu0
        %v1249 = vadd.f32 %v1162, %v1248
        %v1250 = vpop.f32.mrb[0].mxu0
        %1251 = vmatprep.mubr.f32.mxu0 0.0
        %1252 = vmatmul.mubr.f32.gmra.mrb[0].mxu0 %v1172
        %v1253 = vpop.f32.mrb[0].mxu0
        %v1254 = vadd.f32 %v1162, %v1253
        %v1255 = vpop.f32.mrb[0].mxu0
        %1256 = vmatprep.mubr.f32.mxu0 0.0
        %1257 = vmatmul.mubr.f32.gmra.mrb[0].mxu0 %v1175
        %v1258 = vpop.f32.mrb[0].mxu0
        %v1259 = vadd.f32 %v1162, %v1258
        %v1260 = vpop.f32.mrb[0].mxu0
        %1261 = vdwg.mxu0
        %vm1262 = vcmp.ge.f32.partialorder %v1244, 0.0
        %vm1263 = vcmp.ge.f32.partialorder %v1249, 0.0
        %vm1264 = vcmp.ge.f32.partialorder %v1254, 0.0
        %vm1265 = vcmp.ge.f32.partialorder %v1259, 0.0
        %v1266 = vmul.f32 %v1244, 0.01
        %v1267 = vmul.f32 %v1249, 0.01
        %v1268 = vmul.f32 %v1254, 0.01
        %v1269 = vmul.f32 %v1259, 0.01
        %v1270 = vsel %vm1262, %v1244, %v1266
        %v1271 = vsel %vm1263, %v1249, %v1267
        %v1272 = vsel %vm1264, %v1254, %v1268
        %v1273 = vsel %vm1265, %v1259, %v1269
        %v1275 = vlaneseq
        %v1276 = vshrl.u32 %v1275, 7
        %v1277 = vsub.s32 0, %v1276
        %v1278 = vrot.slane %v1102, %v1277
        %vm1280 = vcmask 523264
        %v1282 = vsel %vm1280, %v1270, 0
        %v1285 = vsel %vm1280, %v1271, 0
        %v1288 = vsel %vm1280, %v1272, 0
        %v1291 = vsel %vm1280, %v1273, 0
        %1293 = vmatprep.subr.mxu0 0.0
        %1294 = vmatpush1.msra.mxu0 %v1094
        %1295 = vmatprep.subr.mxu0 0.0
        %1296 = vmatpush1.msra.mxu0 %v1095
        %1297 = vmatprep.subr.mxu0 0.0
        %1298 = vmatpush1.msra.mxu0 %v1096
        %1299 = vmatprep.subr.mxu0 0.0
        %1300 = vmatpush1.msra.mxu0 %v1097
        %1301 = vmatprep.subr.mxu0 0.0
        %1302 = vmatpush1.msra.mxu0 %v1098
        %1303 = vmatprep.subr.mxu0 0.0
        %1304 = vmatpush1.msra.mxu0 %v1099
        %1305 = vmatprep.subr.mxu0 0.0
        %1306 = vmatpush1.msra.mxu0 %v1100
        %1307 = vmatprep.subr.mxu0 0.0
        %1308 = vmatpush1.msra.mxu0 %v1101
        %1309 = vmatprep.subr.mxu0 0.0
        %1310 = vmatpush1.msra.mxu0 0.0
        %1311 = vmatprep.subr.mxu0 0.0
        %1312 = vmatpush1.msra.mxu0 0.0
        %1313 = vmatprep.subr.mxu0 0.0
        %1314 = vmatpush1.msra.mxu0 0.0
        %1315 = vmatprep.subr.mxu0 0.0
        %1316 = vmatpush1.msra.mxu0 0.0
        %1317 = vmatprep.subr.mxu0 0.0
        %1318 = vmatpush1.msra.mxu0 0.0
        %1319 = vmatprep.subr.mxu0 0.0
        %1320 = vmatpush1.msra.mxu0 0.0
        %1321 = vmatprep.subr.mxu0 0.0
        %1322 = vmatpush1.msra.mxu0 0.0
        %1323 = vmatprep.subr.mxu0 0.0
        %1324 = vmatpush1.msra.mxu0 0.0
        %1325 = vmatprep.subr.mxu0 0.0
        %1326 = vmatpush1.msra.mxu0 0.0
        %1327 = vmatprep.subr.mxu0 0.0
        %1328 = vmatpush1.msra.mxu0 0.0
        %1329 = vmatprep.subr.mxu0 0.0
        %1330 = vmatpush1.msra.mxu0 0.0
        %1331 = vmatprep.subr.mxu0 0.0
        %1332 = vmatpush1.msra.mxu0 0.0
        %1333 = vmatprep.subr.mxu0 0.0
        %1334 = vmatpush1.msra.mxu0 0.0
        %1335 = vmatprep.subr.mxu0 0.0
        %1336 = vmatpush1.msra.mxu0 0.0
        %1337 = vmatprep.subr.mxu0 0.0
        %1338 = vmatpush1.msra.mxu0 0.0
        %1339 = vmatprep.subr.mxu0 0.0
        %1340 = vmatpush1.msra.mxu0 0.0
        %1341 = vmatprep.subr.mxu0 0.0
        %1342 = vmatpush1.msra.mxu0 0.0
        %1343 = vmatprep.subr.mxu0 0.0
        %1344 = vmatpush1.msra.mxu0 0.0
        %1345 = vmatprep.subr.mxu0 0.0
        %1346 = vmatpush1.msra.mxu0 0.0
        %1347 = vmatprep.subr.mxu0 0.0
        %1348 = vmatpush1.msra.mxu0 0.0
        %1349 = vmatprep.subr.mxu0 0.0
        %1350 = vmatpush1.msra.mxu0 0.0
        %1351 = vmatprep.subr.mxu0 0.0
        %1352 = vmatpush1.msra.mxu0 0.0
        %1353 = vmatprep.subr.mxu0 0.0
        %1354 = vmatpush1.msra.mxu0 0.0
        %1355 = vmatprep.subr.mxu0 0.0
        %1356 = vmatpush1.msra.mxu0 0.0
        %1357 = vmatprep.mubr.f32.mxu0 0.0
        %1358 = vmatmul.mubr.f32.gmra.mrb[0].mxu0 %v1282
        %v1359 = vpop.f32.mrb[0].mxu0
        %v1360 = vadd.f32 %v1278, %v1359
        %v1361 = vpop.f32.mrb[0].mxu0
        %1362 = vmatprep.mubr.f32.mxu0 0.0
        %1363 = vmatmul.mubr.f32.gmra.mrb[0].mxu0 %v1285
        %v1364 = vpop.f32.mrb[0].mxu0
        %v1365 = vadd.f32 %v1278, %v1364
        %v1366 = vpop.f32.mrb[0].mxu0
        %1367 = vmatprep.mubr.f32.mxu0 0.0
        %1368 = vmatmul.mubr.f32.gmra.mrb[0].mxu0 %v1288
        %v1369 = vpop.f32.mrb[0].mxu0
        %v1370 = vadd.f32 %v1278, %v1369
        %v1371 = vpop.f32.mrb[0].mxu0
        %1372 = vmatprep.mubr.f32.mxu0 0.0
        %1373 = vmatmul.mubr.f32.gmra.mrb[0].mxu0 %v1291
        %v1374 = vpop.f32.mrb[0].mxu0
        %v1375 = vadd.f32 %v1278, %v1374
        %v1376 = vpop.f32.mrb[0].mxu0
        %1377 = vdwg.mxu0
        %vm1378 = vcmp.ge.f32.partialorder %v1360, 0.0
        %vm1379 = vcmp.ge.f32.partialorder %v1365, 0.0
        %vm1380 = vcmp.ge.f32.partialorder %v1370, 0.0
        %vm1381 = vcmp.ge.f32.partialorder %v1375, 0.0
        %v1382 = vmul.f32 %v1360, 0.01
        %v1383 = vmul.f32 %v1365, 0.01
        %v1384 = vmul.f32 %v1370, 0.01
        %v1385 = vmul.f32 %v1375, 0.01
        %v1386 = vsel %vm1378, %v1360, %v1382
        %v1387 = vsel %vm1379, %v1365, %v1383
        %v1388 = vsel %vm1380, %v1370, %v1384
        %v1389 = vsel %vm1381, %v1375, %v1385
        %v1391 = vlaneseq
        %v1392 = vshrl.u32 %v1391, 7
        %v1393 = vsub.s32 0, %v1392
        %v1394 = vrot.slane %v1103, %v1393
        %v1396 = vmul.f32 %v1386, %v1394
        %v1397 = vsel %vm1164, %v1396, 0.0
        %1398 = vadd.xlane.f32.xlu0 %v1397
        %v1399 = vpop.xlane.xlu0 %1398
        %v1401 = vlaneseq
        %v1402 = vshrl.u32 %v1401, 7
        %v1403 = vsub.s32 0, %v1402
        %v1404 = vrot.slane %v1104, %v1403
        %v1406 = vadd.f32 %v1399, %v1404
        %v1407 = vxor.u32 %v1406, 2147483648
        %v1408 = vmul.f32 %v1407, 1.442695
        %v1409 = vpow.pop %v1408
        %v1410 = vadd.f32 %v1409, 1.0
        %v1411 = vrcp.pop %v1410
        %v1412 = vmul.f32 1.0, %v1411
        %v1413 = vmul.f32 %v1387, %v1394
        %v1414 = vsel %vm1164, %v1413, 0.0
        %1415 = vadd.xlane.f32.xlu0 %v1414
        %v1416 = vpop.xlane.xlu0 %1415
        %v1417 = vadd.f32 %v1416, %v1404
        %v1418 = vxor.u32 %v1417, 2147483648
        %v1419 = vmul.f32 %v1418, 1.442695
        %v1420 = vpow.pop %v1419
        %v1421 = vadd.f32 %v1420, 1.0
        %v1422 = vrcp.pop %v1421
        %v1423 = vmul.f32 1.0, %v1422
        %v1424 = vmul.f32 %v1388, %v1394
        %v1425 = vsel %vm1164, %v1424, 0.0
        %1426 = vadd.xlane.f32.xlu0 %v1425
        %v1427 = vpop.xlane.xlu0 %1426
        %v1428 = vadd.f32 %v1427, %v1404
        %v1429 = vxor.u32 %v1428, 2147483648
        %v1430 = vmul.f32 %v1429, 1.442695
        %v1431 = vpow.pop %v1430
        %v1432 = vadd.f32 %v1431, 1.0
        %v1433 = vrcp.pop %v1432
        %v1434 = vmul.f32 1.0, %v1433
        %v1435 = vmul.f32 %v1389, %v1394
        %v1436 = vsel %vm1164, %v1435, 0.0
        %1437 = vadd.xlane.f32.xlu0 %v1436
        %v1438 = vpop.xlane.xlu0 %1437
        %v1439 = vadd.f32 %v1438, %v1404
        %v1440 = vxor.u32 %v1439, 2147483648
        %v1441 = vmul.f32 %v1440, 1.442695
        %v1442 = vpow.pop %v1441
        %v1443 = vadd.f32 %v1442, 1.0
        %v1444 = vrcp.pop %v1443
        %v1445 = vmul.f32 1.0, %v1444
        %1447 = vrot.lane.b32.xlu0 %v1423, 1
        %v1448 = vpop.permute.xlu0 %1447
        %1451 = vrot.lane.b32.xlu0 %v1434, 2
        %v1452 = vpop.permute.xlu0 %1451
        %1455 = vrot.lane.b32.xlu0 %v1445, 3
        %v1456 = vpop.permute.xlu0 %1455
        %vm1458 = vcmask 7168
        %v1459 = vsel %vm1458, %v1412, %v1448
        %vm1460 = vcmask 15360
        %v1461 = vsel %vm1460, %v1459, %v1452
        %vm1462 = vcmask 23552
        %v1463 = vsel %vm1462, %v1461, %v1456
        %v1464 = vsub.f32 1.0, %v1088
        %v1465 = vmul.f32 %v1080, %v1464
        %vm1466 = vcmask 31744
        %v1467 = vsel %vm1466, %v1465, 0.0
        %1468 = vadd.xlane.f32.xlu0 %v1467
        %v1469 = vpop.xlane.xlu0 %1468
        %v1470 = vmul.f32 %v1463, %v1465
        %v1471 = vand.u32 2147483647, %v1470
        %v1472 = vsel %vm1466, %v1471, 0.0
        %1473 = vadd.xlane.f32.xlu0 %v1472
        %v1474 = vpop.xlane.xlu0 %1473
        %v1475 = vmax.f32 %v1474, 1e-12
        %v1476 = vrcp.pop %v1475
        %v1477 = vmul.f32 %v1470, %v1476
        %v1478 = vmul.f32 %v1477, %v1469
        %v1479 = vadd.f32 %v1478, %v1088
        %v1480 = vadd.f32 %v1479, 1e-06
        %v1481 = vsel %vm1466, %v1480, 0.0
        %1482 = vadd.xlane.f32.xlu0 %v1481
        %v1483 = vpop.xlane.xlu0 %1482
        %v1484 = vrcp.pop %v1483
        %v1485 = vmul.f32 %v1480, %v1484
        %v1486 = vld [vmem:[%s21] sm:$0xff]
        %v1487 = vld [vmem:[%s21 + $0x8] sm:$0xff]
        %v1488 = vld [vmem:[%s21 + $0x10] sm:$0xff]
        %v1489 = vld [vmem:[%s21 + $0x18] sm:$0xff]
        %v1490 = vld [vmem:[%s23] sm:$0x1]
        %v1491 = vld [vmem:[%s25] sm:$0xff]
        %v1492 = vld [vmem:[%s25 + $0x8] sm:$0xff]
        %v1493 = vld [vmem:[%s25 + $0x10] sm:$0xff]
        %v1494 = vld [vmem:[%s25 + $0x18] sm:$0xff]
        %v1495 = vld [vmem:[%s25 + $0x20] sm:$0xff]
        %v1496 = vld [vmem:[%s25 + $0x28] sm:$0xff]
        %v1497 = vld [vmem:[%s25 + $0x30] sm:$0xff]
        %v1498 = vld [vmem:[%s25 + $0x38] sm:$0xff]
        %v1499 = vld [vmem:[%s27] sm:$0x1]
        %v1500 = vld [vmem:[%s29] sm:$0x1]
        %v1501 = vld [vmem:[%s31] sm:$0x1]
        %v1503 = vlaneseq
        %v1504 = vshrl.u32 %v1503, 7
        %v1505 = vsub.s32 0, %v1504
        %v1506 = vrot.slane %v1490, %v1505
        %1508 = vmatprep.subr.mxu0 0.0
        %1509 = vmatpush1.msra.mxu0 %v1486
        %1510 = vmatprep.subr.mxu0 0.0
        %1511 = vmatpush1.msra.mxu0 %v1487
        %1512 = vmatprep.subr.mxu0 0.0
        %1513 = vmatpush1.msra.mxu0 %v1488
        %1514 = vmatprep.subr.mxu0 0.0
        %1515 = vmatpush1.msra.mxu0 %v1489
        %1516 = vmatprep.subr.mxu0 0.0
        %1517 = vmatpush1.msra.mxu0 0.0
        %1518 = vmatprep.subr.mxu0 0.0
        %1519 = vmatpush1.msra.mxu0 0.0
        %1520 = vmatprep.subr.mxu0 0.0
        %1521 = vmatpush1.msra.mxu0 0.0
        %1522 = vmatprep.subr.mxu0 0.0
        %1523 = vmatpush1.msra.mxu0 0.0
        %1524 = vmatprep.subr.mxu0 0.0
        %1525 = vmatpush1.msra.mxu0 0.0
        %1526 = vmatprep.subr.mxu0 0.0
        %1527 = vmatpush1.msra.mxu0 0.0
        %1528 = vmatprep.subr.mxu0 0.0
        %1529 = vmatpush1.msra.mxu0 0.0
        %1530 = vmatprep.subr.mxu0 0.0
        %1531 = vmatpush1.msra.mxu0 0.0
        %1532 = vmatprep.subr.mxu0 0.0
        %1533 = vmatpush1.msra.mxu0 0.0
        %1534 = vmatprep.subr.mxu0 0.0
        %1535 = vmatpush1.msra.mxu0 0.0
        %1536 = vmatprep.subr.mxu0 0.0
        %1537 = vmatpush1.msra.mxu0 0.0
        %1538 = vmatprep.subr.mxu0 0.0
        %1539 = vmatpush1.msra.mxu0 0.0
        %1540 = vmatprep.subr.mxu0 0.0
        %1541 = vmatpush1.msra.mxu0 0.0
        %1542 = vmatprep.subr.mxu0 0.0
        %1543 = vmatpush1.msra.mxu0 0.0
        %1544 = vmatprep.subr.mxu0 0.0
        %1545 = vmatpush1.msra.mxu0 0.0
        %1546 = vmatprep.subr.mxu0 0.0
        %1547 = vmatpush1.msra.mxu0 0.0
        %1548 = vmatprep.subr.mxu0 0.0
        %1549 = vmatpush1.msra.mxu0 0.0
        %1550 = vmatprep.subr.mxu0 0.0
        %1551 = vmatpush1.msra.mxu0 0.0
        %1552 = vmatprep.subr.mxu0 0.0
        %1553 = vmatpush1.msra.mxu0 0.0
        %1554 = vmatprep.subr.mxu0 0.0
        %1555 = vmatpush1.msra.mxu0 0.0
        %1556 = vmatprep.subr.mxu0 0.0
        %1557 = vmatpush1.msra.mxu0 0.0
        %1558 = vmatprep.subr.mxu0 0.0
        %1559 = vmatpush1.msra.mxu0 0.0
        %1560 = vmatprep.subr.mxu0 0.0
        %1561 = vmatpush1.msra.mxu0 0.0
        %1562 = vmatprep.subr.mxu0 0.0
        %1563 = vmatpush1.msra.mxu0 0.0
        %1564 = vmatprep.subr.mxu0 0.0
        %1565 = vmatpush1.msra.mxu0 0.0
        %1566 = vmatprep.subr.mxu0 0.0
        %1567 = vmatpush1.msra.mxu0 0.0
        %1568 = vmatprep.subr.mxu0 0.0
        %1569 = vmatpush1.msra.mxu0 0.0
        %1570 = vmatprep.subr.mxu0 0.0
        %1571 = vmatpush1.msra.mxu0 0.0
        %1572 = vmatprep.mubr.f32.mxu0 0.0
        %1573 = vmatmul.mubr.f32.gmra.mrb[0].mxu0 %v1166
        %v1574 = vpop.f32.mrb[0].mxu0
        %v1575 = vadd.f32 %v1506, %v1574
        %v1576 = vpop.f32.mrb[0].mxu0
        %1577 = vmatprep.mubr.f32.mxu0 0.0
        %1578 = vmatmul.mubr.f32.gmra.mrb[0].mxu0 %v1169
        %v1579 = vpop.f32.mrb[0].mxu0
        %v1580 = vadd.f32 %v1506, %v1579
        %v1581 = vpop.f32.mrb[0].mxu0
        %1582 = vmatprep.mubr.f32.mxu0 0.0
        %1583 = vmatmul.mubr.f32.gmra.mrb[0].mxu0 %v1172
        %v1584 = vpop.f32.mrb[0].mxu0
        %v1585 = vadd.f32 %v1506, %v1584
        %v1586 = vpop.f32.mrb[0].mxu0
        %1587 = vmatprep.mubr.f32.mxu0 0.0
        %1588 = vmatmul.mubr.f32.gmra.mrb[0].mxu0 %v1175
        %v1589 = vpop.f32.mrb[0].mxu0
        %v1590 = vadd.f32 %v1506, %v1589
        %v1591 = vpop.f32.mrb[0].mxu0
        %1592 = vdwg.mxu0
        %vm1593 = vcmp.ge.f32.partialorder %v1575, 0.0
        %vm1594 = vcmp.ge.f32.partialorder %v1580, 0.0
        %vm1595 = vcmp.ge.f32.partialorder %v1585, 0.0
        %vm1596 = vcmp.ge.f32.partialorder %v1590, 0.0
        %v1597 = vmul.f32 %v1575, 0.01
        %v1598 = vmul.f32 %v1580, 0.01
        %v1599 = vmul.f32 %v1585, 0.01
        %v1600 = vmul.f32 %v1590, 0.01
        %v1601 = vsel %vm1593, %v1575, %v1597
        %v1602 = vsel %vm1594, %v1580, %v1598
        %v1603 = vsel %vm1595, %v1585, %v1599
        %v1604 = vsel %vm1596, %v1590, %v1600
        %v1606 = vlaneseq
        %v1607 = vshrl.u32 %v1606, 7
        %v1608 = vsub.s32 0, %v1607
        %v1609 = vrot.slane %v1499, %v1608
        %v1612 = vsel %vm1280, %v1601, 0
        %v1615 = vsel %vm1280, %v1602, 0
        %v1618 = vsel %vm1280, %v1603, 0
        %v1621 = vsel %vm1280, %v1604, 0
        %1623 = vmatprep.subr.mxu0 0.0
        %1624 = vmatpush1.msra.mxu0 %v1491
        %1625 = vmatprep.subr.mxu0 0.0
        %1626 = vmatpush1.msra.mxu0 %v1492
        %1627 = vmatprep.subr.mxu0 0.0
        %1628 = vmatpush1.msra.mxu0 %v1493
        %1629 = vmatprep.subr.mxu0 0.0
        %1630 = vmatpush1.msra.mxu0 %v1494
        %1631 = vmatprep.subr.mxu0 0.0
        %1632 = vmatpush1.msra.mxu0 %v1495
        %1633 = vmatprep.subr.mxu0 0.0
        %1634 = vmatpush1.msra.mxu0 %v1496
        %1635 = vmatprep.subr.mxu0 0.0
        %1636 = vmatpush1.msra.mxu0 %v1497
        %1637 = vmatprep.subr.mxu0 0.0
        %1638 = vmatpush1.msra.mxu0 %v1498
        %1639 = vmatprep.subr.mxu0 0.0
        %1640 = vmatpush1.msra.mxu0 0.0
        %1641 = vmatprep.subr.mxu0 0.0
        %1642 = vmatpush1.msra.mxu0 0.0
        %1643 = vmatprep.subr.mxu0 0.0
        %1644 = vmatpush1.msra.mxu0 0.0
        %1645 = vmatprep.subr.mxu0 0.0
        %1646 = vmatpush1.msra.mxu0 0.0
        %1647 = vmatprep.subr.mxu0 0.0
        %1648 = vmatpush1.msra.mxu0 0.0
        %1649 = vmatprep.subr.mxu0 0.0
        %1650 = vmatpush1.msra.mxu0 0.0
        %1651 = vmatprep.subr.mxu0 0.0
        %1652 = vmatpush1.msra.mxu0 0.0
        %1653 = vmatprep.subr.mxu0 0.0
        %1654 = vmatpush1.msra.mxu0 0.0
        %1655 = vmatprep.subr.mxu0 0.0
        %1656 = vmatpush1.msra.mxu0 0.0
        %1657 = vmatprep.subr.mxu0 0.0
        %1658 = vmatpush1.msra.mxu0 0.0
        %1659 = vmatprep.subr.mxu0 0.0
        %1660 = vmatpush1.msra.mxu0 0.0
        %1661 = vmatprep.subr.mxu0 0.0
        %1662 = vmatpush1.msra.mxu0 0.0
        %1663 = vmatprep.subr.mxu0 0.0
        %1664 = vmatpush1.msra.mxu0 0.0
        %1665 = vmatprep.subr.mxu0 0.0
        %1666 = vmatpush1.msra.mxu0 0.0
        %1667 = vmatprep.subr.mxu0 0.0
        %1668 = vmatpush1.msra.mxu0 0.0
        %1669 = vmatprep.subr.mxu0 0.0
        %1670 = vmatpush1.msra.mxu0 0.0
        %1671 = vmatprep.subr.mxu0 0.0
        %1672 = vmatpush1.msra.mxu0 0.0
        %1673 = vmatprep.subr.mxu0 0.0
        %1674 = vmatpush1.msra.mxu0 0.0
        %1675 = vmatprep.subr.mxu0 0.0
        %1676 = vmatpush1.msra.mxu0 0.0
        %1677 = vmatprep.subr.mxu0 0.0
        %1678 = vmatpush1.msra.mxu0 0.0
        %1679 = vmatprep.subr.mxu0 0.0
        %1680 = vmatpush1.msra.mxu0 0.0
        %1681 = vmatprep.subr.mxu0 0.0
        %1682 = vmatpush1.msra.mxu0 0.0
        %1683 = vmatprep.subr.mxu0 0.0
        %1684 = vmatpush1.msra.mxu0 0.0
        %1685 = vmatprep.subr.mxu0 0.0
        %1686 = vmatpush1.msra.mxu0 0.0
        %1687 = vmatprep.mubr.f32.mxu0 0.0
        %1688 = vmatmul.mubr.f32.gmra.mrb[0].mxu0 %v1612
        %v1689 = vpop.f32.mrb[0].mxu0
        %v1690 = vadd.f32 %v1609, %v1689
        %v1691 = vpop.f32.mrb[0].mxu0
        %1692 = vmatprep.mubr.f32.mxu0 0.0
        %1693 = vmatmul.mubr.f32.gmra.mrb[0].mxu0 %v1615
        %v1694 = vpop.f32.mrb[0].mxu0
        %v1695 = vadd.f32 %v1609, %v1694
        %v1696 = vpop.f32.mrb[0].mxu0
        %1697 = vmatprep.mubr.f32.mxu0 0.0
        %1698 = vmatmul.mubr.f32.gmra.mrb[0].mxu0 %v1618
        %v1699 = vpop.f32.mrb[0].mxu0
        %v1700 = vadd.f32 %v1609, %v1699
        %v1701 = vpop.f32.mrb[0].mxu0
        %1702 = vmatprep.mubr.f32.mxu0 0.0
        %1703 = vmatmul.mubr.f32.gmra.mrb[0].mxu0 %v1621
        %v1704 = vpop.f32.mrb[0].mxu0
        %v1705 = vadd.f32 %v1609, %v1704
        %v1706 = vpop.f32.mrb[0].mxu0
        %1707 = vdwg.mxu0
        %vm1708 = vcmp.ge.f32.partialorder %v1690, 0.0
        %vm1709 = vcmp.ge.f32.partialorder %v1695, 0.0
        %vm1710 = vcmp.ge.f32.partialorder %v1700, 0.0
        %vm1711 = vcmp.ge.f32.partialorder %v1705, 0.0
        %v1712 = vmul.f32 %v1690, 0.01
        %v1713 = vmul.f32 %v1695, 0.01
        %v1714 = vmul.f32 %v1700, 0.01
        %v1715 = vmul.f32 %v1705, 0.01
        %v1716 = vsel %vm1708, %v1690, %v1712
        %v1717 = vsel %vm1709, %v1695, %v1713
        %v1718 = vsel %vm1710, %v1700, %v1714
        %v1719 = vsel %vm1711, %v1705, %v1715
        %v1721 = vlaneseq
        %v1722 = vshrl.u32 %v1721, 7
        %v1723 = vsub.s32 0, %v1722
        %v1724 = vrot.slane %v1500, %v1723
        %v1726 = vmul.f32 %v1716, %v1724
        %v1727 = vsel %vm1164, %v1726, 0.0
        %1728 = vadd.xlane.f32.xlu0 %v1727
        %v1729 = vpop.xlane.xlu0 %1728
        %v1731 = vlaneseq
        %v1732 = vshrl.u32 %v1731, 7
        %v1733 = vsub.s32 0, %v1732
        %v1734 = vrot.slane %v1501, %v1733
        %v1736 = vadd.f32 %v1729, %v1734
        %v1737 = vxor.u32 %v1736, 2147483648
        %v1738 = vmul.f32 %v1737, 1.442695
        %v1739 = vpow.pop %v1738
        %v1740 = vadd.f32 %v1739, 1.0
        %v1741 = vrcp.pop %v1740
        %v1742 = vmul.f32 1.0, %v1741
        %v1743 = vsel %vm1164, %v1154, 0.0
        %1744 = vadd.xlane.f32.xlu0 %v1743
        %v1745 = vpop.xlane.xlu0 %1744
        %v1746 = vsub.f32 0.0, %v1745
        %v1747 = vmul.f32 %v1717, %v1724
        %v1748 = vsel %vm1164, %v1747, 0.0
        %1749 = vadd.xlane.f32.xlu0 %v1748
        %v1750 = vpop.xlane.xlu0 %1749
        %v1751 = vadd.f32 %v1750, %v1734
        %v1752 = vxor.u32 %v1751, 2147483648
        %v1753 = vmul.f32 %v1752, 1.442695
        %v1754 = vpow.pop %v1753
        %v1755 = vadd.f32 %v1754, 1.0
        %v1756 = vrcp.pop %v1755
        %v1757 = vmul.f32 1.0, %v1756
        %v1758 = vsel %vm1164, %v1155, 0.0
        %1759 = vadd.xlane.f32.xlu0 %v1758
        %v1760 = vpop.xlane.xlu0 %1759
        %v1761 = vsub.f32 0.0, %v1760
        %v1762 = vmul.f32 %v1718, %v1724
        %v1763 = vsel %vm1164, %v1762, 0.0
        %1764 = vadd.xlane.f32.xlu0 %v1763
        %v1765 = vpop.xlane.xlu0 %1764
        %v1766 = vadd.f32 %v1765, %v1734
        %v1767 = vxor.u32 %v1766, 2147483648
        %v1768 = vmul.f32 %v1767, 1.442695
        %v1769 = vpow.pop %v1768
        %v1770 = vadd.f32 %v1769, 1.0
        %v1771 = vrcp.pop %v1770
        %v1772 = vmul.f32 1.0, %v1771
        %v1773 = vsel %vm1164, %v1156, 0.0
        %1774 = vadd.xlane.f32.xlu0 %v1773
        %v1775 = vpop.xlane.xlu0 %1774
        %v1776 = vsub.f32 0.0, %v1775
        %v1777 = vmul.f32 %v1719, %v1724
        %v1778 = vsel %vm1164, %v1777, 0.0
        %1779 = vadd.xlane.f32.xlu0 %v1778
        %v1780 = vpop.xlane.xlu0 %1779
        %v1781 = vadd.f32 %v1780, %v1734
        %v1782 = vxor.u32 %v1781, 2147483648
        %v1783 = vmul.f32 %v1782, 1.442695
        %v1784 = vpow.pop %v1783
        %v1785 = vadd.f32 %v1784, 1.0
        %v1786 = vrcp.pop %v1785
        %v1787 = vmul.f32 1.0, %v1786
        %v1788 = vsel %vm1164, %v1157, 0.0
        %1789 = vadd.xlane.f32.xlu0 %v1788
        %v1790 = vpop.xlane.xlu0 %1789
        %v1791 = vsub.f32 0.0, %v1790
        %1793 = vrot.lane.b32.xlu0 %v1757, 1
        %v1794 = vpop.permute.xlu0 %1793
        %1797 = vrot.lane.b32.xlu0 %v1772, 2
        %v1798 = vpop.permute.xlu0 %1797
        %1801 = vrot.lane.b32.xlu0 %v1787, 3
        %v1802 = vpop.permute.xlu0 %1801
        %v1804 = vsel %vm1458, %v1742, %v1794
        %v1805 = vsel %vm1460, %v1804, %v1798
        %v1806 = vsel %vm1462, %v1805, %v1802
        %v1807 = vsel %vm1458, %v1746, %v1761
        %v1808 = vsel %vm1460, %v1807, %v1776
        %v1809 = vsel %vm1462, %v1808, %v1791
        %v1810 = vmul.f32 %v1485, %v1464
        %v1811 = vsel %vm1466, %v1810, 0.0
        %1812 = vadd.xlane.f32.xlu0 %v1811
        %v1813 = vpop.xlane.xlu0 %1812
        %v1814 = vmul.f32 %v1806, %v1810
        %v1815 = vand.u32 2147483647, %v1814
        %v1816 = vsel %vm1466, %v1815, 0.0
        %1817 = vadd.xlane.f32.xlu0 %v1816
        %v1818 = vpop.xlane.xlu0 %1817
        %v1819 = vmax.f32 %v1818, 1e-12
        %v1820 = vrcp.pop %v1819
        %v1821 = vmul.f32 %v1814, %v1820
        %v1822 = vmul.f32 %v1821, %v1813
        %v1823 = vadd.f32 %v1822, %v1088
        %v1824 = vadd.f32 %v1823, 1e-06
        %v1825 = vsel %vm1466, %v1824, 0.0
        %1826 = vadd.xlane.f32.xlu0 %v1825
        %v1827 = vpop.xlane.xlu0 %1826
        %v1828 = vrcp.pop %v1827
        %v1829 = vmul.f32 %v1824, %v1828
        %v1830 = vld [vmem:[%s33] sm:$0xf]
        %v1831 = vld [vmem:[%s35] sm:$0xf]
        %v1832 = vld [vmem:[%s37] sm:$0x1]
        %v1834 = vsel %vm1466, %v1079, 0
        %vm1836 = vcmask 1043456
        %v1838 = vsel %vm1836, %v1831, 0
        %1840 = vmatprep.subr.mxu0 0.0
        %1841 = vmatpush1.msra.mxu0 %v1838
        %1842 = vmatprep.subr.mxu0 0.0
        %1843 = vmatpush1.msra.mxu0 0.0
        %1844 = vmatprep.subr.mxu0 0.0
        %1845 = vmatpush1.msra.mxu0 0.0
        %1846 = vmatprep.subr.mxu0 0.0
        %1847 = vmatpush1.msra.mxu0 0.0
        %1848 = vmatprep.subr.mxu0 0.0
        %1849 = vmatpush1.msra.mxu0 0.0
        %1850 = vmatprep.subr.mxu0 0.0
        %1851 = vmatpush1.msra.mxu0 0.0
        %1852 = vmatprep.subr.mxu0 0.0
        %1853 = vmatpush1.msra.mxu0 0.0
        %1854 = vmatprep.subr.mxu0 0.0
        %1855 = vmatpush1.msra.mxu0 0.0
        %1856 = vmatprep.subr.mxu0 0.0
        %1857 = vmatpush1.msra.mxu0 0.0
        %1858 = vmatprep.subr.mxu0 0.0
        %1859 = vmatpush1.msra.mxu0 0.0
        %1860 = vmatprep.subr.mxu0 0.0
        %1861 = vmatpush1.msra.mxu0 0.0
        %1862 = vmatprep.subr.mxu0 0.0
        %1863 = vmatpush1.msra.mxu0 0.0
        %1864 = vmatprep.subr.mxu0 0.0
        %1865 = vmatpush1.msra.mxu0 0.0
        %1866 = vmatprep.subr.mxu0 0.0
        %1867 = vmatpush1.msra.mxu0 0.0
        %1868 = vmatprep.subr.mxu0 0.0
        %1869 = vmatpush1.msra.mxu0 0.0
        %1870 = vmatprep.subr.mxu0 0.0
        %1871 = vmatpush1.msra.mxu0 0.0
        %1872 = vmatprep.subr.mxu0 0.0
        %1873 = vmatpush1.msra.mxu0 0.0
        %1874 = vmatprep.subr.mxu0 0.0
        %1875 = vmatpush1.msra.mxu0 0.0
        %1876 = vmatprep.subr.mxu0 0.0
        %1877 = vmatpush1.msra.mxu0 0.0
        %1878 = vmatprep.subr.mxu0 0.0
        %1879 = vmatpush1.msra.mxu0 0.0
        %1880 = vmatprep.subr.mxu0 0.0
        %1881 = vmatpush1.msra.mxu0 0.0
        %1882 = vmatprep.subr.mxu0 0.0
        %1883 = vmatpush1.msra.mxu0 0.0
        %1884 = vmatprep.subr.mxu0 0.0
        %1885 = vmatpush1.msra.mxu0 0.0
        %1886 = vmatprep.subr.mxu0 0.0
        %1887 = vmatpush1.msra.mxu0 0.0
        %1888 = vmatprep.subr.mxu0 0.0
        %1889 = vmatpush1.msra.mxu0 0.0
        %1890 = vmatprep.subr.mxu0 0.0
        %1891 = vmatpush1.msra.mxu0 0.0
        %1892 = vmatprep.subr.mxu0 0.0
        %1893 = vmatpush1.msra.mxu0 0.0
        %1894 = vmatprep.subr.mxu0 0.0
        %1895 = vmatpush1.msra.mxu0 0.0
        %1896 = vmatprep.subr.mxu0 0.0
        %1897 = vmatpush1.msra.mxu0 0.0
        %1898 = vmatprep.subr.mxu0 0.0
        %1899 = vmatpush1.msra.mxu0 0.0
        %1900 = vmatprep.subr.mxu0 0.0
        %1901 = vmatpush1.msra.mxu0 0.0
        %1902 = vmatprep.subr.mxu0 0.0
        %1903 = vmatpush1.msra.mxu0 0.0
        %1904 = vmatprep.mubr.f32.mxu0 0.0
        %1905 = vmatmul.mubr.f32.gmra.mrb[0].mxu0 %v1834
        %v1906 = vpop.f32.mrb[0].mxu0
        %v1907 = vadd.f32 0.0, %v1906
        %v1908 = vpop.f32.mrb[0].mxu0
        %1909 = vdwg.mxu0
        %v1911 = vsel %vm1466, %v1829, 0
        %v1914 = vsel %vm1836, %v1830, 0
        %1916 = vmatprep.subr.mxu0 0.0
        %1917 = vmatpush1.msra.mxu0 %v1914
        %1918 = vmatprep.subr.mxu0 0.0
        %1919 = vmatpush1.msra.mxu0 0.0
        %1920 = vmatprep.subr.mxu0 0.0
        %1921 = vmatpush1.msra.mxu0 0.0
        %1922 = vmatprep.subr.mxu0 0.0
        %1923 = vmatpush1.msra.mxu0 0.0
        %1924 = vmatprep.subr.mxu0 0.0
        %1925 = vmatpush1.msra.mxu0 0.0
        %1926 = vmatprep.subr.mxu0 0.0
        %1927 = vmatpush1.msra.mxu0 0.0
        %1928 = vmatprep.subr.mxu0 0.0
        %1929 = vmatpush1.msra.mxu0 0.0
        %1930 = vmatprep.subr.mxu0 0.0
        %1931 = vmatpush1.msra.mxu0 0.0
        %1932 = vmatprep.subr.mxu0 0.0
        %1933 = vmatpush1.msra.mxu0 0.0
        %1934 = vmatprep.subr.mxu0 0.0
        %1935 = vmatpush1.msra.mxu0 0.0
        %1936 = vmatprep.subr.mxu0 0.0
        %1937 = vmatpush1.msra.mxu0 0.0
        %1938 = vmatprep.subr.mxu0 0.0
        %1939 = vmatpush1.msra.mxu0 0.0
        %1940 = vmatprep.subr.mxu0 0.0
        %1941 = vmatpush1.msra.mxu0 0.0
        %1942 = vmatprep.subr.mxu0 0.0
        %1943 = vmatpush1.msra.mxu0 0.0
        %1944 = vmatprep.subr.mxu0 0.0
        %1945 = vmatpush1.msra.mxu0 0.0
        %1946 = vmatprep.subr.mxu0 0.0
        %1947 = vmatpush1.msra.mxu0 0.0
        %1948 = vmatprep.subr.mxu0 0.0
        %1949 = vmatpush1.msra.mxu0 0.0
        %1950 = vmatprep.subr.mxu0 0.0
        %1951 = vmatpush1.msra.mxu0 0.0
        %1952 = vmatprep.subr.mxu0 0.0
        %1953 = vmatpush1.msra.mxu0 0.0
        %1954 = vmatprep.subr.mxu0 0.0
        %1955 = vmatpush1.msra.mxu0 0.0
        %1956 = vmatprep.subr.mxu0 0.0
        %1957 = vmatpush1.msra.mxu0 0.0
        %1958 = vmatprep.subr.mxu0 0.0
        %1959 = vmatpush1.msra.mxu0 0.0
        %1960 = vmatprep.subr.mxu0 0.0
        %1961 = vmatpush1.msra.mxu0 0.0
        %1962 = vmatprep.subr.mxu0 0.0
        %1963 = vmatpush1.msra.mxu0 0.0
        %1964 = vmatprep.subr.mxu0 0.0
        %1965 = vmatpush1.msra.mxu0 0.0
        %1966 = vmatprep.subr.mxu0 0.0
        %1967 = vmatpush1.msra.mxu0 0.0
        %1968 = vmatprep.subr.mxu0 0.0
        %1969 = vmatpush1.msra.mxu0 0.0
        %1970 = vmatprep.subr.mxu0 0.0
        %1971 = vmatpush1.msra.mxu0 0.0
        %1972 = vmatprep.subr.mxu0 0.0
        %1973 = vmatpush1.msra.mxu0 0.0
        %1974 = vmatprep.subr.mxu0 0.0
        %1975 = vmatpush1.msra.mxu0 0.0
        %1976 = vmatprep.subr.mxu0 0.0
        %1977 = vmatpush1.msra.mxu0 0.0
        %1978 = vmatprep.subr.mxu0 0.0
        %1979 = vmatpush1.msra.mxu0 0.0
        %1980 = vmatprep.mubr.f32.mxu0 0.0
        %1981 = vmatmul.mubr.f32.gmra.mrb[0].mxu0 %v1911
        %v1982 = vpop.f32.mrb[0].mxu0
        %v1983 = vadd.f32 %v1907, %v1982
        %v1984 = vpop.f32.mrb[0].mxu0
        %1985 = vdwg.mxu0
        %v1987 = vlaneseq
        %v1988 = vshrl.u32 %v1987, 7
        %v1989 = vsub.s32 0, %v1988
        %v1990 = vrot.slane %v1832, %v1989
        %v1992 = vadd.f32 %v1983, %v1990
        %vm1993 = vcmp.ge.f32.partialorder %v1992, 0.0
        %v1994 = vmul.f32 %v1992, 0.01
        %v1995 = vsel %vm1993, %v1992, %v1994
        %v1996 = vld [vmem:[%s39] sm:$0xf]
        %v1997 = vld [vmem:[%s41] sm:$0x1]
        %v1998 = vld [vmem:[%s43] sm:$0xff]
        %v1999 = vld [vmem:[%s45] sm:$0x1]
        %v2000 = vld [vmem:[%s47] sm:$0x1]
        %v2001 = vld [vmem:[%s49] sm:$0x1]
        %v2004 = vunpack.c.l.s4 1966171168
        %v2005 = vunpack.c.0.s8 %v2004
        %v2006 = vlaneseq
        %v2007 = vshrl.u32 %v2006, 7
        %v2008 = vsub.s32 %v2005, %v2007
        %v2009 = vrot.slane %v1995, %v2008
        %v2010 = vcombine.high %v2009, %v2009
        %v2012 = vunpack.c.l.s4 1966171168
        %v2013 = vunpack.c.0.s8 %v2012
        %v2014 = vlaneseq
        %v2015 = vshrl.u32 %v2014, 7
        %v2016 = vsub.s32 %v2013, %v2015
        %v2017 = vrot.slane %v2009, %v2016
        %v2019 = vunpack.c.l.s4 1966171168
        %v2020 = vunpack.c.0.s8 %v2019
        %v2021 = vlaneseq
        %v2022 = vshrl.u32 %v2021, 7
        %v2023 = vsub.s32 %v2020, %v2022
        %v2024 = vrot.slane %v2010, %v2023
        %v2025 = vcombine.high %v2017, %v2017
        %v2026 = vcombine.high %v2024, %v2024
        %v2027 = vlaneseq
        %v2028 = vshrl.u32 %v2027, 7
        %v2029 = vsub.s32 0, %v2028
        %v2030 = vrot.slane %v2017, %v2029
        %v2031 = vlaneseq
        %v2032 = vshrl.u32 %v2031, 7
        %v2033 = vsub.s32 0, %v2032
        %v2034 = vrot.slane %v2024, %v2033
        %v2035 = vlaneseq
        %v2036 = vshrl.u32 %v2035, 7
        %v2037 = vsub.s32 0, %v2036
        %v2038 = vrot.slane %v2025, %v2037
        %v2039 = vlaneseq
        %v2040 = vshrl.u32 %v2039, 7
        %v2041 = vsub.s32 0, %v2040
        %v2042 = vrot.slane %v2026, %v2041
        %v2047 = vsub.f32 %v1995, %v2030
        %v2048 = vsub.f32 %v1995, %v2034
        %v2049 = vsub.f32 %v1995, %v2038
        %v2050 = vsub.f32 %v1995, %v2042
        %v2051 = vmul.f32 %v2047, %v2047
        %v2052 = vmul.f32 %v2048, %v2048
        %v2053 = vmul.f32 %v2049, %v2049
        %v2054 = vmul.f32 %v2050, %v2050
        %v2056 = vlaneseq
        %v2057 = vshrl.u32 %v2056, 7
        %v2058 = vsub.s32 0, %v2057
        %v2059 = vrot.slane %v1997, %v2058
        %v2062 = vsel %vm1466, %v2051, 0
        %v2065 = vsel %vm1466, %v2052, 0
        %v2068 = vsel %vm1466, %v2053, 0
        %v2071 = vsel %vm1466, %v2054, 0
        %v2074 = vsel %vm1836, %v1996, 0
        %2076 = vmatprep.subr.mxu0 0.0
        %2077 = vmatpush1.msra.mxu0 %v2074
        %2078 = vmatprep.subr.mxu0 0.0
        %2079 = vmatpush1.msra.mxu0 0.0
        %2080 = vmatprep.subr.mxu0 0.0
        %2081 = vmatpush1.msra.mxu0 0.0
        %2082 = vmatprep.subr.mxu0 0.0
        %2083 = vmatpush1.msra.mxu0 0.0
        %2084 = vmatprep.subr.mxu0 0.0
        %2085 = vmatpush1.msra.mxu0 0.0
        %2086 = vmatprep.subr.mxu0 0.0
        %2087 = vmatpush1.msra.mxu0 0.0
        %2088 = vmatprep.subr.mxu0 0.0
        %2089 = vmatpush1.msra.mxu0 0.0
        %2090 = vmatprep.subr.mxu0 0.0
        %2091 = vmatpush1.msra.mxu0 0.0
        %2092 = vmatprep.subr.mxu0 0.0
        %2093 = vmatpush1.msra.mxu0 0.0
        %2094 = vmatprep.subr.mxu0 0.0
        %2095 = vmatpush1.msra.mxu0 0.0
        %2096 = vmatprep.subr.mxu0 0.0
        %2097 = vmatpush1.msra.mxu0 0.0
        %2098 = vmatprep.subr.mxu0 0.0
        %2099 = vmatpush1.msra.mxu0 0.0
        %2100 = vmatprep.subr.mxu0 0.0
        %2101 = vmatpush1.msra.mxu0 0.0
        %2102 = vmatprep.subr.mxu0 0.0
        %2103 = vmatpush1.msra.mxu0 0.0
        %2104 = vmatprep.subr.mxu0 0.0
        %2105 = vmatpush1.msra.mxu0 0.0
        %2106 = vmatprep.subr.mxu0 0.0
        %2107 = vmatpush1.msra.mxu0 0.0
        %2108 = vmatprep.subr.mxu0 0.0
        %2109 = vmatpush1.msra.mxu0 0.0
        %2110 = vmatprep.subr.mxu0 0.0
        %2111 = vmatpush1.msra.mxu0 0.0
        %2112 = vmatprep.subr.mxu0 0.0
        %2113 = vmatpush1.msra.mxu0 0.0
        %2114 = vmatprep.subr.mxu0 0.0
        %2115 = vmatpush1.msra.mxu0 0.0
        %2116 = vmatprep.subr.mxu0 0.0
        %2117 = vmatpush1.msra.mxu0 0.0
        %2118 = vmatprep.subr.mxu0 0.0
        %2119 = vmatpush1.msra.mxu0 0.0
        %2120 = vmatprep.subr.mxu0 0.0
        %2121 = vmatpush1.msra.mxu0 0.0
        %2122 = vmatprep.subr.mxu0 0.0
        %2123 = vmatpush1.msra.mxu0 0.0
        %2124 = vmatprep.subr.mxu0 0.0
        %2125 = vmatpush1.msra.mxu0 0.0
        %2126 = vmatprep.subr.mxu0 0.0
        %2127 = vmatpush1.msra.mxu0 0.0
        %2128 = vmatprep.subr.mxu0 0.0
        %2129 = vmatpush1.msra.mxu0 0.0
        %2130 = vmatprep.subr.mxu0 0.0
        %2131 = vmatpush1.msra.mxu0 0.0
        %2132 = vmatprep.subr.mxu0 0.0
        %2133 = vmatpush1.msra.mxu0 0.0
        %2134 = vmatprep.subr.mxu0 0.0
        %2135 = vmatpush1.msra.mxu0 0.0
        %2136 = vmatprep.subr.mxu0 0.0
        %2137 = vmatpush1.msra.mxu0 0.0
        %2138 = vmatprep.subr.mxu0 0.0
        %2139 = vmatpush1.msra.mxu0 0.0
        %2140 = vmatprep.mubr.f32.mxu0 0.0
        %2141 = vmatmul.mubr.f32.gmra.mrb[0].mxu0 %v2062
        %v2142 = vpop.f32.mrb[0].mxu0
        %v2143 = vadd.f32 %v2059, %v2142
        %v2144 = vpop.f32.mrb[0].mxu0
        %2145 = vmatprep.mubr.f32.mxu0 0.0
        %2146 = vmatmul.mubr.f32.gmra.mrb[0].mxu0 %v2065
        %v2147 = vpop.f32.mrb[0].mxu0
        %v2148 = vadd.f32 %v2059, %v2147
        %v2149 = vpop.f32.mrb[0].mxu0
        %2150 = vmatprep.mubr.f32.mxu0 0.0
        %2151 = vmatmul.mubr.f32.gmra.mrb[0].mxu0 %v2068
        %v2152 = vpop.f32.mrb[0].mxu0
        %v2153 = vadd.f32 %v2059, %v2152
        %v2154 = vpop.f32.mrb[0].mxu0
        %2155 = vmatprep.mubr.f32.mxu0 0.0
        %2156 = vmatmul.mubr.f32.gmra.mrb[0].mxu0 %v2071
        %v2157 = vpop.f32.mrb[0].mxu0
        %v2158 = vadd.f32 %v2059, %v2157
        %v2159 = vpop.f32.mrb[0].mxu0
        %2160 = vdwg.mxu0
        %vm2161 = vcmp.ge.f32.partialorder %v2143, 0.0
        %vm2162 = vcmp.ge.f32.partialorder %v2148, 0.0
        %vm2163 = vcmp.ge.f32.partialorder %v2153, 0.0
        %vm2164 = vcmp.ge.f32.partialorder %v2158, 0.0
        %v2165 = vmul.f32 %v2143, 0.01
        %v2166 = vmul.f32 %v2148, 0.01
        %v2167 = vmul.f32 %v2153, 0.01
        %v2168 = vmul.f32 %v2158, 0.01
        %v2169 = vsel %vm2161, %v2143, %v2165
        %v2170 = vsel %vm2162, %v2148, %v2166
        %v2171 = vsel %vm2163, %v2153, %v2167
        %v2172 = vsel %vm2164, %v2158, %v2168
        %v2174 = vlaneseq
        %v2175 = vshrl.u32 %v2174, 7
        %v2176 = vsub.s32 0, %v2175
        %v2177 = vrot.slane %v1999, %v2176
        %vm2179 = vcmask 64512
        %v2181 = vsel %vm2179, %v2169, 0
        %v2184 = vsel %vm2179, %v2170, 0
        %v2187 = vsel %vm2179, %v2171, 0
        %v2190 = vsel %vm2179, %v2172, 0
        %2192 = vmatprep.subr.mxu0 0.0
        %2193 = vmatpush1.msra.mxu0 %v1998
        %2194 = vmatprep.subr.mxu0 0.0
        %2195 = vmatpush1.msra.mxu0 0.0
        %2196 = vmatprep.subr.mxu0 0.0
        %2197 = vmatpush1.msra.mxu0 0.0
        %2198 = vmatprep.subr.mxu0 0.0
        %2199 = vmatpush1.msra.mxu0 0.0
        %2200 = vmatprep.subr.mxu0 0.0
        %2201 = vmatpush1.msra.mxu0 0.0
        %2202 = vmatprep.subr.mxu0 0.0
        %2203 = vmatpush1.msra.mxu0 0.0
        %2204 = vmatprep.subr.mxu0 0.0
        %2205 = vmatpush1.msra.mxu0 0.0
        %2206 = vmatprep.subr.mxu0 0.0
        %2207 = vmatpush1.msra.mxu0 0.0
        %2208 = vmatprep.subr.mxu0 0.0
        %2209 = vmatpush1.msra.mxu0 0.0
        %2210 = vmatprep.subr.mxu0 0.0
        %2211 = vmatpush1.msra.mxu0 0.0
        %2212 = vmatprep.subr.mxu0 0.0
        %2213 = vmatpush1.msra.mxu0 0.0
        %2214 = vmatprep.subr.mxu0 0.0
        %2215 = vmatpush1.msra.mxu0 0.0
        %2216 = vmatprep.subr.mxu0 0.0
        %2217 = vmatpush1.msra.mxu0 0.0
        %2218 = vmatprep.subr.mxu0 0.0
        %2219 = vmatpush1.msra.mxu0 0.0
        %2220 = vmatprep.subr.mxu0 0.0
        %2221 = vmatpush1.msra.mxu0 0.0
        %2222 = vmatprep.subr.mxu0 0.0
        %2223 = vmatpush1.msra.mxu0 0.0
        %2224 = vmatprep.subr.mxu0 0.0
        %2225 = vmatpush1.msra.mxu0 0.0
        %2226 = vmatprep.subr.mxu0 0.0
        %2227 = vmatpush1.msra.mxu0 0.0
        %2228 = vmatprep.subr.mxu0 0.0
        %2229 = vmatpush1.msra.mxu0 0.0
        %2230 = vmatprep.subr.mxu0 0.0
        %2231 = vmatpush1.msra.mxu0 0.0
        %2232 = vmatprep.subr.mxu0 0.0
        %2233 = vmatpush1.msra.mxu0 0.0
        %2234 = vmatprep.subr.mxu0 0.0
        %2235 = vmatpush1.msra.mxu0 0.0
        %2236 = vmatprep.subr.mxu0 0.0
        %2237 = vmatpush1.msra.mxu0 0.0
        %2238 = vmatprep.subr.mxu0 0.0
        %2239 = vmatpush1.msra.mxu0 0.0
        %2240 = vmatprep.subr.mxu0 0.0
        %2241 = vmatpush1.msra.mxu0 0.0
        %2242 = vmatprep.subr.mxu0 0.0
        %2243 = vmatpush1.msra.mxu0 0.0
        %2244 = vmatprep.subr.mxu0 0.0
        %2245 = vmatpush1.msra.mxu0 0.0
        %2246 = vmatprep.subr.mxu0 0.0
        %2247 = vmatpush1.msra.mxu0 0.0
        %2248 = vmatprep.subr.mxu0 0.0
        %2249 = vmatpush1.msra.mxu0 0.0
        %2250 = vmatprep.subr.mxu0 0.0
        %2251 = vmatpush1.msra.mxu0 0.0
        %2252 = vmatprep.subr.mxu0 0.0
        %2253 = vmatpush1.msra.mxu0 0.0
        %2254 = vmatprep.subr.mxu0 0.0
        %2255 = vmatpush1.msra.mxu0 0.0
        %2256 = vmatprep.mubr.f32.mxu0 0.0
        %2257 = vmatmul.mubr.f32.gmra.mrb[0].mxu0 %v2181
        %v2258 = vpop.f32.mrb[0].mxu0
        %v2259 = vadd.f32 %v2177, %v2258
        %v2260 = vpop.f32.mrb[0].mxu0
        %2261 = vmatprep.mubr.f32.mxu0 0.0
        %2262 = vmatmul.mubr.f32.gmra.mrb[0].mxu0 %v2184
        %v2263 = vpop.f32.mrb[0].mxu0
        %v2264 = vadd.f32 %v2177, %v2263
        %v2265 = vpop.f32.mrb[0].mxu0
        %2266 = vmatprep.mubr.f32.mxu0 0.0
        %2267 = vmatmul.mubr.f32.gmra.mrb[0].mxu0 %v2187
        %v2268 = vpop.f32.mrb[0].mxu0
        %v2269 = vadd.f32 %v2177, %v2268
        %v2270 = vpop.f32.mrb[0].mxu0
        %2271 = vmatprep.mubr.f32.mxu0 0.0
        %2272 = vmatmul.mubr.f32.gmra.mrb[0].mxu0 %v2190
        %v2273 = vpop.f32.mrb[0].mxu0
        %v2274 = vadd.f32 %v2177, %v2273
        %v2275 = vpop.f32.mrb[0].mxu0
        %2276 = vdwg.mxu0
        %vm2277 = vcmp.ge.f32.partialorder %v2259, 0.0
        %vm2278 = vcmp.ge.f32.partialorder %v2264, 0.0
        %vm2279 = vcmp.ge.f32.partialorder %v2269, 0.0
        %vm2280 = vcmp.ge.f32.partialorder %v2274, 0.0
        %v2281 = vmul.f32 %v2259, 0.01
        %v2282 = vmul.f32 %v2264, 0.01
        %v2283 = vmul.f32 %v2269, 0.01
        %v2284 = vmul.f32 %v2274, 0.01
        %v2285 = vsel %vm2277, %v2259, %v2281
        %v2286 = vsel %vm2278, %v2264, %v2282
        %v2287 = vsel %vm2279, %v2269, %v2283
        %v2288 = vsel %vm2280, %v2274, %v2284
        %v2290 = vlaneseq
        %v2291 = vshrl.u32 %v2290, 7
        %v2292 = vsub.s32 0, %v2291
        %v2293 = vrot.slane %v2000, %v2292
        %v2295 = vmul.f32 %v2285, %v2293
        %v2296 = vsel %vm1466, %v2295, 0.0
        %2297 = vadd.xlane.f32.xlu0 %v2296
        %v2298 = vpop.xlane.xlu0 %2297
        %v2300 = vlaneseq
        %v2301 = vshrl.u32 %v2300, 7
        %v2302 = vsub.s32 0, %v2301
        %v2303 = vrot.slane %v2001, %v2302
        %v2305 = vadd.f32 %v2298, %v2303
        %v2306 = vxor.u32 %v2305, 2147483648
        %v2307 = vmul.f32 %v2306, 1.442695
        %v2308 = vpow.pop %v2307
        %v2309 = vadd.f32 %v2308, 1.0
        %v2310 = vrcp.pop %v2309
        %v2311 = vmul.f32 1.0, %v2310
        %v2312 = vsel %vm1466, %v2051, 0.0
        %2313 = vadd.xlane.f32.xlu0 %v2312
        %v2314 = vpop.xlane.xlu0 %2313
        %v2315 = vsub.f32 0.0, %v2314
        %v2316 = vmul.f32 %v2315, 0.5
        %v2317 = vmul.f32 %v2286, %v2293
        %v2318 = vsel %vm1466, %v2317, 0.0
        %2319 = vadd.xlane.f32.xlu0 %v2318
        %v2320 = vpop.xlane.xlu0 %2319
        %v2321 = vadd.f32 %v2320, %v2303
        %v2322 = vxor.u32 %v2321, 2147483648
        %v2323 = vmul.f32 %v2322, 1.442695
        %v2324 = vpow.pop %v2323
        %v2325 = vadd.f32 %v2324, 1.0
        %v2326 = vrcp.pop %v2325
        %v2327 = vmul.f32 1.0, %v2326
        %v2328 = vsel %vm1466, %v2052, 0.0
        %2329 = vadd.xlane.f32.xlu0 %v2328
        %v2330 = vpop.xlane.xlu0 %2329
        %v2331 = vsub.f32 0.0, %v2330
        %v2332 = vmul.f32 %v2331, 0.5
        %v2333 = vmul.f32 %v2287, %v2293
        %v2334 = vsel %vm1466, %v2333, 0.0
        %2335 = vadd.xlane.f32.xlu0 %v2334
        %v2336 = vpop.xlane.xlu0 %2335
        %v2337 = vadd.f32 %v2336, %v2303
        %v2338 = vxor.u32 %v2337, 2147483648
        %v2339 = vmul.f32 %v2338, 1.442695
        %v2340 = vpow.pop %v2339
        %v2341 = vadd.f32 %v2340, 1.0
        %v2342 = vrcp.pop %v2341
        %v2343 = vmul.f32 1.0, %v2342
        %v2344 = vsel %vm1466, %v2053, 0.0
        %2345 = vadd.xlane.f32.xlu0 %v2344
        %v2346 = vpop.xlane.xlu0 %2345
        %v2347 = vsub.f32 0.0, %v2346
        %v2348 = vmul.f32 %v2347, 0.5
        %v2349 = vmul.f32 %v2288, %v2293
        %v2350 = vsel %vm1466, %v2349, 0.0
        %2351 = vadd.xlane.f32.xlu0 %v2350
        %v2352 = vpop.xlane.xlu0 %2351
        %v2353 = vadd.f32 %v2352, %v2303
        %v2354 = vxor.u32 %v2353, 2147483648
        %v2355 = vmul.f32 %v2354, 1.442695
        %v2356 = vpow.pop %v2355
        %v2357 = vadd.f32 %v2356, 1.0
        %v2358 = vrcp.pop %v2357
        %v2359 = vmul.f32 1.0, %v2358
        %v2360 = vsel %vm1466, %v2054, 0.0
        %2361 = vadd.xlane.f32.xlu0 %v2360
        %v2362 = vpop.xlane.xlu0 %2361
        %v2363 = vsub.f32 0.0, %v2362
        %v2364 = vmul.f32 %v2363, 0.5
        %2366 = vrot.lane.b32.xlu0 %v2327, 1
        %v2367 = vpop.permute.xlu0 %2366
        %2370 = vrot.lane.b32.xlu0 %v2343, 2
        %v2371 = vpop.permute.xlu0 %2370
        %2374 = vrot.lane.b32.xlu0 %v2359, 3
        %v2375 = vpop.permute.xlu0 %2374
        %v2377 = vsel %vm1458, %v2311, %v2367
        %v2378 = vsel %vm1460, %v2377, %v2371
        %v2379 = vsel %vm1462, %v2378, %v2375
        %v2380 = vsel %vm1458, %v2316, %v2332
        %v2381 = vsel %vm1460, %v2380, %v2348
        %v2382 = vsel %vm1462, %v2381, %v2364
        %v2383 = vmul.f32 %v1081, %v1464
        %v2384 = vsel %vm1466, %v2383, 0.0
        %2385 = vadd.xlane.f32.xlu0 %v2384
        %v2386 = vpop.xlane.xlu0 %2385
        %v2387 = vmul.f32 %v2379, %v2383
        %v2388 = vand.u32 2147483647, %v2387
        %v2389 = vsel %vm1466, %v2388, 0.0
        %2390 = vadd.xlane.f32.xlu0 %v2389
        %v2391 = vpop.xlane.xlu0 %2390
        %v2392 = vmax.f32 %v2391, 1e-12
        %v2393 = vrcp.pop %v2392
        %v2394 = vmul.f32 %v2387, %v2393
        %v2395 = vmul.f32 %v2394, %v2386
        %v2396 = vadd.f32 %v2395, %v1088
        %v2397 = vadd.f32 %v2396, 1e-06
        %v2398 = vsel %vm1466, %v2397, 0.0
        %2399 = vadd.xlane.f32.xlu0 %v2398
        %v2400 = vpop.xlane.xlu0 %2399
        %v2401 = vrcp.pop %v2400
        %v2402 = vmul.f32 %v2397, %v2401
        %v2403 = vld [vmem:[%s51] sm:$0xff]
        %v2404 = vld [vmem:[%s51 + $0x8] sm:$0xff]
        %v2405 = vld [vmem:[%s51 + $0x10] sm:$0xff]
        %v2406 = vld [vmem:[%s51 + $0x18] sm:$0xff]
        %v2407 = vld [vmem:[%s53] sm:$0xff]
        %v2408 = vld [vmem:[%s53 + $0x8] sm:$0xff]
        %v2409 = vld [vmem:[%s53 + $0x10] sm:$0xff]
        %v2410 = vld [vmem:[%s53 + $0x18] sm:$0xff]
        %v2411 = vld [vmem:[%s55] sm:$0x1]
        %v2412 = vld [vmem:[%s57] sm:$0xff]
        %v2413 = vld [vmem:[%s57 + $0x8] sm:$0xff]
        %v2414 = vld [vmem:[%s57 + $0x10] sm:$0xff]
        %v2415 = vld [vmem:[%s57 + $0x18] sm:$0xff]
        %v2416 = vld [vmem:[%s57 + $0x20] sm:$0xff]
        %v2417 = vld [vmem:[%s57 + $0x28] sm:$0xff]
        %v2418 = vld [vmem:[%s57 + $0x30] sm:$0xff]
        %v2419 = vld [vmem:[%s57 + $0x38] sm:$0xff]
        %v2420 = vld [vmem:[%s59] sm:$0x1]
        %v2421 = vmul.f32 %v2402, %v1464
        %v2422 = vand.u32 2147483647, %v2421
        %v2423 = vsel %vm1466, %v2422, 0.0
        %2424 = vadd.xlane.f32.xlu0 %v2423
        %v2425 = vpop.xlane.xlu0 %2424
        %v2426 = vmax.f32 %v2425, 1e-12
        %v2427 = vrcp.pop %v2426
        %v2428 = vmul.f32 %v2421, %v2427
        %v2430 = vsel %vm1466, %v2428, 0
        %v2432 = vsel %vm1836, %v1078, 0
        %2434 = vmatprep.subr.mxu0 0.0
        %2435 = vmatpush1.msra.mxu0 %v2432
        %2436 = vmatprep.subr.mxu0 0.0
        %2437 = vmatpush1.msra.mxu0 0.0
        %2438 = vmatprep.subr.mxu0 0.0
        %2439 = vmatpush1.msra.mxu0 0.0
        %2440 = vmatprep.subr.mxu0 0.0
        %2441 = vmatpush1.msra.mxu0 0.0
        %2442 = vmatprep.subr.mxu0 0.0
        %2443 = vmatpush1.msra.mxu0 0.0
        %2444 = vmatprep.subr.mxu0 0.0
        %2445 = vmatpush1.msra.mxu0 0.0
        %2446 = vmatprep.subr.mxu0 0.0
        %2447 = vmatpush1.msra.mxu0 0.0
        %2448 = vmatprep.subr.mxu0 0.0
        %2449 = vmatpush1.msra.mxu0 0.0
        %2450 = vmatprep.subr.mxu0 0.0
        %2451 = vmatpush1.msra.mxu0 0.0
        %2452 = vmatprep.subr.mxu0 0.0
        %2453 = vmatpush1.msra.mxu0 0.0
        %2454 = vmatprep.subr.mxu0 0.0
        %2455 = vmatpush1.msra.mxu0 0.0
        %2456 = vmatprep.subr.mxu0 0.0
        %2457 = vmatpush1.msra.mxu0 0.0
        %2458 = vmatprep.subr.mxu0 0.0
        %2459 = vmatpush1.msra.mxu0 0.0
        %2460 = vmatprep.subr.mxu0 0.0
        %2461 = vmatpush1.msra.mxu0 0.0
        %2462 = vmatprep.subr.mxu0 0.0
        %2463 = vmatpush1.msra.mxu0 0.0
        %2464 = vmatprep.subr.mxu0 0.0
        %2465 = vmatpush1.msra.mxu0 0.0
        %2466 = vmatprep.subr.mxu0 0.0
        %2467 = vmatpush1.msra.mxu0 0.0
        %2468 = vmatprep.subr.mxu0 0.0
        %2469 = vmatpush1.msra.mxu0 0.0
        %2470 = vmatprep.subr.mxu0 0.0
        %2471 = vmatpush1.msra.mxu0 0.0
        %2472 = vmatprep.subr.mxu0 0.0
        %2473 = vmatpush1.msra.mxu0 0.0
        %2474 = vmatprep.subr.mxu0 0.0
        %2475 = vmatpush1.msra.mxu0 0.0
        %2476 = vmatprep.subr.mxu0 0.0
        %2477 = vmatpush1.msra.mxu0 0.0
        %2478 = vmatprep.subr.mxu0 0.0
        %2479 = vmatpush1.msra.mxu0 0.0
        %2480 = vmatprep.subr.mxu0 0.0
        %2481 = vmatpush1.msra.mxu0 0.0
        %2482 = vmatprep.subr.mxu0 0.0
        %2483 = vmatpush1.msra.mxu0 0.0
        %2484 = vmatprep.subr.mxu0 0.0
        %2485 = vmatpush1.msra.mxu0 0.0
        %2486 = vmatprep.subr.mxu0 0.0
        %2487 = vmatpush1.msra.mxu0 0.0
        %2488 = vmatprep.subr.mxu0 0.0
        %2489 = vmatpush1.msra.mxu0 0.0
        %2490 = vmatprep.subr.mxu0 0.0
        %2491 = vmatpush1.msra.mxu0 0.0
        %2492 = vmatprep.subr.mxu0 0.0
        %2493 = vmatpush1.msra.mxu0 0.0
        %2494 = vmatprep.subr.mxu0 0.0
        %2495 = vmatpush1.msra.mxu0 0.0
        %2496 = vmatprep.subr.mxu0 0.0
        %2497 = vmatpush1.msra.mxu0 0.0
        %2498 = vmatprep.mubr.f32.mxu0 0.0
        %2499 = vmatmul.mubr.f32.gmra.mrb[0].mxu0 %v2430
        %v2500 = vpop.f32.mrb[0].mxu0
        %v2501 = vadd.f32 0.0, %v2500
        %v2502 = vpop.f32.mrb[0].mxu0
        %2503 = vdwg.mxu0
        %2504 = vxpose.xlu0.b32.start [1/16] %v2428, 128
        %2505 = vxpose.xlu0.b32.cont [2/16] 0.0, 128
        %2506 = vxpose.xlu0.b32.cont [3/16] 0.0, 128
        %2507 = vxpose.xlu0.b32.cont [4/16] 0.0, 128
        %2508 = vxpose.xlu0.b32.cont [5/16] 0.0, 128
        %2509 = vxpose.xlu0.b32.cont [6/16] 0.0, 128
        %2510 = vxpose.xlu0.b32.cont [7/16] 0.0, 128
        %2511 = vxpose.xlu0.b32.cont [8/16] 0.0, 128
        %2512 = vxpose.xlu0.b32.cont [9/16] 0.0, 128
        %2513 = vxpose.xlu0.b32.cont [10/16] 0.0, 128
        %2514 = vxpose.xlu0.b32.cont [11/16] 0.0, 128
        %2515 = vxpose.xlu0.b32.cont [12/16] 0.0, 128
        %2516 = vxpose.xlu0.b32.cont [13/16] 0.0, 128
        %2517 = vxpose.xlu0.b32.cont [14/16] 0.0, 128
        %2518 = vxpose.xlu0.b32.cont [15/16] 0.0, 128
        %2519 = vxpose.xlu0.b32.end [16/16] 0.0, 128
        %v2520 = vpop.trf.xlu0
        %v2521 = vpop.trf.xlu0
        %v2522 = vpop.trf.xlu0
        %v2523 = vpop.trf.xlu0
        %v2524 = vpop.trf.xlu0
        %v2525 = vpop.trf.xlu0
        %v2526 = vpop.trf.xlu0
        %v2527 = vpop.trf.xlu0
        %v2528 = vpop.trf.xlu0
        %v2529 = vpop.trf.xlu0
        %v2530 = vpop.trf.xlu0
        %v2531 = vpop.trf.xlu0
        %v2532 = vpop.trf.xlu0
        %v2533 = vpop.trf.xlu0
        %v2534 = vpop.trf.xlu0
        %v2535 = vpop.trf.xlu0
        %v2537 = vsel %vm2179, %v2520, 0
        %2539 = vmatprep.subr.mxu0 0.0
        %2540 = vmatpush1.msra.mxu0 %v1078
        %2541 = vmatprep.subr.mxu0 0.0
        %2542 = vmatpush1.msra.mxu0 0.0
        %2543 = vmatprep.subr.mxu0 0.0
        %2544 = vmatpush1.msra.mxu0 0.0
        %2545 = vmatprep.subr.mxu0 0.0
        %2546 = vmatpush1.msra.mxu0 0.0
        %2547 = vmatprep.subr.mxu0 0.0
        %2548 = vmatpush1.msra.mxu0 0.0
        %2549 = vmatprep.subr.mxu0 0.0
        %2550 = vmatpush1.msra.mxu0 0.0
        %2551 = vmatprep.subr.mxu0 0.0
        %2552 = vmatpush1.msra.mxu0 0.0
        %2553 = vmatprep.subr.mxu0 0.0
        %2554 = vmatpush1.msra.mxu0 0.0
        %2555 = vmatprep.subr.mxu0 0.0
        %2556 = vmatpush1.msra.mxu0 0.0
        %2557 = vmatprep.subr.mxu0 0.0
        %2558 = vmatpush1.msra.mxu0 0.0
        %2559 = vmatprep.subr.mxu0 0.0
        %2560 = vmatpush1.msra.mxu0 0.0
        %2561 = vmatprep.subr.mxu0 0.0
        %2562 = vmatpush1.msra.mxu0 0.0
        %2563 = vmatprep.subr.mxu0 0.0
        %2564 = vmatpush1.msra.mxu0 0.0
        %2565 = vmatprep.subr.mxu0 0.0
        %2566 = vmatpush1.msra.mxu0 0.0
        %2567 = vmatprep.subr.mxu0 0.0
        %2568 = vmatpush1.msra.mxu0 0.0
        %2569 = vmatprep.subr.mxu0 0.0
        %2570 = vmatpush1.msra.mxu0 0.0
        %2571 = vmatprep.subr.mxu0 0.0
        %2572 = vmatpush1.msra.mxu0 0.0
        %2573 = vmatprep.subr.mxu0 0.0
        %2574 = vmatpush1.msra.mxu0 0.0
        %2575 = vmatprep.subr.mxu0 0.0
        %2576 = vmatpush1.msra.mxu0 0.0
        %2577 = vmatprep.subr.mxu0 0.0
        %2578 = vmatpush1.msra.mxu0 0.0
        %2579 = vmatprep.subr.mxu0 0.0
        %2580 = vmatpush1.msra.mxu0 0.0
        %2581 = vmatprep.subr.mxu0 0.0
        %2582 = vmatpush1.msra.mxu0 0.0
        %2583 = vmatprep.subr.mxu0 0.0
        %2584 = vmatpush1.msra.mxu0 0.0
        %2585 = vmatprep.subr.mxu0 0.0
        %2586 = vmatpush1.msra.mxu0 0.0
        %2587 = vmatprep.subr.mxu0 0.0
        %2588 = vmatpush1.msra.mxu0 0.0
        %2589 = vmatprep.subr.mxu0 0.0
        %2590 = vmatpush1.msra.mxu0 0.0
        %2591 = vmatprep.subr.mxu0 0.0
        %2592 = vmatpush1.msra.mxu0 0.0
        %2593 = vmatprep.subr.mxu0 0.0
        %2594 = vmatpush1.msra.mxu0 0.0
        %2595 = vmatprep.subr.mxu0 0.0
        %2596 = vmatpush1.msra.mxu0 0.0
        %2597 = vmatprep.subr.mxu0 0.0
        %2598 = vmatpush1.msra.mxu0 0.0
        %2599 = vmatprep.subr.mxu0 0.0
        %2600 = vmatpush1.msra.mxu0 0.0
        %2601 = vmatprep.subr.mxu0 0.0
        %2602 = vmatpush1.msra.mxu0 0.0
        %2603 = vmatprep.mubr.f32.mxu0 0.0
        %2604 = vmatmul.mubr.f32.gmra.mrb[0].mxu0 %v2537
        %v2605 = vpop.f32.mrb[0].mxu0
        %v2606 = vadd.f32 0.0, %v2605
        %v2607 = vpop.f32.mrb[0].mxu0
        %2608 = vdwg.mxu0
        %2609 = vst.msk [vmem:[#allocation2] sm:$0xff] %vm1164, %v2501
        %vm2610 = vcmask 257024
        %2611 = vst.msk [vmem:[#allocation2] sm:$0xf] %vm2610, %v2606
        %v2612 = vld [vmem:[#allocation2] sm:$0xff]
        %v2614 = vsel %vm1164, %v2612, 0
        %2616 = vmatprep.subr.mxu0 0.0
        %2617 = vmatpush1.msra.mxu0 %v2407
        %2618 = vmatprep.subr.mxu0 0.0
        %2619 = vmatpush1.msra.mxu0 %v2408
        %2620 = vmatprep.subr.mxu0 0.0
        %2621 = vmatpush1.msra.mxu0 %v2409
        %2622 = vmatprep.subr.mxu0 0.0
        %2623 = vmatpush1.msra.mxu0 %v2410
        %2624 = vmatprep.subr.mxu0 0.0
        %2625 = vmatpush1.msra.mxu0 0.0
        %2626 = vmatprep.subr.mxu0 0.0
        %2627 = vmatpush1.msra.mxu0 0.0
        %2628 = vmatprep.subr.mxu0 0.0
        %2629 = vmatpush1.msra.mxu0 0.0
        %2630 = vmatprep.subr.mxu0 0.0
        %2631 = vmatpush1.msra.mxu0 0.0
        %2632 = vmatprep.subr.mxu0 0.0
        %2633 = vmatpush1.msra.mxu0 0.0
        %2634 = vmatprep.subr.mxu0 0.0
        %2635 = vmatpush1.msra.mxu0 0.0
        %2636 = vmatprep.subr.mxu0 0.0
        %2637 = vmatpush1.msra.mxu0 0.0
        %2638 = vmatprep.subr.mxu0 0.0
        %2639 = vmatpush1.msra.mxu0 0.0
        %2640 = vmatprep.subr.mxu0 0.0
        %2641 = vmatpush1.msra.mxu0 0.0
        %2642 = vmatprep.subr.mxu0 0.0
        %2643 = vmatpush1.msra.mxu0 0.0
        %2644 = vmatprep.subr.mxu0 0.0
        %2645 = vmatpush1.msra.mxu0 0.0
        %2646 = vmatprep.subr.mxu0 0.0
        %2647 = vmatpush1.msra.mxu0 0.0
        %2648 = vmatprep.subr.mxu0 0.0
        %2649 = vmatpush1.msra.mxu0 0.0
        %2650 = vmatprep.subr.mxu0 0.0
        %2651 = vmatpush1.msra.mxu0 0.0
        %2652 = vmatprep.subr.mxu0 0.0
        %2653 = vmatpush1.msra.mxu0 0.0
        %2654 = vmatprep.subr.mxu0 0.0
        %2655 = vmatpush1.msra.mxu0 0.0
        %2656 = vmatprep.subr.mxu0 0.0
        %2657 = vmatpush1.msra.mxu0 0.0
        %2658 = vmatprep.subr.mxu0 0.0
        %2659 = vmatpush1.msra.mxu0 0.0
        %2660 = vmatprep.subr.mxu0 0.0
        %2661 = vmatpush1.msra.mxu0 0.0
        %2662 = vmatprep.subr.mxu0 0.0
        %2663 = vmatpush1.msra.mxu0 0.0
        %2664 = vmatprep.subr.mxu0 0.0
        %2665 = vmatpush1.msra.mxu0 0.0
        %2666 = vmatprep.subr.mxu0 0.0
        %2667 = vmatpush1.msra.mxu0 0.0
        %2668 = vmatprep.subr.mxu0 0.0
        %2669 = vmatpush1.msra.mxu0 0.0
        %2670 = vmatprep.subr.mxu0 0.0
        %2671 = vmatpush1.msra.mxu0 0.0
        %2672 = vmatprep.subr.mxu0 0.0
        %2673 = vmatpush1.msra.mxu0 0.0
        %2674 = vmatprep.subr.mxu0 0.0
        %2675 = vmatpush1.msra.mxu0 0.0
        %2676 = vmatprep.subr.mxu0 0.0
        %2677 = vmatpush1.msra.mxu0 0.0
        %2678 = vmatprep.subr.mxu0 0.0
        %2679 = vmatpush1.msra.mxu0 0.0
        %2680 = vmatprep.mubr.f32.mxu0 0.0
        %2681 = vmatmul.mubr.f32.gmra.mrb[0].mxu0 %v2614
        %v2682 = vpop.f32.mrb[0].mxu0
        %v2683 = vadd.f32 0.0, %v2682
        %v2684 = vpop.f32.mrb[0].mxu0
        %2685 = vdwg.mxu0
        %v2686 = vsel %vm1164, %v1078, 0
        %2688 = vmatprep.subr.mxu0 0.0
        %2689 = vmatpush1.msra.mxu0 %v2403
        %2690 = vmatprep.subr.mxu0 0.0
        %2691 = vmatpush1.msra.mxu0 %v2404
        %2692 = vmatprep.subr.mxu0 0.0
        %2693 = vmatpush1.msra.mxu0 %v2405
        %2694 = vmatprep.subr.mxu0 0.0
        %2695 = vmatpush1.msra.mxu0 %v2406
        %2696 = vmatprep.subr.mxu0 0.0
        %2697 = vmatpush1.msra.mxu0 0.0
        %2698 = vmatprep.subr.mxu0 0.0
        %2699 = vmatpush1.msra.mxu0 0.0
        %2700 = vmatprep.subr.mxu0 0.0
        %2701 = vmatpush1.msra.mxu0 0.0
        %2702 = vmatprep.subr.mxu0 0.0
        %2703 = vmatpush1.msra.mxu0 0.0
        %2704 = vmatprep.subr.mxu0 0.0
        %2705 = vmatpush1.msra.mxu0 0.0
        %2706 = vmatprep.subr.mxu0 0.0
        %2707 = vmatpush1.msra.mxu0 0.0
        %2708 = vmatprep.subr.mxu0 0.0
        %2709 = vmatpush1.msra.mxu0 0.0
        %2710 = vmatprep.subr.mxu0 0.0
        %2711 = vmatpush1.msra.mxu0 0.0
        %2712 = vmatprep.subr.mxu0 0.0
        %2713 = vmatpush1.msra.mxu0 0.0
        %2714 = vmatprep.subr.mxu0 0.0
        %2715 = vmatpush1.msra.mxu0 0.0
        %2716 = vmatprep.subr.mxu0 0.0
        %2717 = vmatpush1.msra.mxu0 0.0
        %2718 = vmatprep.subr.mxu0 0.0
        %2719 = vmatpush1.msra.mxu0 0.0
        %2720 = vmatprep.subr.mxu0 0.0
        %2721 = vmatpush1.msra.mxu0 0.0
        %2722 = vmatprep.subr.mxu0 0.0
        %2723 = vmatpush1.msra.mxu0 0.0
        %2724 = vmatprep.subr.mxu0 0.0
        %2725 = vmatpush1.msra.mxu0 0.0
        %2726 = vmatprep.subr.mxu0 0.0
        %2727 = vmatpush1.msra.mxu0 0.0
        %2728 = vmatprep.subr.mxu0 0.0
        %2729 = vmatpush1.msra.mxu0 0.0
        %2730 = vmatprep.subr.mxu0 0.0
        %2731 = vmatpush1.msra.mxu0 0.0
        %2732 = vmatprep.subr.mxu0 0.0
        %2733 = vmatpush1.msra.mxu0 0.0
        %2734 = vmatprep.subr.mxu0 0.0
        %2735 = vmatpush1.msra.mxu0 0.0
        %2736 = vmatprep.subr.mxu0 0.0
        %2737 = vmatpush1.msra.mxu0 0.0
        %2738 = vmatprep.subr.mxu0 0.0
        %2739 = vmatpush1.msra.mxu0 0.0
        %2740 = vmatprep.subr.mxu0 0.0
        %2741 = vmatpush1.msra.mxu0 0.0
        %2742 = vmatprep.subr.mxu0 0.0
        %2743 = vmatpush1.msra.mxu0 0.0
        %2744 = vmatprep.subr.mxu0 0.0
        %2745 = vmatpush1.msra.mxu0 0.0
        %2746 = vmatprep.subr.mxu0 0.0
        %2747 = vmatpush1.msra.mxu0 0.0
        %2748 = vmatprep.subr.mxu0 0.0
        %2749 = vmatpush1.msra.mxu0 0.0
        %2750 = vmatprep.subr.mxu0 0.0
        %2751 = vmatpush1.msra.mxu0 0.0
        %2752 = vmatprep.mubr.f32.mxu0 0.0
        %2753 = vmatmul.mubr.f32.gmra.mrb[0].mxu0 %v2686
        %v2754 = vpop.f32.mrb[0].mxu0
        %v2755 = vadd.f32 %v2683, %v2754
        %v2756 = vpop.f32.mrb[0].mxu0
        %2757 = vdwg.mxu0
        %v2759 = vlaneseq
        %v2760 = vshrl.u32 %v2759, 7
        %v2761 = vsub.s32 0, %v2760
        %v2762 = vrot.slane %v2411, %v2761
        %v2764 = vadd.f32 %v2755, %v2762
        %vm2765 = vcmp.ge.f32.partialorder %v2764, 0.0
        %v2766 = vmul.f32 %v2764, 0.01
        %v2767 = vsel %vm2765, %v2764, %v2766
        %v2769 = vlaneseq
        %v2770 = vshrl.u32 %v2769, 7
        %v2771 = vsub.s32 0, %v2770
        %v2772 = vrot.slane %v2420, %v2771
        %v2775 = vsel %vm1280, %v2767, 0
        %2777 = vmatprep.subr.mxu0 0.0
        %2778 = vmatpush1.msra.mxu0 %v2412
        %2779 = vmatprep.subr.mxu0 0.0
        %2780 = vmatpush1.msra.mxu0 %v2413
        %2781 = vmatprep.subr.mxu0 0.0
        %2782 = vmatpush1.msra.mxu0 %v2414
        %2783 = vmatprep.subr.mxu0 0.0
        %2784 = vmatpush1.msra.mxu0 %v2415
        %2785 = vmatprep.subr.mxu0 0.0
        %2786 = vmatpush1.msra.mxu0 %v2416
        %2787 = vmatprep.subr.mxu0 0.0
        %2788 = vmatpush1.msra.mxu0 %v2417
        %2789 = vmatprep.subr.mxu0 0.0
        %2790 = vmatpush1.msra.mxu0 %v2418
        %2791 = vmatprep.subr.mxu0 0.0
        %2792 = vmatpush1.msra.mxu0 %v2419
        %2793 = vmatprep.subr.mxu0 0.0
        %2794 = vmatpush1.msra.mxu0 0.0
        %2795 = vmatprep.subr.mxu0 0.0
        %2796 = vmatpush1.msra.mxu0 0.0
        %2797 = vmatprep.subr.mxu0 0.0
        %2798 = vmatpush1.msra.mxu0 0.0
        %2799 = vmatprep.subr.mxu0 0.0
        %2800 = vmatpush1.msra.mxu0 0.0
        %2801 = vmatprep.subr.mxu0 0.0
        %2802 = vmatpush1.msra.mxu0 0.0
        %2803 = vmatprep.subr.mxu0 0.0
        %2804 = vmatpush1.msra.mxu0 0.0
        %2805 = vmatprep.subr.mxu0 0.0
        %2806 = vmatpush1.msra.mxu0 0.0
        %2807 = vmatprep.subr.mxu0 0.0
        %2808 = vmatpush1.msra.mxu0 0.0
        %2809 = vmatprep.subr.mxu0 0.0
        %2810 = vmatpush1.msra.mxu0 0.0
        %2811 = vmatprep.subr.mxu0 0.0
        %2812 = vmatpush1.msra.mxu0 0.0
        %2813 = vmatprep.subr.mxu0 0.0
        %2814 = vmatpush1.msra.mxu0 0.0
        %2815 = vmatprep.subr.mxu0 0.0
        %2816 = vmatpush1.msra.mxu0 0.0
        %2817 = vmatprep.subr.mxu0 0.0
        %2818 = vmatpush1.msra.mxu0 0.0
        %2819 = vmatprep.subr.mxu0 0.0
        %2820 = vmatpush1.msra.mxu0 0.0
        %2821 = vmatprep.subr.mxu0 0.0
        %2822 = vmatpush1.msra.mxu0 0.0
        %2823 = vmatprep.subr.mxu0 0.0
        %2824 = vmatpush1.msra.mxu0 0.0
        %2825 = vmatprep.subr.mxu0 0.0
        %2826 = vmatpush1.msra.mxu0 0.0
        %2827 = vmatprep.subr.mxu0 0.0
        %2828 = vmatpush1.msra.mxu0 0.0
        %2829 = vmatprep.subr.mxu0 0.0
        %2830 = vmatpush1.msra.mxu0 0.0
        %2831 = vmatprep.subr.mxu0 0.0
        %2832 = vmatpush1.msra.mxu0 0.0
        %2833 = vmatprep.subr.mxu0 0.0
        %2834 = vmatpush1.msra.mxu0 0.0
        %2835 = vmatprep.subr.mxu0 0.0
        %2836 = vmatpush1.msra.mxu0 0.0
        %2837 = vmatprep.subr.mxu0 0.0
        %2838 = vmatpush1.msra.mxu0 0.0
        %2839 = vmatprep.subr.mxu0 0.0
        %2840 = vmatpush1.msra.mxu0 0.0
        %2841 = vmatprep.mubr.f32.mxu0 0.0
        %2842 = vmatmul.mubr.f32.gmra.mrb[0].mxu0 %v2775
        %v2843 = vpop.f32.mrb[0].mxu0
        %v2844 = vadd.f32 %v2772, %v2843
        %v2845 = vpop.f32.mrb[0].mxu0
        %2846 = vdwg.mxu0
        %vm2847 = vcmp.ge.f32.partialorder %v2844, 0.0
        %v2848 = vmul.f32 %v2844, 0.01
        %v2849 = vsel %vm2847, %v2844, %v2848
        %2850 = vst.msk [vmem:[%s1043] sm:$0xff] %vm1466, %v1829
        %2851 = vst.msk [vmem:[%s1049] sm:$0xff] %vm1466, %v1809
        %2852 = vst.msk [vmem:[%s1055] sm:$0xff] %vm1466, %v2402
        %2853 = vst.msk [vmem:[%s1061] sm:$0xff] %vm1466, %v2382
        %s2854 = scalar_lea.vmem %s21, 32
        %v2855 = vld [vmem:[%s2854] sm:$0xff]
        %v2856 = vld [vmem:[%s2854 + $0x8] sm:$0xff]
        %v2857 = vld [vmem:[%s2854 + $0x10] sm:$0xff]
        %v2858 = vld [vmem:[%s2854 + $0x18] sm:$0xff]
        %s2859 = scalar_lea.vmem %s23, 1
        %v2860 = vld [vmem:[%s2859] sm:$0x1]
        %s2861 = scalar_lea.vmem %s25, 64
        %v2862 = vld [vmem:[%s2861] sm:$0xff]
        %v2863 = vld [vmem:[%s2861 + $0x8] sm:$0xff]
        %v2864 = vld [vmem:[%s2861 + $0x10] sm:$0xff]
        %v2865 = vld [vmem:[%s2861 + $0x18] sm:$0xff]
        %v2866 = vld [vmem:[%s2861 + $0x20] sm:$0xff]
        %v2867 = vld [vmem:[%s2861 + $0x28] sm:$0xff]
        %v2868 = vld [vmem:[%s2861 + $0x30] sm:$0xff]
        %v2869 = vld [vmem:[%s2861 + $0x38] sm:$0xff]
        %s2870 = scalar_lea.vmem %s27, 1
        %v2871 = vld [vmem:[%s2870] sm:$0x1]
        %s2872 = scalar_lea.vmem %s29, 1
        %v2873 = vld [vmem:[%s2872] sm:$0x1]
        %s2874 = scalar_lea.vmem %s31, 1
        %v2875 = vld [vmem:[%s2874] sm:$0x1]
        %v2878 = vunpack.c.l.s4 1966171168
        %v2879 = vunpack.c.0.s8 %v2878
        %v2880 = vlaneseq
        %v2881 = vshrl.u32 %v2880, 7
        %v2882 = vsub.s32 %v2879, %v2881
        %v2883 = vrot.slane %v2849, %v2882
        %v2884 = vcombine.high %v2883, %v2883
        %v2886 = vunpack.c.l.s4 1966171168
        %v2887 = vunpack.c.0.s8 %v2886
        %v2888 = vlaneseq
        %v2889 = vshrl.u32 %v2888, 7
        %v2890 = vsub.s32 %v2887, %v2889
        %v2891 = vrot.slane %v2883, %v2890
        %v2893 = vunpack.c.l.s4 1966171168
        %v2894 = vunpack.c.0.s8 %v2893
        %v2895 = vlaneseq
        %v2896 = vshrl.u32 %v2895, 7
        %v2897 = vsub.s32 %v2894, %v2896
        %v2898 = vrot.slane %v2884, %v2897
        %v2899 = vcombine.high %v2891, %v2891
        %v2900 = vcombine.high %v2898, %v2898
        %v2901 = vlaneseq
        %v2902 = vshrl.u32 %v2901, 7
        %v2903 = vsub.s32 0, %v2902
        %v2904 = vrot.slane %v2891, %v2903
        %v2905 = vlaneseq
        %v2906 = vshrl.u32 %v2905, 7
        %v2907 = vsub.s32 0, %v2906
        %v2908 = vrot.slane %v2898, %v2907
        %v2909 = vlaneseq
        %v2910 = vshrl.u32 %v2909, 7
        %v2911 = vsub.s32 0, %v2910
        %v2912 = vrot.slane %v2899, %v2911
        %v2913 = vlaneseq
        %v2914 = vshrl.u32 %v2913, 7
        %v2915 = vsub.s32 0, %v2914
        %v2916 = vrot.slane %v2900, %v2915
        %v2921 = vsub.f32 %v2849, %v2904
        %v2922 = vsub.f32 %v2849, %v2908
        %v2923 = vsub.f32 %v2849, %v2912
        %v2924 = vsub.f32 %v2849, %v2916
        %v2925 = vand.u32 2147483647, %v2921
        %v2926 = vand.u32 2147483647, %v2922
        %v2927 = vand.u32 2147483647, %v2923
        %v2928 = vand.u32 2147483647, %v2924
        %v2930 = vlaneseq
        %v2931 = vshrl.u32 %v2930, 7
        %v2932 = vsub.s32 0, %v2931
        %v2933 = vrot.slane %v2860, %v2932
        %v2936 = vsel %vm1164, %v2925, 0
        %v2939 = vsel %vm1164, %v2926, 0
        %v2942 = vsel %vm1164, %v2927, 0
        %v2945 = vsel %vm1164, %v2928, 0
        %2947 = vmatprep.subr.mxu0 0.0
        %2948 = vmatpush1.msra.mxu0 %v2855
        %2949 = vmatprep.subr.mxu0 0.0
        %2950 = vmatpush1.msra.mxu0 %v2856
        %2951 = vmatprep.subr.mxu0 0.0
        %2952 = vmatpush1.msra.mxu0 %v2857
        %2953 = vmatprep.subr.mxu0 0.0
        %2954 = vmatpush1.msra.mxu0 %v2858
        %2955 = vmatprep.subr.mxu0 0.0
        %2956 = vmatpush1.msra.mxu0 0.0
        %2957 = vmatprep.subr.mxu0 0.0
        %2958 = vmatpush1.msra.mxu0 0.0
        %2959 = vmatprep.subr.mxu0 0.0
        %2960 = vmatpush1.msra.mxu0 0.0
        %2961 = vmatprep.subr.mxu0 0.0
        %2962 = vmatpush1.msra.mxu0 0.0
        %2963 = vmatprep.subr.mxu0 0.0
        %2964 = vmatpush1.msra.mxu0 0.0
        %2965 = vmatprep.subr.mxu0 0.0
        %2966 = vmatpush1.msra.mxu0 0.0
        %2967 = vmatprep.subr.mxu0 0.0
        %2968 = vmatpush1.msra.mxu0 0.0
        %2969 = vmatprep.subr.mxu0 0.0
        %2970 = vmatpush1.msra.mxu0 0.0
        %2971 = vmatprep.subr.mxu0 0.0
        %2972 = vmatpush1.msra.mxu0 0.0
        %2973 = vmatprep.subr.mxu0 0.0
        %2974 = vmatpush1.msra.mxu0 0.0
        %2975 = vmatprep.subr.mxu0 0.0
        %2976 = vmatpush1.msra.mxu0 0.0
        %2977 = vmatprep.subr.mxu0 0.0
        %2978 = vmatpush1.msra.mxu0 0.0
        %2979 = vmatprep.subr.mxu0 0.0
        %2980 = vmatpush1.msra.mxu0 0.0
        %2981 = vmatprep.subr.mxu0 0.0
        %2982 = vmatpush1.msra.mxu0 0.0
        %2983 = vmatprep.subr.mxu0 0.0
        %2984 = vmatpush1.msra.mxu0 0.0
        %2985 = vmatprep.subr.mxu0 0.0
        %2986 = vmatpush1.msra.mxu0 0.0
        %2987 = vmatprep.subr.mxu0 0.0
        %2988 = vmatpush1.msra.mxu0 0.0
        %2989 = vmatprep.subr.mxu0 0.0
        %2990 = vmatpush1.msra.mxu0 0.0
        %2991 = vmatprep.subr.mxu0 0.0
        %2992 = vmatpush1.msra.mxu0 0.0
        %2993 = vmatprep.subr.mxu0 0.0
        %2994 = vmatpush1.msra.mxu0 0.0
        %2995 = vmatprep.subr.mxu0 0.0
        %2996 = vmatpush1.msra.mxu0 0.0
        %2997 = vmatprep.subr.mxu0 0.0
        %2998 = vmatpush1.msra.mxu0 0.0
        %2999 = vmatprep.subr.mxu0 0.0
        %3000 = vmatpush1.msra.mxu0 0.0
        %3001 = vmatprep.subr.mxu0 0.0
        %3002 = vmatpush1.msra.mxu0 0.0
        %3003 = vmatprep.subr.mxu0 0.0
        %3004 = vmatpush1.msra.mxu0 0.0
        %3005 = vmatprep.subr.mxu0 0.0
        %3006 = vmatpush1.msra.mxu0 0.0
        %3007 = vmatprep.subr.mxu0 0.0
        %3008 = vmatpush1.msra.mxu0 0.0
        %3009 = vmatprep.subr.mxu0 0.0
        %3010 = vmatpush1.msra.mxu0 0.0
        %3011 = vmatprep.mubr.f32.mxu0 0.0
        %3012 = vmatmul.mubr.f32.gmra.mrb[0].mxu0 %v2936
        %v3013 = vpop.f32.mrb[0].mxu0
        %v3014 = vadd.f32 %v2933, %v3013
        %v3015 = vpop.f32.mrb[0].mxu0
        %3016 = vmatprep.mubr.f32.mxu0 0.0
        %3017 = vmatmul.mubr.f32.gmra.mrb[0].mxu0 %v2939
        %v3018 = vpop.f32.mrb[0].mxu0
        %v3019 = vadd.f32 %v2933, %v3018
        %v3020 = vpop.f32.mrb[0].mxu0
        %3021 = vmatprep.mubr.f32.mxu0 0.0
        %3022 = vmatmul.mubr.f32.gmra.mrb[0].mxu0 %v2942
        %v3023 = vpop.f32.mrb[0].mxu0
        %v3024 = vadd.f32 %v2933, %v3023
        %v3025 = vpop.f32.mrb[0].mxu0
        %3026 = vmatprep.mubr.f32.mxu0 0.0
        %3027 = vmatmul.mubr.f32.gmra.mrb[0].mxu0 %v2945
        %v3028 = vpop.f32.mrb[0].mxu0
        %v3029 = vadd.f32 %v2933, %v3028
        %v3030 = vpop.f32.mrb[0].mxu0
        %3031 = vdwg.mxu0
        %vm3032 = vcmp.ge.f32.partialorder %v3014, 0.0
        %vm3033 = vcmp.ge.f32.partialorder %v3019, 0.0
        %vm3034 = vcmp.ge.f32.partialorder %v3024, 0.0
        %vm3035 = vcmp.ge.f32.partialorder %v3029, 0.0
        %v3036 = vmul.f32 %v3014, 0.01
        %v3037 = vmul.f32 %v3019, 0.01
        %v3038 = vmul.f32 %v3024, 0.01
        %v3039 = vmul.f32 %v3029, 0.01
        %v3040 = vsel %vm3032, %v3014, %v3036
        %v3041 = vsel %vm3033, %v3019, %v3037
        %v3042 = vsel %vm3034, %v3024, %v3038
        %v3043 = vsel %vm3035, %v3029, %v3039
        %v3045 = vlaneseq
        %v3046 = vshrl.u32 %v3045, 7
        %v3047 = vsub.s32 0, %v3046
        %v3048 = vrot.slane %v2871, %v3047
        %v3051 = vsel %vm1280, %v3040, 0
        %v3054 = vsel %vm1280, %v3041, 0
        %v3057 = vsel %vm1280, %v3042, 0
        %v3060 = vsel %vm1280, %v3043, 0
        %3062 = vmatprep.subr.mxu0 0.0
        %3063 = vmatpush1.msra.mxu0 %v2862
        %3064 = vmatprep.subr.mxu0 0.0
        %3065 = vmatpush1.msra.mxu0 %v2863
        %3066 = vmatprep.subr.mxu0 0.0
        %3067 = vmatpush1.msra.mxu0 %v2864
        %3068 = vmatprep.subr.mxu0 0.0
        %3069 = vmatpush1.msra.mxu0 %v2865
        %3070 = vmatprep.subr.mxu0 0.0
        %3071 = vmatpush1.msra.mxu0 %v2866
        %3072 = vmatprep.subr.mxu0 0.0
        %3073 = vmatpush1.msra.mxu0 %v2867
        %3074 = vmatprep.subr.mxu0 0.0
        %3075 = vmatpush1.msra.mxu0 %v2868
        %3076 = vmatprep.subr.mxu0 0.0
        %3077 = vmatpush1.msra.mxu0 %v2869
        %3078 = vmatprep.subr.mxu0 0.0
        %3079 = vmatpush1.msra.mxu0 0.0
        %3080 = vmatprep.subr.mxu0 0.0
        %3081 = vmatpush1.msra.mxu0 0.0
        %3082 = vmatprep.subr.mxu0 0.0
        %3083 = vmatpush1.msra.mxu0 0.0
        %3084 = vmatprep.subr.mxu0 0.0
        %3085 = vmatpush1.msra.mxu0 0.0
        %3086 = vmatprep.subr.mxu0 0.0
        %3087 = vmatpush1.msra.mxu0 0.0
        %3088 = vmatprep.subr.mxu0 0.0
        %3089 = vmatpush1.msra.mxu0 0.0
        %3090 = vmatprep.subr.mxu0 0.0
        %3091 = vmatpush1.msra.mxu0 0.0
        %3092 = vmatprep.subr.mxu0 0.0
        %3093 = vmatpush1.msra.mxu0 0.0
        %3094 = vmatprep.subr.mxu0 0.0
        %3095 = vmatpush1.msra.mxu0 0.0
        %3096 = vmatprep.subr.mxu0 0.0
        %3097 = vmatpush1.msra.mxu0 0.0
        %3098 = vmatprep.subr.mxu0 0.0
        %3099 = vmatpush1.msra.mxu0 0.0
        %3100 = vmatprep.subr.mxu0 0.0
        %3101 = vmatpush1.msra.mxu0 0.0
        %3102 = vmatprep.subr.mxu0 0.0
        %3103 = vmatpush1.msra.mxu0 0.0
        %3104 = vmatprep.subr.mxu0 0.0
        %3105 = vmatpush1.msra.mxu0 0.0
        %3106 = vmatprep.subr.mxu0 0.0
        %3107 = vmatpush1.msra.mxu0 0.0
        %3108 = vmatprep.subr.mxu0 0.0
        %3109 = vmatpush1.msra.mxu0 0.0
        %3110 = vmatprep.subr.mxu0 0.0
        %3111 = vmatpush1.msra.mxu0 0.0
        %3112 = vmatprep.subr.mxu0 0.0
        %3113 = vmatpush1.msra.mxu0 0.0
        %3114 = vmatprep.subr.mxu0 0.0
        %3115 = vmatpush1.msra.mxu0 0.0
        %3116 = vmatprep.subr.mxu0 0.0
        %3117 = vmatpush1.msra.mxu0 0.0
        %3118 = vmatprep.subr.mxu0 0.0
        %3119 = vmatpush1.msra.mxu0 0.0
        %3120 = vmatprep.subr.mxu0 0.0
        %3121 = vmatpush1.msra.mxu0 0.0
        %3122 = vmatprep.subr.mxu0 0.0
        %3123 = vmatpush1.msra.mxu0 0.0
        %3124 = vmatprep.subr.mxu0 0.0
        %3125 = vmatpush1.msra.mxu0 0.0
        %3126 = vmatprep.mubr.f32.mxu0 0.0
        %3127 = vmatmul.mubr.f32.gmra.mrb[0].mxu0 %v3051
        %v3128 = vpop.f32.mrb[0].mxu0
        %v3129 = vadd.f32 %v3048, %v3128
        %v3130 = vpop.f32.mrb[0].mxu0
        %3131 = vmatprep.mubr.f32.mxu0 0.0
        %3132 = vmatmul.mubr.f32.gmra.mrb[0].mxu0 %v3054
        %v3133 = vpop.f32.mrb[0].mxu0
        %v3134 = vadd.f32 %v3048, %v3133
        %v3135 = vpop.f32.mrb[0].mxu0
        %3136 = vmatprep.mubr.f32.mxu0 0.0
        %3137 = vmatmul.mubr.f32.gmra.mrb[0].mxu0 %v3057
        %v3138 = vpop.f32.mrb[0].mxu0
        %v3139 = vadd.f32 %v3048, %v3138
        %v3140 = vpop.f32.mrb[0].mxu0
        %3141 = vmatprep.mubr.f32.mxu0 0.0
        %3142 = vmatmul.mubr.f32.gmra.mrb[0].mxu0 %v3060
        %v3143 = vpop.f32.mrb[0].mxu0
        %v3144 = vadd.f32 %v3048, %v3143
        %v3145 = vpop.f32.mrb[0].mxu0
        %3146 = vdwg.mxu0
        %vm3147 = vcmp.ge.f32.partialorder %v3129, 0.0
        %vm3148 = vcmp.ge.f32.partialorder %v3134, 0.0
        %vm3149 = vcmp.ge.f32.partialorder %v3139, 0.0
        %vm3150 = vcmp.ge.f32.partialorder %v3144, 0.0
        %v3151 = vmul.f32 %v3129, 0.01
        %v3152 = vmul.f32 %v3134, 0.01
        %v3153 = vmul.f32 %v3139, 0.01
        %v3154 = vmul.f32 %v3144, 0.01
        %v3155 = vsel %vm3147, %v3129, %v3151
        %v3156 = vsel %vm3148, %v3134, %v3152
        %v3157 = vsel %vm3149, %v3139, %v3153
        %v3158 = vsel %vm3150, %v3144, %v3154
        %v3160 = vlaneseq
        %v3161 = vshrl.u32 %v3160, 7
        %v3162 = vsub.s32 0, %v3161
        %v3163 = vrot.slane %v2873, %v3162
        %v3165 = vmul.f32 %v3155, %v3163
        %v3166 = vsel %vm1164, %v3165, 0.0
        %3167 = vadd.xlane.f32.xlu0 %v3166
        %v3168 = vpop.xlane.xlu0 %3167
        %v3170 = vlaneseq
        %v3171 = vshrl.u32 %v3170, 7
        %v3172 = vsub.s32 0, %v3171
        %v3173 = vrot.slane %v2875, %v3172
        %v3175 = vadd.f32 %v3168, %v3173
        %v3176 = vxor.u32 %v3175, 2147483648
        %v3177 = vmul.f32 %v3176, 1.442695
        %v3178 = vpow.pop %v3177
        %v3179 = vadd.f32 %v3178, 1.0
        %v3180 = vrcp.pop %v3179
        %v3181 = vmul.f32 1.0, %v3180
        %v3182 = vsel %vm1164, %v2925, 0.0
        %3183 = vadd.xlane.f32.xlu0 %v3182
        %v3184 = vpop.xlane.xlu0 %3183
        %v3185 = vsub.f32 0.0, %v3184
        %v3186 = vmul.f32 %v3156, %v3163
        %v3187 = vsel %vm1164, %v3186, 0.0
        %3188 = vadd.xlane.f32.xlu0 %v3187
        %v3189 = vpop.xlane.xlu0 %3188
        %v3190 = vadd.f32 %v3189, %v3173
        %v3191 = vxor.u32 %v3190, 2147483648
        %v3192 = vmul.f32 %v3191, 1.442695
        %v3193 = vpow.pop %v3192
        %v3194 = vadd.f32 %v3193, 1.0
        %v3195 = vrcp.pop %v3194
        %v3196 = vmul.f32 1.0, %v3195
        %v3197 = vsel %vm1164, %v2926, 0.0
        %3198 = vadd.xlane.f32.xlu0 %v3197
        %v3199 = vpop.xlane.xlu0 %3198
        %v3200 = vsub.f32 0.0, %v3199
        %v3201 = vmul.f32 %v3157, %v3163
        %v3202 = vsel %vm1164, %v3201, 0.0
        %3203 = vadd.xlane.f32.xlu0 %v3202
        %v3204 = vpop.xlane.xlu0 %3203
        %v3205 = vadd.f32 %v3204, %v3173
        %v3206 = vxor.u32 %v3205, 2147483648
        %v3207 = vmul.f32 %v3206, 1.442695
        %v3208 = vpow.pop %v3207
        %v3209 = vadd.f32 %v3208, 1.0
        %v3210 = vrcp.pop %v3209
        %v3211 = vmul.f32 1.0, %v3210
        %v3212 = vsel %vm1164, %v2927, 0.0
        %3213 = vadd.xlane.f32.xlu0 %v3212
        %v3214 = vpop.xlane.xlu0 %3213
        %v3215 = vsub.f32 0.0, %v3214
        %v3216 = vmul.f32 %v3158, %v3163
        %v3217 = vsel %vm1164, %v3216, 0.0
        %3218 = vadd.xlane.f32.xlu0 %v3217
        %v3219 = vpop.xlane.xlu0 %3218
        %v3220 = vadd.f32 %v3219, %v3173
        %v3221 = vxor.u32 %v3220, 2147483648
        %v3222 = vmul.f32 %v3221, 1.442695
        %v3223 = vpow.pop %v3222
        %v3224 = vadd.f32 %v3223, 1.0
        %v3225 = vrcp.pop %v3224
        %v3226 = vmul.f32 1.0, %v3225
        %v3227 = vsel %vm1164, %v2928, 0.0
        %3228 = vadd.xlane.f32.xlu0 %v3227
        %v3229 = vpop.xlane.xlu0 %3228
        %v3230 = vsub.f32 0.0, %v3229
        %3232 = vrot.lane.b32.xlu0 %v3196, 1
        %v3233 = vpop.permute.xlu0 %3232
        %3236 = vrot.lane.b32.xlu0 %v3211, 2
        %v3237 = vpop.permute.xlu0 %3236
        %3240 = vrot.lane.b32.xlu0 %v3226, 3
        %v3241 = vpop.permute.xlu0 %3240
        %v3243 = vsel %vm1458, %v3181, %v3233
        %v3244 = vsel %vm1460, %v3243, %v3237
        %v3245 = vsel %vm1462, %v3244, %v3241
        %v3246 = vsel %vm1458, %v3185, %v3200
        %v3247 = vsel %vm1460, %v3246, %v3215
        %v3248 = vsel %vm1462, %v3247, %v3230
        %v3249 = vmul.f32 %v1829, %v1464
        %v3250 = vsel %vm1466, %v3249, 0.0
        %3251 = vadd.xlane.f32.xlu0 %v3250
        %v3252 = vpop.xlane.xlu0 %3251
        %v3253 = vmul.f32 %v3245, %v3249
        %v3254 = vand.u32 2147483647, %v3253
        %v3255 = vsel %vm1466, %v3254, 0.0
        %3256 = vadd.xlane.f32.xlu0 %v3255
        %v3257 = vpop.xlane.xlu0 %3256
        %v3258 = vmax.f32 %v3257, 1e-12
        %v3259 = vrcp.pop %v3258
        %v3260 = vmul.f32 %v3253, %v3259
        %v3261 = vmul.f32 %v3260, %v3252
        %v3262 = vadd.f32 %v3261, %v1088
        %v3263 = vadd.f32 %v3262, 1e-06
        %v3264 = vsel %vm1466, %v3263, 0.0
        %3265 = vadd.xlane.f32.xlu0 %v3264
        %v3266 = vpop.xlane.xlu0 %3265
        %v3267 = vrcp.pop %v3266
        %v3268 = vmul.f32 %v3263, %v3267
        %s3269 = scalar_lea.vmem %s33, 4
        %v3270 = vld [vmem:[%s3269] sm:$0xf]
        %s3271 = scalar_lea.vmem %s35, 4
        %v3272 = vld [vmem:[%s3271] sm:$0xf]
        %s3273 = scalar_lea.vmem %s37, 1
        %v3274 = vld [vmem:[%s3273] sm:$0x1]
        %v3275 = vsel %vm1466, %v1995, 0
        %v3278 = vsel %vm1836, %v3272, 0
        %3280 = vmatprep.subr.mxu0 0.0
        %3281 = vmatpush1.msra.mxu0 %v3278
        %3282 = vmatprep.subr.mxu0 0.0
        %3283 = vmatpush1.msra.mxu0 0.0
        %3284 = vmatprep.subr.mxu0 0.0
        %3285 = vmatpush1.msra.mxu0 0.0
        %3286 = vmatprep.subr.mxu0 0.0
        %3287 = vmatpush1.msra.mxu0 0.0
        %3288 = vmatprep.subr.mxu0 0.0
        %3289 = vmatpush1.msra.mxu0 0.0
        %3290 = vmatprep.subr.mxu0 0.0
        %3291 = vmatpush1.msra.mxu0 0.0
        %3292 = vmatprep.subr.mxu0 0.0
        %3293 = vmatpush1.msra.mxu0 0.0
        %3294 = vmatprep.subr.mxu0 0.0
        %3295 = vmatpush1.msra.mxu0 0.0
        %3296 = vmatprep.subr.mxu0 0.0
        %3297 = vmatpush1.msra.mxu0 0.0
        %3298 = vmatprep.subr.mxu0 0.0
        %3299 = vmatpush1.msra.mxu0 0.0
        %3300 = vmatprep.subr.mxu0 0.0
        %3301 = vmatpush1.msra.mxu0 0.0
        %3302 = vmatprep.subr.mxu0 0.0
        %3303 = vmatpush1.msra.mxu0 0.0
        %3304 = vmatprep.subr.mxu0 0.0
        %3305 = vmatpush1.msra.mxu0 0.0
        %3306 = vmatprep.subr.mxu0 0.0
        %3307 = vmatpush1.msra.mxu0 0.0
        %3308 = vmatprep.subr.mxu0 0.0
        %3309 = vmatpush1.msra.mxu0 0.0
        %3310 = vmatprep.subr.mxu0 0.0
        %3311 = vmatpush1.msra.mxu0 0.0
        %3312 = vmatprep.subr.mxu0 0.0
        %3313 = vmatpush1.msra.mxu0 0.0
        %3314 = vmatprep.subr.mxu0 0.0
        %3315 = vmatpush1.msra.mxu0 0.0
        %3316 = vmatprep.subr.mxu0 0.0
        %3317 = vmatpush1.msra.mxu0 0.0
        %3318 = vmatprep.subr.mxu0 0.0
        %3319 = vmatpush1.msra.mxu0 0.0
        %3320 = vmatprep.subr.mxu0 0.0
        %3321 = vmatpush1.msra.mxu0 0.0
        %3322 = vmatprep.subr.mxu0 0.0
        %3323 = vmatpush1.msra.mxu0 0.0
        %3324 = vmatprep.subr.mxu0 0.0
        %3325 = vmatpush1.msra.mxu0 0.0
        %3326 = vmatprep.subr.mxu0 0.0
        %3327 = vmatpush1.msra.mxu0 0.0
        %3328 = vmatprep.subr.mxu0 0.0
        %3329 = vmatpush1.msra.mxu0 0.0
        %3330 = vmatprep.subr.mxu0 0.0
        %3331 = vmatpush1.msra.mxu0 0.0
        %3332 = vmatprep.subr.mxu0 0.0
        %3333 = vmatpush1.msra.mxu0 0.0
        %3334 = vmatprep.subr.mxu0 0.0
        %3335 = vmatpush1.msra.mxu0 0.0
        %3336 = vmatprep.subr.mxu0 0.0
        %3337 = vmatpush1.msra.mxu0 0.0
        %3338 = vmatprep.subr.mxu0 0.0
        %3339 = vmatpush1.msra.mxu0 0.0
        %3340 = vmatprep.subr.mxu0 0.0
        %3341 = vmatpush1.msra.mxu0 0.0
        %3342 = vmatprep.subr.mxu0 0.0
        %3343 = vmatpush1.msra.mxu0 0.0
        %3344 = vmatprep.mubr.f32.mxu0 0.0
        %3345 = vmatmul.mubr.f32.gmra.mrb[0].mxu0 %v3275
        %v3346 = vpop.f32.mrb[0].mxu0
        %v3347 = vadd.f32 0.0, %v3346
        %v3348 = vpop.f32.mrb[0].mxu0
        %3349 = vdwg.mxu0
        %v3351 = vsel %vm1466, %v3268, 0
        %v3354 = vsel %vm1836, %v3270, 0
        %3356 = vmatprep.subr.mxu0 0.0
        %3357 = vmatpush1.msra.mxu0 %v3354
        %3358 = vmatprep.subr.mxu0 0.0
        %3359 = vmatpush1.msra.mxu0 0.0
        %3360 = vmatprep.subr.mxu0 0.0
        %3361 = vmatpush1.msra.mxu0 0.0
        %3362 = vmatprep.subr.mxu0 0.0
        %3363 = vmatpush1.msra.mxu0 0.0
        %3364 = vmatprep.subr.mxu0 0.0
        %3365 = vmatpush1.msra.mxu0 0.0
        %3366 = vmatprep.subr.mxu0 0.0
        %3367 = vmatpush1.msra.mxu0 0.0
        %3368 = vmatprep.subr.mxu0 0.0
        %3369 = vmatpush1.msra.mxu0 0.0
        %3370 = vmatprep.subr.mxu0 0.0
        %3371 = vmatpush1.msra.mxu0 0.0
        %3372 = vmatprep.subr.mxu0 0.0
        %3373 = vmatpush1.msra.mxu0 0.0
        %3374 = vmatprep.subr.mxu0 0.0
        %3375 = vmatpush1.msra.mxu0 0.0
        %3376 = vmatprep.subr.mxu0 0.0
        %3377 = vmatpush1.msra.mxu0 0.0
        %3378 = vmatprep.subr.mxu0 0.0
        %3379 = vmatpush1.msra.mxu0 0.0
        %3380 = vmatprep.subr.mxu0 0.0
        %3381 = vmatpush1.msra.mxu0 0.0
        %3382 = vmatprep.subr.mxu0 0.0
        %3383 = vmatpush1.msra.mxu0 0.0
        %3384 = vmatprep.subr.mxu0 0.0
        %3385 = vmatpush1.msra.mxu0 0.0
        %3386 = vmatprep.subr.mxu0 0.0
        %3387 = vmatpush1.msra.mxu0 0.0
        %3388 = vmatprep.subr.mxu0 0.0
        %3389 = vmatpush1.msra.mxu0 0.0
        %3390 = vmatprep.subr.mxu0 0.0
        %3391 = vmatpush1.msra.mxu0 0.0
        %3392 = vmatprep.subr.mxu0 0.0
        %3393 = vmatpush1.msra.mxu0 0.0
        %3394 = vmatprep.subr.mxu0 0.0
        %3395 = vmatpush1.msra.mxu0 0.0
        %3396 = vmatprep.subr.mxu0 0.0
        %3397 = vmatpush1.msra.mxu0 0.0
        %3398 = vmatprep.subr.mxu0 0.0
        %3399 = vmatpush1.msra.mxu0 0.0
        %3400 = vmatprep.subr.mxu0 0.0
        %3401 = vmatpush1.msra.mxu0 0.0
        %3402 = vmatprep.subr.mxu0 0.0
        %3403 = vmatpush1.msra.mxu0 0.0
        %3404 = vmatprep.subr.mxu0 0.0
        %3405 = vmatpush1.msra.mxu0 0.0
        %3406 = vmatprep.subr.mxu0 0.0
        %3407 = vmatpush1.msra.mxu0 0.0
        %3408 = vmatprep.subr.mxu0 0.0
        %3409 = vmatpush1.msra.mxu0 0.0
        %3410 = vmatprep.subr.mxu0 0.0
        %3411 = vmatpush1.msra.mxu0 0.0
        %3412 = vmatprep.subr.mxu0 0.0
        %3413 = vmatpush1.msra.mxu0 0.0
        %3414 = vmatprep.subr.mxu0 0.0
        %3415 = vmatpush1.msra.mxu0 0.0
        %3416 = vmatprep.subr.mxu0 0.0
        %3417 = vmatpush1.msra.mxu0 0.0
        %3418 = vmatprep.subr.mxu0 0.0
        %3419 = vmatpush1.msra.mxu0 0.0
        %3420 = vmatprep.mubr.f32.mxu0 0.0
        %3421 = vmatmul.mubr.f32.gmra.mrb[0].mxu0 %v3351
        %v3422 = vpop.f32.mrb[0].mxu0
        %v3423 = vadd.f32 %v3347, %v3422
        %v3424 = vpop.f32.mrb[0].mxu0
        %3425 = vdwg.mxu0
        %v3427 = vlaneseq
        %v3428 = vshrl.u32 %v3427, 7
        %v3429 = vsub.s32 0, %v3428
        %v3430 = vrot.slane %v3274, %v3429
        %v3432 = vadd.f32 %v3423, %v3430
        %vm3433 = vcmp.ge.f32.partialorder %v3432, 0.0
        %v3434 = vmul.f32 %v3432, 0.01
        %v3435 = vsel %vm3433, %v3432, %v3434
        %s3436 = scalar_lea.vmem %s39, 4
        %v3437 = vld [vmem:[%s3436] sm:$0xf]
        %s3438 = scalar_lea.vmem %s41, 1
        %v3439 = vld [vmem:[%s3438] sm:$0x1]
        %s3440 = scalar_lea.vmem %s43, 8
        %v3441 = vld [vmem:[%s3440] sm:$0xff]
        %s3442 = scalar_lea.vmem %s45, 1
        %v3443 = vld [vmem:[%s3442] sm:$0x1]
        %s3444 = scalar_lea.vmem %s47, 1
        %v3445 = vld [vmem:[%s3444] sm:$0x1]
        %s3446 = scalar_lea.vmem %s49, 1
        %v3447 = vld [vmem:[%s3446] sm:$0x1]
        %v3450 = vunpack.c.l.s4 1966171168
        %v3451 = vunpack.c.0.s8 %v3450
        %v3452 = vlaneseq
        %v3453 = vshrl.u32 %v3452, 7
        %v3454 = vsub.s32 %v3451, %v3453
        %v3455 = vrot.slane %v3435, %v3454
        %v3456 = vcombine.high %v3455, %v3455
        %v3458 = vunpack.c.l.s4 1966171168
        %v3459 = vunpack.c.0.s8 %v3458
        %v3460 = vlaneseq
        %v3461 = vshrl.u32 %v3460, 7
        %v3462 = vsub.s32 %v3459, %v3461
        %v3463 = vrot.slane %v3455, %v3462
        %v3465 = vunpack.c.l.s4 1966171168
        %v3466 = vunpack.c.0.s8 %v3465
        %v3467 = vlaneseq
        %v3468 = vshrl.u32 %v3467, 7
        %v3469 = vsub.s32 %v3466, %v3468
        %v3470 = vrot.slane %v3456, %v3469
        %v3471 = vcombine.high %v3463, %v3463
        %v3472 = vcombine.high %v3470, %v3470
        %v3473 = vlaneseq
        %v3474 = vshrl.u32 %v3473, 7
        %v3475 = vsub.s32 0, %v3474
        %v3476 = vrot.slane %v3463, %v3475
        %v3477 = vlaneseq
        %v3478 = vshrl.u32 %v3477, 7
        %v3479 = vsub.s32 0, %v3478
        %v3480 = vrot.slane %v3470, %v3479
        %v3481 = vlaneseq
        %v3482 = vshrl.u32 %v3481, 7
        %v3483 = vsub.s32 0, %v3482
        %v3484 = vrot.slane %v3471, %v3483
        %v3485 = vlaneseq
        %v3486 = vshrl.u32 %v3485, 7
        %v3487 = vsub.s32 0, %v3486
        %v3488 = vrot.slane %v3472, %v3487
        %v3493 = vsub.f32 %v3435, %v3476
        %v3494 = vsub.f32 %v3435, %v3480
        %v3495 = vsub.f32 %v3435, %v3484
        %v3496 = vsub.f32 %v3435, %v3488
        %v3497 = vmul.f32 %v3493, %v3493
        %v3498 = vmul.f32 %v3494, %v3494
        %v3499 = vmul.f32 %v3495, %v3495
        %v3500 = vmul.f32 %v3496, %v3496
        %v3502 = vlaneseq
        %v3503 = vshrl.u32 %v3502, 7
        %v3504 = vsub.s32 0, %v3503
        %v3505 = vrot.slane %v3439, %v3504
        %v3508 = vsel %vm1466, %v3497, 0
        %v3511 = vsel %vm1466, %v3498, 0
        %v3514 = vsel %vm1466, %v3499, 0
        %v3517 = vsel %vm1466, %v3500, 0
        %v3520 = vsel %vm1836, %v3437, 0
        %3522 = vmatprep.subr.mxu0 0.0
        %3523 = vmatpush1.msra.mxu0 %v3520
        %3524 = vmatprep.subr.mxu0 0.0
        %3525 = vmatpush1.msra.mxu0 0.0
        %3526 = vmatprep.subr.mxu0 0.0
        %3527 = vmatpush1.msra.mxu0 0.0
        %3528 = vmatprep.subr.mxu0 0.0
        %3529 = vmatpush1.msra.mxu0 0.0
        %3530 = vmatprep.subr.mxu0 0.0
        %3531 = vmatpush1.msra.mxu0 0.0
        %3532 = vmatprep.subr.mxu0 0.0
        %3533 = vmatpush1.msra.mxu0 0.0
        %3534 = vmatprep.subr.mxu0 0.0
        %3535 = vmatpush1.msra.mxu0 0.0
        %3536 = vmatprep.subr.mxu0 0.0
        %3537 = vmatpush1.msra.mxu0 0.0
        %3538 = vmatprep.subr.mxu0 0.0
        %3539 = vmatpush1.msra.mxu0 0.0
        %3540 = vmatprep.subr.mxu0 0.0
        %3541 = vmatpush1.msra.mxu0 0.0
        %3542 = vmatprep.subr.mxu0 0.0
        %3543 = vmatpush1.msra.mxu0 0.0
        %3544 = vmatprep.subr.mxu0 0.0
        %3545 = vmatpush1.msra.mxu0 0.0
        %3546 = vmatprep.subr.mxu0 0.0
        %3547 = vmatpush1.msra.mxu0 0.0
        %3548 = vmatprep.subr.mxu0 0.0
        %3549 = vmatpush1.msra.mxu0 0.0
        %3550 = vmatprep.subr.mxu0 0.0
        %3551 = vmatpush1.msra.mxu0 0.0
        %3552 = vmatprep.subr.mxu0 0.0
        %3553 = vmatpush1.msra.mxu0 0.0
        %3554 = vmatprep.subr.mxu0 0.0
        %3555 = vmatpush1.msra.mxu0 0.0
        %3556 = vmatprep.subr.mxu0 0.0
        %3557 = vmatpush1.msra.mxu0 0.0
        %3558 = vmatprep.subr.mxu0 0.0
        %3559 = vmatpush1.msra.mxu0 0.0
        %3560 = vmatprep.subr.mxu0 0.0
        %3561 = vmatpush1.msra.mxu0 0.0
        %3562 = vmatprep.subr.mxu0 0.0
        %3563 = vmatpush1.msra.mxu0 0.0
        %3564 = vmatprep.subr.mxu0 0.0
        %3565 = vmatpush1.msra.mxu0 0.0
        %3566 = vmatprep.subr.mxu0 0.0
        %3567 = vmatpush1.msra.mxu0 0.0
        %3568 = vmatprep.subr.mxu0 0.0
        %3569 = vmatpush1.msra.mxu0 0.0
        %3570 = vmatprep.subr.mxu0 0.0
        %3571 = vmatpush1.msra.mxu0 0.0
        %3572 = vmatprep.subr.mxu0 0.0
        %3573 = vmatpush1.msra.mxu0 0.0
        %3574 = vmatprep.subr.mxu0 0.0
        %3575 = vmatpush1.msra.mxu0 0.0
        %3576 = vmatprep.subr.mxu0 0.0
        %3577 = vmatpush1.msra.mxu0 0.0
        %3578 = vmatprep.subr.mxu0 0.0
        %3579 = vmatpush1.msra.mxu0 0.0
        %3580 = vmatprep.subr.mxu0 0.0
        %3581 = vmatpush1.msra.mxu0 0.0
        %3582 = vmatprep.subr.mxu0 0.0
        %3583 = vmatpush1.msra.mxu0 0.0
        %3584 = vmatprep.subr.mxu0 0.0
        %3585 = vmatpush1.msra.mxu0 0.0
        %3586 = vmatprep.mubr.f32.mxu0 0.0
        %3587 = vmatmul.mubr.f32.gmra.mrb[0].mxu0 %v3508
        %v3588 = vpop.f32.mrb[0].mxu0
        %v3589 = vadd.f32 %v3505, %v3588
        %v3590 = vpop.f32.mrb[0].mxu0
        %3591 = vmatprep.mubr.f32.mxu0 0.0
        %3592 = vmatmul.mubr.f32.gmra.mrb[0].mxu0 %v3511
        %v3593 = vpop.f32.mrb[0].mxu0
        %v3594 = vadd.f32 %v3505, %v3593
        %v3595 = vpop.f32.mrb[0].mxu0
        %3596 = vmatprep.mubr.f32.mxu0 0.0
        %3597 = vmatmul.mubr.f32.gmra.mrb[0].mxu0 %v3514
        %v3598 = vpop.f32.mrb[0].mxu0
        %v3599 = vadd.f32 %v3505, %v3598
        %v3600 = vpop.f32.mrb[0].mxu0
        %3601 = vmatprep.mubr.f32.mxu0 0.0
        %3602 = vmatmul.mubr.f32.gmra.mrb[0].mxu0 %v3517
        %v3603 = vpop.f32.mrb[0].mxu0
        %v3604 = vadd.f32 %v3505, %v3603
        %v3605 = vpop.f32.mrb[0].mxu0
        %3606 = vdwg.mxu0
        %vm3607 = vcmp.ge.f32.partialorder %v3589, 0.0
        %vm3608 = vcmp.ge.f32.partialorder %v3594, 0.0
        %vm3609 = vcmp.ge.f32.partialorder %v3599, 0.0
        %vm3610 = vcmp.ge.f32.partialorder %v3604, 0.0
        %v3611 = vmul.f32 %v3589, 0.01
        %v3612 = vmul.f32 %v3594, 0.01
        %v3613 = vmul.f32 %v3599, 0.01
        %v3614 = vmul.f32 %v3604, 0.01
        %v3615 = vsel %vm3607, %v3589, %v3611
        %v3616 = vsel %vm3608, %v3594, %v3612
        %v3617 = vsel %vm3609, %v3599, %v3613
        %v3618 = vsel %vm3610, %v3604, %v3614
        %v3620 = vlaneseq
        %v3621 = vshrl.u32 %v3620, 7
        %v3622 = vsub.s32 0, %v3621
        %v3623 = vrot.slane %v3443, %v3622
        %v3626 = vsel %vm2179, %v3615, 0
        %v3629 = vsel %vm2179, %v3616, 0
        %v3632 = vsel %vm2179, %v3617, 0
        %v3635 = vsel %vm2179, %v3618, 0
        %3637 = vmatprep.subr.mxu0 0.0
        %3638 = vmatpush1.msra.mxu0 %v3441
        %3639 = vmatprep.subr.mxu0 0.0
        %3640 = vmatpush1.msra.mxu0 0.0
        %3641 = vmatprep.subr.mxu0 0.0
        %3642 = vmatpush1.msra.mxu0 0.0
        %3643 = vmatprep.subr.mxu0 0.0
        %3644 = vmatpush1.msra.mxu0 0.0
        %3645 = vmatprep.subr.mxu0 0.0
        %3646 = vmatpush1.msra.mxu0 0.0
        %3647 = vmatprep.subr.mxu0 0.0
        %3648 = vmatpush1.msra.mxu0 0.0
        %3649 = vmatprep.subr.mxu0 0.0
        %3650 = vmatpush1.msra.mxu0 0.0
        %3651 = vmatprep.subr.mxu0 0.0
        %3652 = vmatpush1.msra.mxu0 0.0
        %3653 = vmatprep.subr.mxu0 0.0
        %3654 = vmatpush1.msra.mxu0 0.0
        %3655 = vmatprep.subr.mxu0 0.0
        %3656 = vmatpush1.msra.mxu0 0.0
        %3657 = vmatprep.subr.mxu0 0.0
        %3658 = vmatpush1.msra.mxu0 0.0
        %3659 = vmatprep.subr.mxu0 0.0
        %3660 = vmatpush1.msra.mxu0 0.0
        %3661 = vmatprep.subr.mxu0 0.0
        %3662 = vmatpush1.msra.mxu0 0.0
        %3663 = vmatprep.subr.mxu0 0.0
        %3664 = vmatpush1.msra.mxu0 0.0
        %3665 = vmatprep.subr.mxu0 0.0
        %3666 = vmatpush1.msra.mxu0 0.0
        %3667 = vmatprep.subr.mxu0 0.0
        %3668 = vmatpush1.msra.mxu0 0.0
        %3669 = vmatprep.subr.mxu0 0.0
        %3670 = vmatpush1.msra.mxu0 0.0
        %3671 = vmatprep.subr.mxu0 0.0
        %3672 = vmatpush1.msra.mxu0 0.0
        %3673 = vmatprep.subr.mxu0 0.0
        %3674 = vmatpush1.msra.mxu0 0.0
        %3675 = vmatprep.subr.mxu0 0.0
        %3676 = vmatpush1.msra.mxu0 0.0
        %3677 = vmatprep.subr.mxu0 0.0
        %3678 = vmatpush1.msra.mxu0 0.0
        %3679 = vmatprep.subr.mxu0 0.0
        %3680 = vmatpush1.msra.mxu0 0.0
        %3681 = vmatprep.subr.mxu0 0.0
        %3682 = vmatpush1.msra.mxu0 0.0
        %3683 = vmatprep.subr.mxu0 0.0
        %3684 = vmatpush1.msra.mxu0 0.0
        %3685 = vmatprep.subr.mxu0 0.0
        %3686 = vmatpush1.msra.mxu0 0.0
        %3687 = vmatprep.subr.mxu0 0.0
        %3688 = vmatpush1.msra.mxu0 0.0
        %3689 = vmatprep.subr.mxu0 0.0
        %3690 = vmatpush1.msra.mxu0 0.0
        %3691 = vmatprep.subr.mxu0 0.0
        %3692 = vmatpush1.msra.mxu0 0.0
        %3693 = vmatprep.subr.mxu0 0.0
        %3694 = vmatpush1.msra.mxu0 0.0
        %3695 = vmatprep.subr.mxu0 0.0
        %3696 = vmatpush1.msra.mxu0 0.0
        %3697 = vmatprep.subr.mxu0 0.0
        %3698 = vmatpush1.msra.mxu0 0.0
        %3699 = vmatprep.subr.mxu0 0.0
        %3700 = vmatpush1.msra.mxu0 0.0
        %3701 = vmatprep.mubr.f32.mxu0 0.0
        %3702 = vmatmul.mubr.f32.gmra.mrb[0].mxu0 %v3626
        %v3703 = vpop.f32.mrb[0].mxu0
        %v3704 = vadd.f32 %v3623, %v3703
        %v3705 = vpop.f32.mrb[0].mxu0
        %3706 = vmatprep.mubr.f32.mxu0 0.0
        %3707 = vmatmul.mubr.f32.gmra.mrb[0].mxu0 %v3629
        %v3708 = vpop.f32.mrb[0].mxu0
        %v3709 = vadd.f32 %v3623, %v3708
        %v3710 = vpop.f32.mrb[0].mxu0
        %3711 = vmatprep.mubr.f32.mxu0 0.0
        %3712 = vmatmul.mubr.f32.gmra.mrb[0].mxu0 %v3632
        %v3713 = vpop.f32.mrb[0].mxu0
        %v3714 = vadd.f32 %v3623, %v3713
        %v3715 = vpop.f32.mrb[0].mxu0
        %3716 = vmatprep.mubr.f32.mxu0 0.0
        %3717 = vmatmul.mubr.f32.gmra.mrb[0].mxu0 %v3635
        %v3718 = vpop.f32.mrb[0].mxu0
        %v3719 = vadd.f32 %v3623, %v3718
        %v3720 = vpop.f32.mrb[0].mxu0
        %3721 = vdwg.mxu0
        %vm3722 = vcmp.ge.f32.partialorder %v3704, 0.0
        %vm3723 = vcmp.ge.f32.partialorder %v3709, 0.0
        %vm3724 = vcmp.ge.f32.partialorder %v3714, 0.0
        %vm3725 = vcmp.ge.f32.partialorder %v3719, 0.0
        %v3726 = vmul.f32 %v3704, 0.01
        %v3727 = vmul.f32 %v3709, 0.01
        %v3728 = vmul.f32 %v3714, 0.01
        %v3729 = vmul.f32 %v3719, 0.01
        %v3730 = vsel %vm3722, %v3704, %v3726
        %v3731 = vsel %vm3723, %v3709, %v3727
        %v3732 = vsel %vm3724, %v3714, %v3728
        %v3733 = vsel %vm3725, %v3719, %v3729
        %v3735 = vlaneseq
        %v3736 = vshrl.u32 %v3735, 7
        %v3737 = vsub.s32 0, %v3736
        %v3738 = vrot.slane %v3445, %v3737
        %v3740 = vmul.f32 %v3730, %v3738
        %v3741 = vsel %vm1466, %v3740, 0.0
        %3742 = vadd.xlane.f32.xlu0 %v3741
        %v3743 = vpop.xlane.xlu0 %3742
        %v3745 = vlaneseq
        %v3746 = vshrl.u32 %v3745, 7
        %v3747 = vsub.s32 0, %v3746
        %v3748 = vrot.slane %v3447, %v3747
        %v3750 = vadd.f32 %v3743, %v3748
        %v3751 = vxor.u32 %v3750, 2147483648
        %v3752 = vmul.f32 %v3751, 1.442695
        %v3753 = vpow.pop %v3752
        %v3754 = vadd.f32 %v3753, 1.0
        %v3755 = vrcp.pop %v3754
        %v3756 = vmul.f32 1.0, %v3755
        %v3757 = vsel %vm1466, %v3497, 0.0
        %3758 = vadd.xlane.f32.xlu0 %v3757
        %v3759 = vpop.xlane.xlu0 %3758
        %v3760 = vsub.f32 0.0, %v3759
        %v3761 = vmul.f32 %v3760, 0.5
        %v3762 = vmul.f32 %v3731, %v3738
        %v3763 = vsel %vm1466, %v3762, 0.0
        %3764 = vadd.xlane.f32.xlu0 %v3763
        %v3765 = vpop.xlane.xlu0 %3764
        %v3766 = vadd.f32 %v3765, %v3748
        %v3767 = vxor.u32 %v3766, 2147483648
        %v3768 = vmul.f32 %v3767, 1.442695
        %v3769 = vpow.pop %v3768
        %v3770 = vadd.f32 %v3769, 1.0
        %v3771 = vrcp.pop %v3770
        %v3772 = vmul.f32 1.0, %v3771
        %v3773 = vsel %vm1466, %v3498, 0.0
        %3774 = vadd.xlane.f32.xlu0 %v3773
        %v3775 = vpop.xlane.xlu0 %3774
        %v3776 = vsub.f32 0.0, %v3775
        %v3777 = vmul.f32 %v3776, 0.5
        %v3778 = vmul.f32 %v3732, %v3738
        %v3779 = vsel %vm1466, %v3778, 0.0
        %3780 = vadd.xlane.f32.xlu0 %v3779
        %v3781 = vpop.xlane.xlu0 %3780
        %v3782 = vadd.f32 %v3781, %v3748
        %v3783 = vxor.u32 %v3782, 2147483648
        %v3784 = vmul.f32 %v3783, 1.442695
        %v3785 = vpow.pop %v3784
        %v3786 = vadd.f32 %v3785, 1.0
        %v3787 = vrcp.pop %v3786
        %v3788 = vmul.f32 1.0, %v3787
        %v3789 = vsel %vm1466, %v3499, 0.0
        %3790 = vadd.xlane.f32.xlu0 %v3789
        %v3791 = vpop.xlane.xlu0 %3790
        %v3792 = vsub.f32 0.0, %v3791
        %v3793 = vmul.f32 %v3792, 0.5
        %v3794 = vmul.f32 %v3733, %v3738
        %v3795 = vsel %vm1466, %v3794, 0.0
        %3796 = vadd.xlane.f32.xlu0 %v3795
        %v3797 = vpop.xlane.xlu0 %3796
        %v3798 = vadd.f32 %v3797, %v3748
        %v3799 = vxor.u32 %v3798, 2147483648
        %v3800 = vmul.f32 %v3799, 1.442695
        %v3801 = vpow.pop %v3800
        %v3802 = vadd.f32 %v3801, 1.0
        %v3803 = vrcp.pop %v3802
        %v3804 = vmul.f32 1.0, %v3803
        %v3805 = vsel %vm1466, %v3500, 0.0
        %3806 = vadd.xlane.f32.xlu0 %v3805
        %v3807 = vpop.xlane.xlu0 %3806
        %v3808 = vsub.f32 0.0, %v3807
        %v3809 = vmul.f32 %v3808, 0.5
        %3811 = vrot.lane.b32.xlu0 %v3772, 1
        %v3812 = vpop.permute.xlu0 %3811
        %3815 = vrot.lane.b32.xlu0 %v3788, 2
        %v3816 = vpop.permute.xlu0 %3815
        %3819 = vrot.lane.b32.xlu0 %v3804, 3
        %v3820 = vpop.permute.xlu0 %3819
        %v3822 = vsel %vm1458, %v3756, %v3812
        %v3823 = vsel %vm1460, %v3822, %v3816
        %v3824 = vsel %vm1462, %v3823, %v3820
        %v3825 = vsel %vm1458, %v3761, %v3777
        %v3826 = vsel %vm1460, %v3825, %v3793
        %v3827 = vsel %vm1462, %v3826, %v3809
        %v3828 = vsel %vm1466, %v2421, 0.0
        %3829 = vadd.xlane.f32.xlu0 %v3828
        %v3830 = vpop.xlane.xlu0 %3829
        %v3831 = vmul.f32 %v3824, %v2421
        %v3832 = vand.u32 2147483647, %v3831
        %v3833 = vsel %vm1466, %v3832, 0.0
        %3834 = vadd.xlane.f32.xlu0 %v3833
        %v3835 = vpop.xlane.xlu0 %3834
        %v3836 = vmax.f32 %v3835, 1e-12
        %v3837 = vrcp.pop %v3836
        %v3838 = vmul.f32 %v3831, %v3837
        %v3839 = vmul.f32 %v3838, %v3830
        %v3840 = vadd.f32 %v3839, %v1088
        %v3841 = vadd.f32 %v3840, 1e-06
        %v3842 = vsel %vm1466, %v3841, 0.0
        %3843 = vadd.xlane.f32.xlu0 %v3842
        %v3844 = vpop.xlane.xlu0 %3843
        %v3845 = vrcp.pop %v3844
        %v3846 = vmul.f32 %v3841, %v3845
        %v3847 = vmul.f32 %v3846, %v1464
        %v3848 = vand.u32 2147483647, %v3847
        %v3849 = vsel %vm1466, %v3848, 0.0
        %3850 = vadd.xlane.f32.xlu0 %v3849
        %v3851 = vpop.xlane.xlu0 %3850
        %v3852 = vmax.f32 %v3851, 1e-12
        %v3853 = vrcp.pop %v3852
        %v3854 = vmul.f32 %v3847, %v3853
        %v3856 = vsel %vm1466, %v3854, 0
        %v3858 = vsel %vm1836, %v2849, 0
        %3860 = vmatprep.subr.mxu0 0.0
        %3861 = vmatpush1.msra.mxu0 %v3858
        %3862 = vmatprep.subr.mxu0 0.0
        %3863 = vmatpush1.msra.mxu0 0.0
        %3864 = vmatprep.subr.mxu0 0.0
        %3865 = vmatpush1.msra.mxu0 0.0
        %3866 = vmatprep.subr.mxu0 0.0
        %3867 = vmatpush1.msra.mxu0 0.0
        %3868 = vmatprep.subr.mxu0 0.0
        %3869 = vmatpush1.msra.mxu0 0.0
        %3870 = vmatprep.subr.mxu0 0.0
        %3871 = vmatpush1.msra.mxu0 0.0
        %3872 = vmatprep.subr.mxu0 0.0
        %3873 = vmatpush1.msra.mxu0 0.0
        %3874 = vmatprep.subr.mxu0 0.0
        %3875 = vmatpush1.msra.mxu0 0.0
        %3876 = vmatprep.subr.mxu0 0.0
        %3877 = vmatpush1.msra.mxu0 0.0
        %3878 = vmatprep.subr.mxu0 0.0
        %3879 = vmatpush1.msra.mxu0 0.0
        %3880 = vmatprep.subr.mxu0 0.0
        %3881 = vmatpush1.msra.mxu0 0.0
        %3882 = vmatprep.subr.mxu0 0.0
        %3883 = vmatpush1.msra.mxu0 0.0
        %3884 = vmatprep.subr.mxu0 0.0
        %3885 = vmatpush1.msra.mxu0 0.0
        %3886 = vmatprep.subr.mxu0 0.0
        %3887 = vmatpush1.msra.mxu0 0.0
        %3888 = vmatprep.subr.mxu0 0.0
        %3889 = vmatpush1.msra.mxu0 0.0
        %3890 = vmatprep.subr.mxu0 0.0
        %3891 = vmatpush1.msra.mxu0 0.0
        %3892 = vmatprep.subr.mxu0 0.0
        %3893 = vmatpush1.msra.mxu0 0.0
        %3894 = vmatprep.subr.mxu0 0.0
        %3895 = vmatpush1.msra.mxu0 0.0
        %3896 = vmatprep.subr.mxu0 0.0
        %3897 = vmatpush1.msra.mxu0 0.0
        %3898 = vmatprep.subr.mxu0 0.0
        %3899 = vmatpush1.msra.mxu0 0.0
        %3900 = vmatprep.subr.mxu0 0.0
        %3901 = vmatpush1.msra.mxu0 0.0
        %3902 = vmatprep.subr.mxu0 0.0
        %3903 = vmatpush1.msra.mxu0 0.0
        %3904 = vmatprep.subr.mxu0 0.0
        %3905 = vmatpush1.msra.mxu0 0.0
        %3906 = vmatprep.subr.mxu0 0.0
        %3907 = vmatpush1.msra.mxu0 0.0
        %3908 = vmatprep.subr.mxu0 0.0
        %3909 = vmatpush1.msra.mxu0 0.0
        %3910 = vmatprep.subr.mxu0 0.0
        %3911 = vmatpush1.msra.mxu0 0.0
        %3912 = vmatprep.subr.mxu0 0.0
        %3913 = vmatpush1.msra.mxu0 0.0
        %3914 = vmatprep.subr.mxu0 0.0
        %3915 = vmatpush1.msra.mxu0 0.0
        %3916 = vmatprep.subr.mxu0 0.0
        %3917 = vmatpush1.msra.mxu0 0.0
        %3918 = vmatprep.subr.mxu0 0.0
        %3919 = vmatpush1.msra.mxu0 0.0
        %3920 = vmatprep.subr.mxu0 0.0
        %3921 = vmatpush1.msra.mxu0 0.0
        %3922 = vmatprep.subr.mxu0 0.0
        %3923 = vmatpush1.msra.mxu0 0.0
        %3924 = vmatprep.mubr.f32.mxu0 0.0
        %3925 = vmatmul.mubr.f32.gmra.mrb[0].mxu0 %v3856
        %v3926 = vpop.f32.mrb[0].mxu0
        %v3927 = vadd.f32 0.0, %v3926
        %v3928 = vpop.f32.mrb[0].mxu0
        %3929 = vdwg.mxu0
        %3930 = vxpose.xlu0.b32.start [1/16] %v3854, 128
        %3931 = vxpose.xlu0.b32.cont [2/16] 0.0, 128
        %3932 = vxpose.xlu0.b32.cont [3/16] 0.0, 128
        %3933 = vxpose.xlu0.b32.cont [4/16] 0.0, 128
        %3934 = vxpose.xlu0.b32.cont [5/16] 0.0, 128
        %3935 = vxpose.xlu0.b32.cont [6/16] 0.0, 128
        %3936 = vxpose.xlu0.b32.cont [7/16] 0.0, 128
        %3937 = vxpose.xlu0.b32.cont [8/16] 0.0, 128
        %3938 = vxpose.xlu0.b32.cont [9/16] 0.0, 128
        %3939 = vxpose.xlu0.b32.cont [10/16] 0.0, 128
        %3940 = vxpose.xlu0.b32.cont [11/16] 0.0, 128
        %3941 = vxpose.xlu0.b32.cont [12/16] 0.0, 128
        %3942 = vxpose.xlu0.b32.cont [13/16] 0.0, 128
        %3943 = vxpose.xlu0.b32.cont [14/16] 0.0, 128
        %3944 = vxpose.xlu0.b32.cont [15/16] 0.0, 128
        %3945 = vxpose.xlu0.b32.end [16/16] 0.0, 128
        %v3946 = vpop.trf.xlu0
        %v3947 = vpop.trf.xlu0
        %v3948 = vpop.trf.xlu0
        %v3949 = vpop.trf.xlu0
        %v3950 = vpop.trf.xlu0
        %v3951 = vpop.trf.xlu0
        %v3952 = vpop.trf.xlu0
        %v3953 = vpop.trf.xlu0
        %v3954 = vpop.trf.xlu0
        %v3955 = vpop.trf.xlu0
        %v3956 = vpop.trf.xlu0
        %v3957 = vpop.trf.xlu0
        %v3958 = vpop.trf.xlu0
        %v3959 = vpop.trf.xlu0
        %v3960 = vpop.trf.xlu0
        %v3961 = vpop.trf.xlu0
        %v3963 = vsel %vm2179, %v3946, 0
        %3965 = vmatprep.subr.mxu0 0.0
        %3966 = vmatpush1.msra.mxu0 %v2849
        %3967 = vmatprep.subr.mxu0 0.0
        %3968 = vmatpush1.msra.mxu0 0.0
        %3969 = vmatprep.subr.mxu0 0.0
        %3970 = vmatpush1.msra.mxu0 0.0
        %3971 = vmatprep.subr.mxu0 0.0
        %3972 = vmatpush1.msra.mxu0 0.0
        %3973 = vmatprep.subr.mxu0 0.0
        %3974 = vmatpush1.msra.mxu0 0.0
        %3975 = vmatprep.subr.mxu0 0.0
        %3976 = vmatpush1.msra.mxu0 0.0
        %3977 = vmatprep.subr.mxu0 0.0
        %3978 = vmatpush1.msra.mxu0 0.0
        %3979 = vmatprep.subr.mxu0 0.0
        %3980 = vmatpush1.msra.mxu0 0.0
        %3981 = vmatprep.subr.mxu0 0.0
        %3982 = vmatpush1.msra.mxu0 0.0
        %3983 = vmatprep.subr.mxu0 0.0
        %3984 = vmatpush1.msra.mxu0 0.0
        %3985 = vmatprep.subr.mxu0 0.0
        %3986 = vmatpush1.msra.mxu0 0.0
        %3987 = vmatprep.subr.mxu0 0.0
        %3988 = vmatpush1.msra.mxu0 0.0
        %3989 = vmatprep.subr.mxu0 0.0
        %3990 = vmatpush1.msra.mxu0 0.0
        %3991 = vmatprep.subr.mxu0 0.0
        %3992 = vmatpush1.msra.mxu0 0.0
        %3993 = vmatprep.subr.mxu0 0.0
        %3994 = vmatpush1.msra.mxu0 0.0
        %3995 = vmatprep.subr.mxu0 0.0
        %3996 = vmatpush1.msra.mxu0 0.0
        %3997 = vmatprep.subr.mxu0 0.0
        %3998 = vmatpush1.msra.mxu0 0.0
        %3999 = vmatprep.subr.mxu0 0.0
        %4000 = vmatpush1.msra.mxu0 0.0
        %4001 = vmatprep.subr.mxu0 0.0
        %4002 = vmatpush1.msra.mxu0 0.0
        %4003 = vmatprep.subr.mxu0 0.0
        %4004 = vmatpush1.msra.mxu0 0.0
        %4005 = vmatprep.subr.mxu0 0.0
        %4006 = vmatpush1.msra.mxu0 0.0
        %4007 = vmatprep.subr.mxu0 0.0
        %4008 = vmatpush1.msra.mxu0 0.0
        %4009 = vmatprep.subr.mxu0 0.0
        %4010 = vmatpush1.msra.mxu0 0.0
        %4011 = vmatprep.subr.mxu0 0.0
        %4012 = vmatpush1.msra.mxu0 0.0
        %4013 = vmatprep.subr.mxu0 0.0
        %4014 = vmatpush1.msra.mxu0 0.0
        %4015 = vmatprep.subr.mxu0 0.0
        %4016 = vmatpush1.msra.mxu0 0.0
        %4017 = vmatprep.subr.mxu0 0.0
        %4018 = vmatpush1.msra.mxu0 0.0
        %4019 = vmatprep.subr.mxu0 0.0
        %4020 = vmatpush1.msra.mxu0 0.0
        %4021 = vmatprep.subr.mxu0 0.0
        %4022 = vmatpush1.msra.mxu0 0.0
        %4023 = vmatprep.subr.mxu0 0.0
        %4024 = vmatpush1.msra.mxu0 0.0
        %4025 = vmatprep.subr.mxu0 0.0
        %4026 = vmatpush1.msra.mxu0 0.0
        %4027 = vmatprep.subr.mxu0 0.0
        %4028 = vmatpush1.msra.mxu0 0.0
        %4029 = vmatprep.mubr.f32.mxu0 0.0
        %4030 = vmatmul.mubr.f32.gmra.mrb[0].mxu0 %v3963
        %v4031 = vpop.f32.mrb[0].mxu0
        %v4032 = vadd.f32 0.0, %v4031
        %v4033 = vpop.f32.mrb[0].mxu0
        %4034 = vdwg.mxu0
        %4035 = vst.msk [vmem:[#allocation2] sm:$0xff] %vm1164, %v3927
        %4036 = vst.msk [vmem:[#allocation2] sm:$0xf] %vm2610, %v4032
        %s4037 = scalar_lea.vmem %s1043, 8 [#allocation4]
        %4038 = vst.msk [vmem:[%s4037] sm:$0xff] %vm1466, %v3268
        %s4039 = scalar_lea.vmem %s1049, 8 [#allocation5]
        %4040 = vst.msk [vmem:[%s4039] sm:$0xff] %vm1466, %v3248
        %s4041 = scalar_lea.vmem %s1055, 8 [#allocation6]
        %4042 = vst.msk [vmem:[%s4041] sm:$0xff] %vm1466, %v3846
        %s4043 = scalar_lea.vmem %s1061, 8 [#allocation7]
        %4044 = vst.msk [vmem:[%s4043] sm:$0xff] %vm1466, %v3827
        %s4045 = sand.u32 %s739, 1
        %s4046 = sand.u32 %s739, 1
        %s4047 = smul.addr %s4046, 16
        %s4048 = scalar_lea.vmem [#allocation4], %s4047
        %s4049 = sand.u32 %s765, 1
        %s4050 = sand.u32 %s765, 1
        %s4051 = smul.addr %s4050, 16
        %s4052 = scalar_lea.vmem [#allocation5], %s4051
        %s4053 = sand.u32 %s791, 1
        %s4054 = sand.u32 %s791, 1
        %s4055 = smul.addr %s4054, 16
        %s4056 = scalar_lea.vmem [#allocation6], %s4055
        %s4057 = sand.u32 %s817, 1
        %s4058 = sand.u32 %s817, 1
        %s4059 = smul.addr %s4058, 16
        %s4060 = scalar_lea.vmem [#allocation7], %s4059
        // Predicated region
        $region141: #{tpu_custom_call.1} parent=139 // pred_check
          %p4061 = pneg %p749
        $region142: #{tpu_custom_call.1} parent=139 // pred_check_branch
          %4063 = sbr.rel (%p4061) target = $region144
        $region143: #{tpu_custom_call.1} parent=139 // pred_region
          %s4064 = smul.addr %s81, 8
          %s4065 = scalar_lea.vmem %s61, %s4064
          // Predicated region
          $region145: #{tpu_custom_call.1} parent=143 // pred_check
            _
          $region146: #{tpu_custom_call.1} parent=143 // pred_check_branch
            %4067 = sbr.rel (0) target = $region148
          $region147: #{tpu_custom_call.1} parent=143 // pred_region
            // Predicated region
            $region149: #{tpu_custom_call.1} parent=147 // pred_check
              _
            $region150: #{tpu_custom_call.1} parent=147 // pred_check_branch
              %4069 = sbr.rel (0) target = $region152
            $region151: #{tpu_custom_call.1} parent=147 // pred_region
              // Predicated region
              $region164: #{tpu_custom_call.1} parent=151 // pred_check
                _
              $region165: #{tpu_custom_call.1} parent=151 // pred_check_branch
                %4086 = sbr.rel (0) target = $region167
              $region166: #{tpu_custom_call.1} parent=151 // pred_region
                loop: start=0, step=1, limit=1
                $region168: #{tpu_custom_call.1} parent=166 // loop_pre_header
                  _
                $region169: #{tpu_custom_call.1} parent=166 // loop_header
                  %s4088 = sphi 0, %s4092
                  %p4089 = scmp.ge.s32.totalorder %s4088, 1
                  %s4093 = sphi %s4048, %s4048
                  %s4094 = sphi %s4065, %s4065
                $region170: #{tpu_custom_call.1} parent=166 // loop_header_branch
                  %4091 = sbr.rel (%p4089) target = $region174
                $region171: #{tpu_custom_call.1} parent=166 // loop_body
                  %v4095 = vld [vmem:[%s4093] sm:$0xff]
                  %4096 = vst [vmem:[%s4094] sm:$0xff] %v4095
                  %v4097 = vld [vmem:[%s4093 + $0x8] sm:$0xff]
                  %4098 = vst [vmem:[%s4094 + $0x10] sm:$0xff] %v4097
                $region172: #{tpu_custom_call.1} parent=166 // loop_footer
                  %s4092 = sadd.s32 1, %s4088
                $region173: #{tpu_custom_call.1} parent=166 // loop_footer_branch
                  %4087 = sbr.rel target = $region169
                $region174: #{tpu_custom_call.1} parent=166 // loop_exit
                  _
              $region167: #{tpu_custom_call.1} parent=151 // pred_fallthru
                _
              // Predicated region
              $region175: #{tpu_custom_call.1} parent=151 // pred_check
                _
              $region176: #{tpu_custom_call.1} parent=151 // pred_check_branch
                %4100 = sbr.rel target = $region178
              $region177: #{tpu_custom_call.1} parent=151 // pred_region
                _
              $region178: #{tpu_custom_call.1} parent=151 // pred_fallthru
                _
            $region152: #{tpu_custom_call.1} parent=147 // pred_fallthru
              _
            // Predicated region
            $region153: #{tpu_custom_call.1} parent=147 // pred_check
              _
            $region154: #{tpu_custom_call.1} parent=147 // pred_check_branch
              %4071 = sbr.rel target = $region156
            $region155: #{tpu_custom_call.1} parent=147 // pred_region
              loop: start=0, step=1, limit=1
              $region157: #{tpu_custom_call.1} parent=155 // loop_pre_header
                _
              $region158: #{tpu_custom_call.1} parent=155 // loop_header
                %s4074 = sphi 0, %s4078
                %p4075 = scmp.ge.s32.totalorder %s4074, 1
                %s4079 = sphi %s4048, %s4048
                %s4080 = sphi %s4065, %s4065
              $region159: #{tpu_custom_call.1} parent=155 // loop_header_branch
                %4077 = sbr.rel (%p4075) target = $region163
              $region160: #{tpu_custom_call.1} parent=155 // loop_body
                %v4081 = vld [vmem:[%s4079] sm:$0xff]
                %4082 = vst [vmem:[%s4080] sm:$0xff] %v4081
                %v4083 = vld [vmem:[%s4079 + $0x8] sm:$0xff]
                %4084 = vst [vmem:[%s4080 + $0x10] sm:$0xff] %v4083
              $region161: #{tpu_custom_call.1} parent=155 // loop_footer
                %s4078 = sadd.s32 1, %s4074
              $region162: #{tpu_custom_call.1} parent=155 // loop_footer_branch
                %4073 = sbr.rel target = $region158
              $region163: #{tpu_custom_call.1} parent=155 // loop_exit
                _
            $region156: #{tpu_custom_call.1} parent=147 // pred_fallthru
              _
          $region148: #{tpu_custom_call.1} parent=143 // pred_fallthru
            _
          %4101 = vnop
        $region144: #{tpu_custom_call.1} parent=139 // pred_fallthru
          _
        // Predicated region
        $region179: #{tpu_custom_call.1} parent=139 // pred_check
          %p4102 = pneg %p775
        $region180: #{tpu_custom_call.1} parent=139 // pred_check_branch
          %4104 = sbr.rel (%p4102) target = $region182
        $region181: #{tpu_custom_call.1} parent=139 // pred_region
          %s4105 = smul.addr %s81, 8
          %s4106 = scalar_lea.vmem %s63, %s4105
          // Predicated region
          $region183: #{tpu_custom_call.1} parent=181 // pred_check
            _
          $region184: #{tpu_custom_call.1} parent=181 // pred_check_branch
            %4108 = sbr.rel (0) target = $region186
          $region185: #{tpu_custom_call.1} parent=181 // pred_region
            // Predicated region
            $region187: #{tpu_custom_call.1} parent=185 // pred_check
              _
            $region188: #{tpu_custom_call.1} parent=185 // pred_check_branch
              %4110 = sbr.rel (0) target = $region190
            $region189: #{tpu_custom_call.1} parent=185 // pred_region
              // Predicated region
              $region202: #{tpu_custom_call.1} parent=189 // pred_check
                _
              $region203: #{tpu_custom_call.1} parent=189 // pred_check_branch
                %4127 = sbr.rel (0) target = $region205
              $region204: #{tpu_custom_call.1} parent=189 // pred_region
                loop: start=0, step=1, limit=1
                $region206: #{tpu_custom_call.1} parent=204 // loop_pre_header
                  _
                $region207: #{tpu_custom_call.1} parent=204 // loop_header
                  %s4129 = sphi 0, %s4133
                  %p4130 = scmp.ge.s32.totalorder %s4129, 1
                  %s4134 = sphi %s4052, %s4052
                  %s4135 = sphi %s4106, %s4106
                $region208: #{tpu_custom_call.1} parent=204 // loop_header_branch
                  %4132 = sbr.rel (%p4130) target = $region212
                $region209: #{tpu_custom_call.1} parent=204 // loop_body
                  %v4136 = vld [vmem:[%s4134] sm:$0xff]
                  %4137 = vst [vmem:[%s4135] sm:$0xff] %v4136
                  %v4138 = vld [vmem:[%s4134 + $0x8] sm:$0xff]
                  %4139 = vst [vmem:[%s4135 + $0x10] sm:$0xff] %v4138
                $region210: #{tpu_custom_call.1} parent=204 // loop_footer
                  %s4133 = sadd.s32 1, %s4129
                $region211: #{tpu_custom_call.1} parent=204 // loop_footer_branch
                  %4128 = sbr.rel target = $region207
                $region212: #{tpu_custom_call.1} parent=204 // loop_exit
                  _
              $region205: #{tpu_custom_call.1} parent=189 // pred_fallthru
                _
              // Predicated region
              $region213: #{tpu_custom_call.1} parent=189 // pred_check
                _
              $region214: #{tpu_custom_call.1} parent=189 // pred_check_branch
                %4141 = sbr.rel target = $region216
              $region215: #{tpu_custom_call.1} parent=189 // pred_region
                _
              $region216: #{tpu_custom_call.1} parent=189 // pred_fallthru
                _
            $region190: #{tpu_custom_call.1} parent=185 // pred_fallthru
              _
            // Predicated region
            $region191: #{tpu_custom_call.1} parent=185 // pred_check
              _
            $region192: #{tpu_custom_call.1} parent=185 // pred_check_branch
              %4112 = sbr.rel target = $region194
            $region193: #{tpu_custom_call.1} parent=185 // pred_region
              loop: start=0, step=1, limit=1
              $region195: #{tpu_custom_call.1} parent=193 // loop_pre_header
                _
              $region196: #{tpu_custom_call.1} parent=193 // loop_header
                %s4115 = sphi 0, %s4119
                %p4116 = scmp.ge.s32.totalorder %s4115, 1
                %s4120 = sphi %s4052, %s4052
                %s4121 = sphi %s4106, %s4106
              $region197: #{tpu_custom_call.1} parent=193 // loop_header_branch
                %4118 = sbr.rel (%p4116) target = $region201
              $region198: #{tpu_custom_call.1} parent=193 // loop_body
                %v4122 = vld [vmem:[%s4120] sm:$0xff]
                %4123 = vst [vmem:[%s4121] sm:$0xff] %v4122
                %v4124 = vld [vmem:[%s4120 + $0x8] sm:$0xff]
                %4125 = vst [vmem:[%s4121 + $0x10] sm:$0xff] %v4124
              $region199: #{tpu_custom_call.1} parent=193 // loop_footer
                %s4119 = sadd.s32 1, %s4115
              $region200: #{tpu_custom_call.1} parent=193 // loop_footer_branch
                %4114 = sbr.rel target = $region196
              $region201: #{tpu_custom_call.1} parent=193 // loop_exit
                _
            $region194: #{tpu_custom_call.1} parent=185 // pred_fallthru
              _
          $region186: #{tpu_custom_call.1} parent=181 // pred_fallthru
            _
          %4142 = vnop
        $region182: #{tpu_custom_call.1} parent=139 // pred_fallthru
          _
        // Predicated region
        $region217: #{tpu_custom_call.1} parent=139 // pred_check
          %p4143 = pneg %p801
        $region218: #{tpu_custom_call.1} parent=139 // pred_check_branch
          %4145 = sbr.rel (%p4143) target = $region220
        $region219: #{tpu_custom_call.1} parent=139 // pred_region
          %s4146 = smul.addr %s81, 8
          %s4147 = scalar_lea.vmem %s65, %s4146
          // Predicated region
          $region221: #{tpu_custom_call.1} parent=219 // pred_check
            _
          $region222: #{tpu_custom_call.1} parent=219 // pred_check_branch
            %4149 = sbr.rel (0) target = $region224
          $region223: #{tpu_custom_call.1} parent=219 // pred_region
            // Predicated region
            $region225: #{tpu_custom_call.1} parent=223 // pred_check
              _
            $region226: #{tpu_custom_call.1} parent=223 // pred_check_branch
              %4151 = sbr.rel (0) target = $region228
            $region227: #{tpu_custom_call.1} parent=223 // pred_region
              // Predicated region
              $region240: #{tpu_custom_call.1} parent=227 // pred_check
                _
              $region241: #{tpu_custom_call.1} parent=227 // pred_check_branch
                %4168 = sbr.rel (0) target = $region243
              $region242: #{tpu_custom_call.1} parent=227 // pred_region
                loop: start=0, step=1, limit=1
                $region244: #{tpu_custom_call.1} parent=242 // loop_pre_header
                  _
                $region245: #{tpu_custom_call.1} parent=242 // loop_header
                  %s4170 = sphi 0, %s4174
                  %p4171 = scmp.ge.s32.totalorder %s4170, 1
                  %s4175 = sphi %s4056, %s4056
                  %s4176 = sphi %s4147, %s4147
                $region246: #{tpu_custom_call.1} parent=242 // loop_header_branch
                  %4173 = sbr.rel (%p4171) target = $region250
                $region247: #{tpu_custom_call.1} parent=242 // loop_body
                  %v4177 = vld [vmem:[%s4175] sm:$0xff]
                  %4178 = vst [vmem:[%s4176] sm:$0xff] %v4177
                  %v4179 = vld [vmem:[%s4175 + $0x8] sm:$0xff]
                  %4180 = vst [vmem:[%s4176 + $0x10] sm:$0xff] %v4179
                $region248: #{tpu_custom_call.1} parent=242 // loop_footer
                  %s4174 = sadd.s32 1, %s4170
                $region249: #{tpu_custom_call.1} parent=242 // loop_footer_branch
                  %4169 = sbr.rel target = $region245
                $region250: #{tpu_custom_call.1} parent=242 // loop_exit
                  _
              $region243: #{tpu_custom_call.1} parent=227 // pred_fallthru
                _
              // Predicated region
              $region251: #{tpu_custom_call.1} parent=227 // pred_check
                _
              $region252: #{tpu_custom_call.1} parent=227 // pred_check_branch
                %4182 = sbr.rel target = $region254
              $region253: #{tpu_custom_call.1} parent=227 // pred_region
                _
              $region254: #{tpu_custom_call.1} parent=227 // pred_fallthru
                _
            $region228: #{tpu_custom_call.1} parent=223 // pred_fallthru
              _
            // Predicated region
            $region229: #{tpu_custom_call.1} parent=223 // pred_check
              _
            $region230: #{tpu_custom_call.1} parent=223 // pred_check_branch
              %4153 = sbr.rel target = $region232
            $region231: #{tpu_custom_call.1} parent=223 // pred_region
              loop: start=0, step=1, limit=1
              $region233: #{tpu_custom_call.1} parent=231 // loop_pre_header
                _
              $region234: #{tpu_custom_call.1} parent=231 // loop_header
                %s4156 = sphi 0, %s4160
                %p4157 = scmp.ge.s32.totalorder %s4156, 1
                %s4161 = sphi %s4056, %s4056
                %s4162 = sphi %s4147, %s4147
              $region235: #{tpu_custom_call.1} parent=231 // loop_header_branch
                %4159 = sbr.rel (%p4157) target = $region239
              $region236: #{tpu_custom_call.1} parent=231 // loop_body
                %v4163 = vld [vmem:[%s4161] sm:$0xff]
                %4164 = vst [vmem:[%s4162] sm:$0xff] %v4163
                %v4165 = vld [vmem:[%s4161 + $0x8] sm:$0xff]
                %4166 = vst [vmem:[%s4162 + $0x10] sm:$0xff] %v4165
              $region237: #{tpu_custom_call.1} parent=231 // loop_footer
                %s4160 = sadd.s32 1, %s4156
              $region238: #{tpu_custom_call.1} parent=231 // loop_footer_branch
                %4155 = sbr.rel target = $region234
              $region239: #{tpu_custom_call.1} parent=231 // loop_exit
                _
            $region232: #{tpu_custom_call.1} parent=223 // pred_fallthru
              _
          $region224: #{tpu_custom_call.1} parent=219 // pred_fallthru
            _
          %4183 = vnop
        $region220: #{tpu_custom_call.1} parent=139 // pred_fallthru
          _
        // Predicated region
        $region255: #{tpu_custom_call.1} parent=139 // pred_check
          %p4184 = pneg %p827
        $region256: #{tpu_custom_call.1} parent=139 // pred_check_branch
          %4186 = sbr.rel (%p4184) target = $region258
        $region257: #{tpu_custom_call.1} parent=139 // pred_region
          %s4187 = smul.addr %s81, 8
          %s4188 = scalar_lea.vmem %s67, %s4187
          // Predicated region
          $region259: #{tpu_custom_call.1} parent=257 // pred_check
            _
          $region260: #{tpu_custom_call.1} parent=257 // pred_check_branch
            %4190 = sbr.rel (0) target = $region262
          $region261: #{tpu_custom_call.1} parent=257 // pred_region
            // Predicated region
            $region263: #{tpu_custom_call.1} parent=261 // pred_check
              _
            $region264: #{tpu_custom_call.1} parent=261 // pred_check_branch
              %4192 = sbr.rel (0) target = $region266
            $region265: #{tpu_custom_call.1} parent=261 // pred_region
              // Predicated region
              $region278: #{tpu_custom_call.1} parent=265 // pred_check
                _
              $region279: #{tpu_custom_call.1} parent=265 // pred_check_branch
                %4209 = sbr.rel (0) target = $region281
              $region280: #{tpu_custom_call.1} parent=265 // pred_region
                loop: start=0, step=1, limit=1
                $region282: #{tpu_custom_call.1} parent=280 // loop_pre_header
                  _
                $region283: #{tpu_custom_call.1} parent=280 // loop_header
                  %s4211 = sphi 0, %s4215
                  %p4212 = scmp.ge.s32.totalorder %s4211, 1
                  %s4216 = sphi %s4060, %s4060
                  %s4217 = sphi %s4188, %s4188
                $region284: #{tpu_custom_call.1} parent=280 // loop_header_branch
                  %4214 = sbr.rel (%p4212) target = $region288
                $region285: #{tpu_custom_call.1} parent=280 // loop_body
                  %v4218 = vld [vmem:[%s4216] sm:$0xff]
                  %4219 = vst [vmem:[%s4217] sm:$0xff] %v4218
                  %v4220 = vld [vmem:[%s4216 + $0x8] sm:$0xff]
                  %4221 = vst [vmem:[%s4217 + $0x10] sm:$0xff] %v4220
                $region286: #{tpu_custom_call.1} parent=280 // loop_footer
                  %s4215 = sadd.s32 1, %s4211
                $region287: #{tpu_custom_call.1} parent=280 // loop_footer_branch
                  %4210 = sbr.rel target = $region283
                $region288: #{tpu_custom_call.1} parent=280 // loop_exit
                  _
              $region281: #{tpu_custom_call.1} parent=265 // pred_fallthru
                _
              // Predicated region
              $region289: #{tpu_custom_call.1} parent=265 // pred_check
                _
              $region290: #{tpu_custom_call.1} parent=265 // pred_check_branch
                %4223 = sbr.rel target = $region292
              $region291: #{tpu_custom_call.1} parent=265 // pred_region
                _
              $region292: #{tpu_custom_call.1} parent=265 // pred_fallthru
                _
            $region266: #{tpu_custom_call.1} parent=261 // pred_fallthru
              _
            // Predicated region
            $region267: #{tpu_custom_call.1} parent=261 // pred_check
              _
            $region268: #{tpu_custom_call.1} parent=261 // pred_check_branch
              %4194 = sbr.rel target = $region270
            $region269: #{tpu_custom_call.1} parent=261 // pred_region
              loop: start=0, step=1, limit=1
              $region271: #{tpu_custom_call.1} parent=269 // loop_pre_header
                _
              $region272: #{tpu_custom_call.1} parent=269 // loop_header
                %s4197 = sphi 0, %s4201
                %p4198 = scmp.ge.s32.totalorder %s4197, 1
                %s4202 = sphi %s4060, %s4060
                %s4203 = sphi %s4188, %s4188
              $region273: #{tpu_custom_call.1} parent=269 // loop_header_branch
                %4200 = sbr.rel (%p4198) target = $region277
              $region274: #{tpu_custom_call.1} parent=269 // loop_body
                %v4204 = vld [vmem:[%s4202] sm:$0xff]
                %4205 = vst [vmem:[%s4203] sm:$0xff] %v4204
                %v4206 = vld [vmem:[%s4202 + $0x8] sm:$0xff]
                %4207 = vst [vmem:[%s4203 + $0x10] sm:$0xff] %v4206
              $region275: #{tpu_custom_call.1} parent=269 // loop_footer
                %s4201 = sadd.s32 1, %s4197
              $region276: #{tpu_custom_call.1} parent=269 // loop_footer_branch
                %4196 = sbr.rel target = $region272
              $region277: #{tpu_custom_call.1} parent=269 // loop_exit
                _
            $region270: #{tpu_custom_call.1} parent=261 // pred_fallthru
              _
          $region262: #{tpu_custom_call.1} parent=257 // pred_fallthru
            _
          %4224 = vnop
        $region258: #{tpu_custom_call.1} parent=139 // pred_fallthru
          _
      $region140: #{tpu_custom_call.1} parent=5 // pred_fallthru
        _
      %p4225 = scmp.le.s32.totalorder 2, %s76
      // Predicated region
      $region293: #{tpu_custom_call.1} parent=5 // pred_check
        %p4226 = pneg %p4225
      $region294: #{tpu_custom_call.1} parent=5 // pred_check_branch
        %4228 = sbr.rel (%p4226) target = $region296
      $region295: #{tpu_custom_call.1} parent=5 // pred_region
        %s4229 = ssub.s32 %s76, 2
        // Predicated region
        $region297: #{tpu_custom_call.1} parent=295 // pred_check
          %p4230 = pneg %p755
        $region298: #{tpu_custom_call.1} parent=295 // pred_check_branch
          %4232 = sbr.rel (%p4230) target = $region300
        $region299: #{tpu_custom_call.1} parent=295 // pred_region
          %s4233 = sand.u32 %s740, 1
          %s4234 = sand.u32 %s740, 1
          %s4235 = smul.addr %s4234, 16
          %s4236 = scalar_lea.vmem [#allocation4], %s4235
        $region300: #{tpu_custom_call.1} parent=295 // pred_fallthru
          _
        // Predicated region
        $region301: #{tpu_custom_call.1} parent=295 // pred_check
          %p4237 = pneg %p781
        $region302: #{tpu_custom_call.1} parent=295 // pred_check_branch
          %4239 = sbr.rel (%p4237) target = $region304
        $region303: #{tpu_custom_call.1} parent=295 // pred_region
          %s4240 = sand.u32 %s766, 1
          %s4241 = sand.u32 %s766, 1
          %s4242 = smul.addr %s4241, 16
          %s4243 = scalar_lea.vmem [#allocation5], %s4242
        $region304: #{tpu_custom_call.1} parent=295 // pred_fallthru
          _
        // Predicated region
        $region305: #{tpu_custom_call.1} parent=295 // pred_check
          %p4244 = pneg %p807
        $region306: #{tpu_custom_call.1} parent=295 // pred_check_branch
          %4246 = sbr.rel (%p4244) target = $region308
        $region307: #{tpu_custom_call.1} parent=295 // pred_region
          %s4247 = sand.u32 %s792, 1
          %s4248 = sand.u32 %s792, 1
          %s4249 = smul.addr %s4248, 16
          %s4250 = scalar_lea.vmem [#allocation6], %s4249
        $region308: #{tpu_custom_call.1} parent=295 // pred_fallthru
          _
        // Predicated region
        $region309: #{tpu_custom_call.1} parent=295 // pred_check
          %p4251 = pneg %p833
        $region310: #{tpu_custom_call.1} parent=295 // pred_check_branch
          %4253 = sbr.rel (%p4251) target = $region312
        $region311: #{tpu_custom_call.1} parent=295 // pred_region
          %s4254 = sand.u32 %s818, 1
          %s4255 = sand.u32 %s818, 1
          %s4256 = smul.addr %s4255, 16
          %s4257 = scalar_lea.vmem [#allocation7], %s4256
        $region312: #{tpu_custom_call.1} parent=295 // pred_fallthru
          _
      $region296: #{tpu_custom_call.1} parent=5 // pred_fallthru
        _
    $region6: #{tpu_custom_call.1} parent=1 // loop_footer
      %s80 = sadd.s32 1, %s76
    $region7: #{tpu_custom_call.1} parent=1 // loop_footer_branch
      %75 = sbr.rel target = $region3
    $region8: #{tpu_custom_call.1} parent=1 // loop_exit
      _

</llo_original>
